<compile_context>
chip_gen: v7x
topology: tpu7x:2x2x1
jax: 0.10.0
libtpu: 0.0.40
codegen_flags: <defaults>
</compile_context>

<pallas_src>
import math

import jax
import jax.numpy as jnp
import numpy as np
from jax.experimental import pallas as pl
from jax.experimental.pallas import tpu as pltpu

# ---------------------------------------------------------------------------
# Small DistilBERT-like configuration (real DistilBertConfig defaults are
# dim=768, n_layers=6, n_heads=12, hidden_dim=3072 -- scaled down here).
# ---------------------------------------------------------------------------
VOCAB = 100
MAX_POS = 16
DIM = 32
N_HEADS = 4
HEAD_DIM = DIM // N_HEADS
FFN_DIM = 64
N_LAYERS = 2
LN_EPS = 1e-12          # DistilBERT LayerNorm eps
B = 2
S = 8
TARGET_TOKEN_IDX = 0    # self.target_token_idx in the PyTorch module

MASK_NEG = -1e30        # additive mask bias (exp underflows to exactly 0)


# ---------------------------------------------------------------------------
# In-kernel math helpers (pure jnp, traced inside the Pallas kernel).
# All run in f32 on the VPU/EUP.
# ---------------------------------------------------------------------------
def _layernorm(x, g, b):
    mean = jnp.mean(x, axis=-1, keepdims=True)
    var = jnp.mean((x - mean) ** 2, axis=-1, keepdims=True)
    return (x - mean) * jax.lax.rsqrt(var + LN_EPS) * g + b


def _gelu(x):
    # TODO(synk): HF DistilBERT uses the exact erf-based GELU; tanh
    # approximation used here since erf has no guaranteed Mosaic lowering.
    c = math.sqrt(2.0 / math.pi)
    return 0.5 * x * (1.0 + jnp.tanh(c * (x + 0.044715 * x * x * x)))


# ---------------------------------------------------------------------------
# Single fused Pallas kernel: embedding LayerNorm -> N transformer layers ->
# hidden state of TARGET_TOKEN_IDX (last layer computed for target rows only).
# ---------------------------------------------------------------------------
def _encoder_kernel(x_ref, mask_ref, emb_g_ref, emb_b_ref,
                    wqkv_ref, bqkv_ref, wo_ref, bo_ref,
                    ln1g_ref, ln1b_ref, w1_ref, b1_ref, w2_ref, b2_ref,
                    ln2g_ref, ln2b_ref, o_ref):
    bs, d = x_ref.shape                       # (B*S, D)
    b, s = mask_ref.shape                     # (B, S)
    n_layers = wqkv_ref.shape[0]
    scale = 1.0 / math.sqrt(HEAD_DIM)
    tgt = TARGET_TOKEN_IDX

    # Embedding LayerNorm on the flat activation slab (input already f32).
    xf = _layernorm(x_ref[...], emb_g_ref[...], emb_b_ref[...])     # (BS, D)

    # Hoisted attention-mask bias: built & broadcast once per kernel.
    m = mask_ref[...]                                                # (B, S)
    bias = jnp.where(m == 0.0, jnp.float32(MASK_NEG), jnp.float32(0.0))
    bias_full = jnp.broadcast_to(bias[:, None, :], (b, s, s))        # (B, Sq, Sk)

    for l in range(n_layers):                 # static layer loop (fused)
        last = (l == n_layers - 1)
        nq = 1 if last else s                 # query rows kept in the last layer

        # ---- fused Q/K/V projection: one lane-dense (BS,D)x(D,3D) matmul ----
        xb = xf.astype(jnp.bfloat16)          # bf16 MXU operands, f32 accumulate
        qkv = jnp.dot(xb, wqkv_ref[l],
                      preferred_element_type=jnp.float32) + bqkv_ref[l]   # (BS,3D) f32

        # Reshape ONCE per layer to the batched (B, S, D) layout.
        q3 = qkv[:, 0:d].reshape(b, s, d)
        k3 = qkv[:, d:2 * d].reshape(b, s, d)
        v3 = qkv[:, 2 * d:3 * d].reshape(b, s, d)

        if last:
            # Query-side work only for the B target-token rows; K/V stay full.
            q3 = q3[:, tgt:tgt + 1, :]                               # (B, 1, D)
            resid = xf.reshape(b, s, d)[:, tgt:tgt + 1, :].reshape(b, d)
            bias_l = bias_full[:, tgt:tgt + 1, :]                    # (B, 1, S)
        else:
            resid = xf                                               # (BS, D)
            bias_l = bias_full                                       # (B, S, S)

        q3 = (q3 * scale).astype(jnp.bfloat16)
        k3b = k3.astype(jnp.bfloat16)
        v3b = v3.astype(jnp.bfloat16)

        # ---- multi-head self-attention (static head loop; softmax in f32) ----
        ctxs = []
        for h in range(N_HEADS):
            lo, hi = h * HEAD_DIM, (h + 1) * HEAD_DIM
            qh = q3[:, :, lo:hi]                                     # (B, nq, Dh)
            kh = k3b[:, :, lo:hi]                                    # (B, S,  Dh)
            vh = v3b[:, :, lo:hi]                                    # (B, S,  Dh)

            sc = jnp.einsum('bqd,bkd->bqk', qh, kh,
                            preferred_element_type=jnp.float32) + bias_l
            sc = sc - jnp.max(sc, axis=-1, keepdims=True)
            e = jnp.exp(sc)
            inv = pl.reciprocal(jnp.sum(e, axis=-1, keepdims=True), approx=True)
            p = (e * inv).astype(jnp.bfloat16)
            ctxs.append(jnp.einsum('bqk,bkd->bqd', p, vh,
                                   preferred_element_type=jnp.float32))

        # ---- output projection: assemble contexts, ONE dense (D x D) matmul ----
        ctx = jnp.concatenate(ctxs, axis=-1).reshape(b * nq, d)      # (rows, D) f32
        attn = jnp.dot(ctx.astype(jnp.bfloat16), wo_ref[l],
                       preferred_element_type=jnp.float32) + bo_ref[l]
        xr = _layernorm(attn + resid, ln1g_ref[l], ln1b_ref[l])      # (rows, D)

        # ---- feed-forward (last layer: only the B target rows) ----
        hdn = _gelu(jnp.dot(xr.astype(jnp.bfloat16), w1_ref[l],
                            preferred_element_type=jnp.float32) + b1_ref[l])
        ffn = jnp.dot(hdn.astype(jnp.bfloat16), w2_ref[l],
                      preferred_element_type=jnp.float32) + b2_ref[l]
        xf = _layernorm(ffn + xr, ln2g_ref[l], ln2b_ref[l])          # (rows, D)

    # After the last layer xf already holds only the target-token rows.
    o_ref[...] = xf                                                  # (B, D)


# ---------------------------------------------------------------------------
# Parameter init (deterministic, synthetic) and forward pass.
# ---------------------------------------------------------------------------
def init_params(key):
    keys = jax.random.split(key, 2 + N_LAYERS)

    def dense(k, fan_in, fan_out):
        kw, kb = jax.random.split(k)
        w = jax.random.normal(kw, (fan_in, fan_out), jnp.float32) * 0.02
        bvec = jax.random.normal(kb, (1, fan_out), jnp.float32) * 0.02
        return w, bvec

    params = {
        'word_emb': jax.random.normal(keys[0], (VOCAB, DIM), jnp.float32) * 0.02,
        'pos_emb': jax.random.normal(keys[1], (MAX_POS, DIM), jnp.float32) * 0.02,
        'emb_ln_g': jnp.ones((1, DIM), jnp.float32),
        'emb_ln_b': jnp.zeros((1, DIM), jnp.float32),
        'layers': [],
    }
    for i in range(N_LAYERS):
        lk = jax.random.split(keys[2 + i], 6)
        wq, bq = dense(lk[0], DIM, DIM)
        wk, bk = dense(lk[1], DIM, DIM)
        wv, bv = dense(lk[2], DIM, DIM)
        wo, bo = dense(lk[3], DIM, DIM)
        w1, b1 = dense(lk[4], DIM, FFN_DIM)
        w2, b2 = dense(lk[5], FFN_DIM, DIM)
        params['layers'].append(dict(
            wq=wq, bq=bq, wk=wk, bk=bk, wv=wv, bv=bv, wo=wo, bo=bo,
            ln1_g=jnp.ones((1, DIM), jnp.float32),
            ln1_b=jnp.zeros((1, DIM), jnp.float32),
            w1=w1, b1=b1, w2=w2, b2=b2,
            ln2_g=jnp.ones((1, DIM), jnp.float32),
            ln2_b=jnp.zeros((1, DIM), jnp.float32),
        ))
    return params


def _stack_layers(params):
    """Stack per-layer weights to [L, ...], fuse Q/K/V, cast matmul weights bf16."""
    L = len(params['layers'])

    def stack(name):
        return jnp.stack([params['layers'][i][name] for i in range(L)])

    wqkv = jnp.concatenate([stack('wq'), stack('wk'), stack('wv')], axis=-1)  # (L,D,3D)
    bqkv = jnp.concatenate([stack('bq'), stack('bk'), stack('bv')], axis=-1)  # (L,1,3D)
    wo, bo = stack('wo'), stack('bo')
    ln1g, ln1b = stack('ln1_g'), stack('ln1_b')
    w1, b1 = stack('w1'), stack('b1')
    w2, b2 = stack('w2'), stack('b2')
    ln2g, ln2b = stack('ln2_g'), stack('ln2_b')
    bf = jnp.bfloat16
    return (wqkv.astype(bf), bqkv, wo.astype(bf), bo,
            ln1g, ln1b, w1.astype(bf), b1, w2.astype(bf), b2, ln2g, ln2b)


def text_encoder_forward(params, input_ids, attention_mask):
    """Equivalent of TextEncoder.forward: DistilBERT, then token-0 embedding."""
    b, s = input_ids.shape
    # Embedding gather (glue, plain JAX); dropout is a no-op in eval mode.
    x = params['word_emb'][input_ids] + params['pos_emb'][jnp.arange(s)][None, :, :]
    x = x.reshape(b * s, DIM)                       # flat activation slab
    mask = attention_mask.astype(jnp.float32)

    operands = (x, mask, params['emb_ln_g'], params['emb_ln_b']) + _stack_layers(params)
    return pl.pallas_call(
        _encoder_kernel,
        out_shape=jax.ShapeDtypeStruct((b, DIM), jnp.float32),
        in_specs=[pl.BlockSpec(memory_space=pltpu.MemorySpace.VMEM)
                  for _ in operands],
        out_specs=pl.BlockSpec(memory_space=pltpu.MemorySpace.VMEM),
        compiler_params=pltpu.CompilerParams(
            # Headroom well under v7x's 64 MiB physical VMEM; resident buffers
            # at this toy size are only a few hundred KiB.
            vmem_limit_bytes=32 * 1024 * 1024),
    )(*operands)


# ---------------------------------------------------------------------------
# Pure-JAX f32 reference (same math, no Pallas) for a correctness check.
# Tolerance is loosened to cover bf16 MXU operands + approx reciprocal.
# ---------------------------------------------------------------------------
def _reference_forward(params, input_ids, attention_mask):
    seq_len = input_ids.shape[1]
    x = params['word_emb'][input_ids] + params['pos_emb'][jnp.arange(seq_len)][None, :, :]
    x = _layernorm(x, params['emb_ln_g'], params['emb_ln_b'])
    m = attention_mask.astype(jnp.float32)
    neg = jnp.finfo(jnp.float32).min
    scale = 1.0 / math.sqrt(HEAD_DIM)
    for lyr in params['layers']:
        xf = x.reshape(-1, DIM)
        q = (xf @ lyr['wq'] + lyr['bq']).reshape(x.shape[0], seq_len, N_HEADS, HEAD_DIM)
        k = (xf @ lyr['wk'] + lyr['bk']).reshape(x.shape[0], seq_len, N_HEADS, HEAD_DIM)
        v = (xf @ lyr['wv'] + lyr['bv']).reshape(x.shape[0], seq_len, N_HEADS, HEAD_DIM)
        sc = jnp.einsum('bqhd,bkhd->bhqk', q * scale, k)
        sc = jnp.where(m[:, None, None, :] == 0.0, neg, sc)
        w = jax.nn.softmax(sc, axis=-1)
        ctx = jnp.einsum('bhqk,bkhd->bqhd', w, v).reshape(-1, DIM)
        attn_out = ctx @ lyr['wo'] + lyr['bo']
        sa = _layernorm(attn_out + xf, lyr['ln1_g'], lyr['ln1_b'])
        ffn = _gelu(sa @ lyr['w1'] + lyr['b1']) @ lyr['w2'] + lyr['b2']
        x = _layernorm(ffn + sa, lyr['ln2_g'], lyr['ln2_b']).reshape(x.shape)
    return x[:, TARGET_TOKEN_IDX, :]


if __name__ == "__main__":
    key = jax.random.PRNGKey(0)
    k_param, k_ids = jax.random.split(key)
    params = init_params(k_param)

    input_ids = jax.random.randint(k_ids, (B, S), 0, VOCAB, dtype=jnp.int32)
    attention_mask = jnp.ones((B, S), dtype=jnp.int32)
    attention_mask = attention_mask.at[1, -2:].set(0)   # pad tail of sample 1

    fwd = jax.jit(text_encoder_forward)
    out = jax.block_until_ready(fwd(params, input_ids, attention_mask))
    assert out.shape == (B, DIM), out.shape

    ref = jax.block_until_ready(_reference_forward(params, input_ids, attention_mask))
    # Loosened tolerance: bf16 MXU operands + EUP approx reciprocal in softmax.
    np.testing.assert_allclose(np.asarray(out), np.asarray(ref), rtol=2e-2, atol=2e-2)

    print("KERNEL_OK")
</pallas_src>

<mosaic_0001>
module attributes {stable_mosaic.version = 11 : i64} {
  func.func @_encoder_kernel(%arg0: memref<16x32xf32, #tpu.memory_space<vmem>>, %arg1: memref<2x8xf32, #tpu.memory_space<vmem>>, %arg2: memref<1x32xf32, #tpu.memory_space<vmem>>, %arg3: memref<1x32xf32, #tpu.memory_space<vmem>>, %arg4: memref<2x32x96xbf16, #tpu.memory_space<vmem>>, %arg5: memref<2x1x96xf32, #tpu.memory_space<vmem>>, %arg6: memref<2x32x32xbf16, #tpu.memory_space<vmem>>, %arg7: memref<2x1x32xf32, #tpu.memory_space<vmem>>, %arg8: memref<2x1x32xf32, #tpu.memory_space<vmem>>, %arg9: memref<2x1x32xf32, #tpu.memory_space<vmem>>, %arg10: memref<2x32x64xbf16, #tpu.memory_space<vmem>>, %arg11: memref<2x1x64xf32, #tpu.memory_space<vmem>>, %arg12: memref<2x64x32xbf16, #tpu.memory_space<vmem>>, %arg13: memref<2x1x32xf32, #tpu.memory_space<vmem>>, %arg14: memref<2x1x32xf32, #tpu.memory_space<vmem>>, %arg15: memref<2x1x32xf32, #tpu.memory_space<vmem>>, %arg16: memref<2x32xf32, #tpu.memory_space<vmem>>) attributes {dimension_semantics = [], scalar_prefetch = 0 : i64, scratch_operands = 0 : i64, tpu.core_type = #tpu.core_type<tc>} {
    %c0 = arith.constant 0 : index
    %c0_0 = arith.constant 0 : index
    %0 = vector.load %arg0[%c0, %c0_0] : memref<16x32xf32, #tpu.memory_space<vmem>>, vector<16x32xf32>
    %c0_1 = arith.constant 0 : index
    %c0_2 = arith.constant 0 : index
    %1 = vector.load %arg2[%c0_1, %c0_2] : memref<1x32xf32, #tpu.memory_space<vmem>>, vector<1x32xf32>
    %c0_3 = arith.constant 0 : index
    %c0_4 = arith.constant 0 : index
    %2 = vector.load %arg3[%c0_3, %c0_4] : memref<1x32xf32, #tpu.memory_space<vmem>>, vector<1x32xf32>
    %cst = arith.constant dense<0.000000e+00> : vector<16xf32>
    %3 = vector.multi_reduction <add>, %0, %cst [1] : vector<16x32xf32> to vector<16xf32>
    %4 = vector.shape_cast %3 : vector<16xf32> to vector<16x1xf32>
    %cst_5 = arith.constant 3.200000e+01 : f32
    %5 = vector.broadcast %cst_5 : f32 to vector<16x1xf32>
    %6 = arith.divf %4, %5 : vector<16x1xf32>
    %7 = vector.broadcast %6 : vector<16x1xf32> to vector<16x32xf32>
    %8 = arith.subf %0, %7 : vector<16x32xf32>
    %9 = arith.mulf %8, %8 : vector<16x32xf32>
    %cst_6 = arith.constant dense<0.000000e+00> : vector<16xf32>
    %10 = vector.multi_reduction <add>, %9, %cst_6 [1] : vector<16x32xf32> to vector<16xf32>
    %11 = vector.shape_cast %10 : vector<16xf32> to vector<16x1xf32>
    %cst_7 = arith.constant 3.200000e+01 : f32
    %12 = vector.broadcast %cst_7 : f32 to vector<16x1xf32>
    %13 = arith.divf %11, %12 : vector<16x1xf32>
    %14 = vector.broadcast %6 : vector<16x1xf32> to vector<16x32xf32>
    %15 = arith.subf %0, %14 : vector<16x32xf32>
    %cst_8 = arith.constant 9.99999996E-13 : f32
    %16 = vector.broadcast %cst_8 : f32 to vector<16x1xf32>
    %17 = arith.addf %13, %16 : vector<16x1xf32>
    %18 = math.rsqrt %17 : vector<16x1xf32>
    %19 = vector.broadcast %18 : vector<16x1xf32> to vector<16x32xf32>
    %20 = arith.mulf %15, %19 : vector<16x32xf32>
    %21 = vector.broadcast %1 : vector<1x32xf32> to vector<16x32xf32>
    %22 = arith.mulf %20, %21 : vector<16x32xf32>
    %23 = vector.broadcast %2 : vector<1x32xf32> to vector<16x32xf32>
    %24 = arith.addf %22, %23 : vector<16x32xf32>
    %c0_9 = arith.constant 0 : index
    %c0_10 = arith.constant 0 : index
    %25 = vector.load %arg1[%c0_9, %c0_10] : memref<2x8xf32, #tpu.memory_space<vmem>>, vector<2x8xf32>
    %cst_11 = arith.constant 0.000000e+00 : f32
    %26 = vector.broadcast %cst_11 : f32 to vector<2x8xf32>
    %27 = arith.cmpf oeq, %25, %26 : vector<2x8xf32>
    %cst_12 = arith.constant -1.000000e+30 : f32
    %cst_13 = arith.constant 0.000000e+00 : f32
    %28 = vector.broadcast %cst_12 : f32 to vector<2x8xf32>
    %29 = vector.broadcast %cst_13 : f32 to vector<2x8xf32>
    %30 = arith.select %27, %28, %29 : vector<2x8xi1>, vector<2x8xf32>
    %31 = vector.shape_cast %30 : vector<2x8xf32> to vector<2x1x8xf32>
    %32 = vector.shape_cast %31 : vector<2x1x8xf32> to vector<2x1x8xf32>
    %33 = vector.broadcast %32 : vector<2x1x8xf32> to vector<2x8x8xf32>
    %34 = arith.truncf %24 : vector<16x32xf32> to vector<16x32xbf16>
    %c0_14 = arith.constant 0 : index
    %c0_15 = arith.constant 0 : index
    %c0_16 = arith.constant 0 : index
    %35 = vector.load %arg4[%c0_14, %c0_15, %c0_16] : memref<2x32x96xbf16, #tpu.memory_space<vmem>>, vector<1x32x96xbf16>
    %36 = vector.shape_cast %35 : vector<1x32x96xbf16> to vector<32x96xbf16>
    %cst_17 = arith.constant dense<0.000000e+00> : vector<16x96xf32>
    %37 = tpu.matmul %34, %36, %cst_17 {dimension_numbers = #tpu.dot_dimension_numbers<[1], [0], [0], [1], [0, 0, 1, 1], [], []>} : vector<16x32xbf16>, vector<32x96xbf16>, vector<16x96xf32> -> vector<16x96xf32>
    %c0_18 = arith.constant 0 : index
    %c0_19 = arith.constant 0 : index
    %c0_20 = arith.constant 0 : index
    %38 = vector.load %arg5[%c0_18, %c0_19, %c0_20] : memref<2x1x96xf32, #tpu.memory_space<vmem>>, vector<1x1x96xf32>
    %39 = vector.shape_cast %38 : vector<1x1x96xf32> to vector<1x96xf32>
    %40 = vector.broadcast %39 : vector<1x96xf32> to vector<16x96xf32>
    %41 = arith.addf %37, %40 : vector<16x96xf32>
    %42 = vector.extract_strided_slice %41 {offsets = [0, 0], sizes = [16, 32], strides = [1, 1]} : vector<16x96xf32> to vector<16x32xf32>
    %43 = vector.shape_cast %42 : vector<16x32xf32> to vector<2x8x32xf32>
    %44 = vector.extract_strided_slice %41 {offsets = [0, 32], sizes = [16, 32], strides = [1, 1]} : vector<16x96xf32> to vector<16x32xf32>
    %45 = vector.shape_cast %44 : vector<16x32xf32> to vector<2x8x32xf32>
    %46 = vector.extract_strided_slice %41 {offsets = [0, 64], sizes = [16, 32], strides = [1, 1]} : vector<16x96xf32> to vector<16x32xf32>
    %47 = vector.shape_cast %46 : vector<16x32xf32> to vector<2x8x32xf32>
    %cst_21 = arith.constant 0.353553385 : f32
    %48 = vector.broadcast %cst_21 : f32 to vector<2x8x32xf32>
    %49 = arith.mulf %43, %48 : vector<2x8x32xf32>
    %50 = arith.truncf %49 : vector<2x8x32xf32> to vector<2x8x32xbf16>
    %51 = arith.truncf %45 : vector<2x8x32xf32> to vector<2x8x32xbf16>
    %52 = arith.truncf %47 : vector<2x8x32xf32> to vector<2x8x32xbf16>
    %53 = vector.extract_strided_slice %50 {offsets = [0, 0, 0], sizes = [2, 8, 8], strides = [1, 1, 1]} : vector<2x8x32xbf16> to vector<2x8x8xbf16>
    %54 = vector.extract_strided_slice %51 {offsets = [0, 0, 0], sizes = [2, 8, 8], strides = [1, 1, 1]} : vector<2x8x32xbf16> to vector<2x8x8xbf16>
    %55 = vector.extract_strided_slice %52 {offsets = [0, 0, 0], sizes = [2, 8, 8], strides = [1, 1, 1]} : vector<2x8x32xbf16> to vector<2x8x8xbf16>
    "tpu.trace_start"() <{level = 10 : i32, message = "bqd,bkd->bqk"}> : () -> ()
    %cst_22 = arith.constant dense<0.000000e+00> : vector<2x8x8xf32>
    %56 = tpu.matmul %53, %54, %cst_22 {dimension_numbers = #tpu.dot_dimension_numbers<[2], [2], [1], [1], [0, 0, 0, 1, 1, 1], [0], [0]>} : vector<2x8x8xbf16>, vector<2x8x8xbf16>, vector<2x8x8xf32> -> vector<2x8x8xf32>
    "tpu.trace_stop"() : () -> ()
    %57 = arith.addf %56, %33 : vector<2x8x8xf32>
    %cst_23 = arith.constant dense<0xFF800000> : vector<2x8xf32>
    %58 = vector.multi_reduction <maximumf>, %57, %cst_23 [2] : vector<2x8x8xf32> to vector<2x8xf32>
    %59 = vector.shape_cast %58 : vector<2x8xf32> to vector<2x8x1xf32>
    %60 = vector.broadcast %59 : vector<2x8x1xf32> to vector<2x8x8xf32>
    %61 = arith.subf %57, %60 : vector<2x8x8xf32>
    %62 = math.exp %61 : vector<2x8x8xf32>
    %cst_24 = arith.constant dense<0.000000e+00> : vector<2x8xf32>
    %63 = vector.multi_reduction <add>, %62, %cst_24 [2] : vector<2x8x8xf32> to vector<2x8xf32>
    %64 = vector.shape_cast %63 : vector<2x8xf32> to vector<2x8x1xf32>
    %65 = tpu.reciprocal %64 {approx = true} : vector<2x8x1xf32> -> vector<2x8x1xf32>
    %66 = vector.broadcast %65 : vector<2x8x1xf32> to vector<2x8x8xf32>
    %67 = arith.mulf %62, %66 : vector<2x8x8xf32>
    %68 = arith.truncf %67 : vector<2x8x8xf32> to vector<2x8x8xbf16>
    "tpu.trace_start"() <{level = 10 : i32, message = "bqk,bkd->bqd"}> : () -> ()
    %cst_25 = arith.constant dense<0.000000e+00> : vector<2x8x8xf32>
    %69 = tpu.matmul %68, %55, %cst_25 {dimension_numbers = #tpu.dot_dimension_numbers<[2], [1], [1], [2], [0, 0, 0, 1, 1, 2], [0], [0]>} : vector<2x8x8xbf16>, vector<2x8x8xbf16>, vector<2x8x8xf32> -> vector<2x8x8xf32>
    "tpu.trace_stop"() : () -> ()
    %70 = vector.extract_strided_slice %50 {offsets = [0, 0, 8], sizes = [2, 8, 8], strides = [1, 1, 1]} : vector<2x8x32xbf16> to vector<2x8x8xbf16>
    %71 = vector.extract_strided_slice %51 {offsets = [0, 0, 8], sizes = [2, 8, 8], strides = [1, 1, 1]} : vector<2x8x32xbf16> to vector<2x8x8xbf16>
    %72 = vector.extract_strided_slice %52 {offsets = [0, 0, 8], sizes = [2, 8, 8], strides = [1, 1, 1]} : vector<2x8x32xbf16> to vector<2x8x8xbf16>
    "tpu.trace_start"() <{level = 10 : i32, message = "bqd,bkd->bqk"}> : () -> ()
    %cst_26 = arith.constant dense<0.000000e+00> : vector<2x8x8xf32>
    %73 = tpu.matmul %70, %71, %cst_26 {dimension_numbers = #tpu.dot_dimension_numbers<[2], [2], [1], [1], [0, 0, 0, 1, 1, 1], [0], [0]>} : vector<2x8x8xbf16>, vector<2x8x8xbf16>, vector<2x8x8xf32> -> vector<2x8x8xf32>
    "tpu.trace_stop"() : () -> ()
    %74 = arith.addf %73, %33 : vector<2x8x8xf32>
    %cst_27 = arith.constant dense<0xFF800000> : vector<2x8xf32>
    %75 = vector.multi_reduction <maximumf>, %74, %cst_27 [2] : vector<2x8x8xf32> to vector<2x8xf32>
    %76 = vector.shape_cast %75 : vector<2x8xf32> to vector<2x8x1xf32>
    %77 = vector.broadcast %76 : vector<2x8x1xf32> to vector<2x8x8xf32>
    %78 = arith.subf %74, %77 : vector<2x8x8xf32>
    %79 = math.exp %78 : vector<2x8x8xf32>
    %cst_28 = arith.constant dense<0.000000e+00> : vector<2x8xf32>
    %80 = vector.multi_reduction <add>, %79, %cst_28 [2] : vector<2x8x8xf32> to vector<2x8xf32>
    %81 = vector.shape_cast %80 : vector<2x8xf32> to vector<2x8x1xf32>
    %82 = tpu.reciprocal %81 {approx = true} : vector<2x8x1xf32> -> vector<2x8x1xf32>
    %83 = vector.broadcast %82 : vector<2x8x1xf32> to vector<2x8x8xf32>
    %84 = arith.mulf %79, %83 : vector<2x8x8xf32>
    %85 = arith.truncf %84 : vector<2x8x8xf32> to vector<2x8x8xbf16>
    "tpu.trace_start"() <{level = 10 : i32, message = "bqk,bkd->bqd"}> : () -> ()
    %cst_29 = arith.constant dense<0.000000e+00> : vector<2x8x8xf32>
    %86 = tpu.matmul %85, %72, %cst_29 {dimension_numbers = #tpu.dot_dimension_numbers<[2], [1], [1], [2], [0, 0, 0, 1, 1, 2], [0], [0]>} : vector<2x8x8xbf16>, vector<2x8x8xbf16>, vector<2x8x8xf32> -> vector<2x8x8xf32>
    "tpu.trace_stop"() : () -> ()
    %87 = vector.extract_strided_slice %50 {offsets = [0, 0, 16], sizes = [2, 8, 8], strides = [1, 1, 1]} : vector<2x8x32xbf16> to vector<2x8x8xbf16>
    %88 = vector.extract_strided_slice %51 {offsets = [0, 0, 16], sizes = [2, 8, 8], strides = [1, 1, 1]} : vector<2x8x32xbf16> to vector<2x8x8xbf16>
    %89 = vector.extract_strided_slice %52 {offsets = [0, 0, 16], sizes = [2, 8, 8], strides = [1, 1, 1]} : vector<2x8x32xbf16> to vector<2x8x8xbf16>
    "tpu.trace_start"() <{level = 10 : i32, message = "bqd,bkd->bqk"}> : () -> ()
    %cst_30 = arith.constant dense<0.000000e+00> : vector<2x8x8xf32>
    %90 = tpu.matmul %87, %88, %cst_30 {dimension_numbers = #tpu.dot_dimension_numbers<[2], [2], [1], [1], [0, 0, 0, 1, 1, 1], [0], [0]>} : vector<2x8x8xbf16>, vector<2x8x8xbf16>, vector<2x8x8xf32> -> vector<2x8x8xf32>
    "tpu.trace_stop"() : () -> ()
    %91 = arith.addf %90, %33 : vector<2x8x8xf32>
    %cst_31 = arith.constant dense<0xFF800000> : vector<2x8xf32>
    %92 = vector.multi_reduction <maximumf>, %91, %cst_31 [2] : vector<2x8x8xf32> to vector<2x8xf32>
    %93 = vector.shape_cast %92 : vector<2x8xf32> to vector<2x8x1xf32>
    %94 = vector.broadcast %93 : vector<2x8x1xf32> to vector<2x8x8xf32>
    %95 = arith.subf %91, %94 : vector<2x8x8xf32>
    %96 = math.exp %95 : vector<2x8x8xf32>
    %cst_32 = arith.constant dense<0.000000e+00> : vector<2x8xf32>
    %97 = vector.multi_reduction <add>, %96, %cst_32 [2] : vector<2x8x8xf32> to vector<2x8xf32>
    %98 = vector.shape_cast %97 : vector<2x8xf32> to vector<2x8x1xf32>
    %99 = tpu.reciprocal %98 {approx = true} : vector<2x8x1xf32> -> vector<2x8x1xf32>
    %100 = vector.broadcast %99 : vector<2x8x1xf32> to vector<2x8x8xf32>
    %101 = arith.mulf %96, %100 : vector<2x8x8xf32>
    %102 = arith.truncf %101 : vector<2x8x8xf32> to vector<2x8x8xbf16>
    "tpu.trace_start"() <{level = 10 : i32, message = "bqk,bkd->bqd"}> : () -> ()
    %cst_33 = arith.constant dense<0.000000e+00> : vector<2x8x8xf32>
    %103 = tpu.matmul %102, %89, %cst_33 {dimension_numbers = #tpu.dot_dimension_numbers<[2], [1], [1], [2], [0, 0, 0, 1, 1, 2], [0], [0]>} : vector<2x8x8xbf16>, vector<2x8x8xbf16>, vector<2x8x8xf32> -> vector<2x8x8xf32>
    "tpu.trace_stop"() : () -> ()
    %104 = vector.extract_strided_slice %50 {offsets = [0, 0, 24], sizes = [2, 8, 8], strides = [1, 1, 1]} : vector<2x8x32xbf16> to vector<2x8x8xbf16>
    %105 = vector.extract_strided_slice %51 {offsets = [0, 0, 24], sizes = [2, 8, 8], strides = [1, 1, 1]} : vector<2x8x32xbf16> to vector<2x8x8xbf16>
    %106 = vector.extract_strided_slice %52 {offsets = [0, 0, 24], sizes = [2, 8, 8], strides = [1, 1, 1]} : vector<2x8x32xbf16> to vector<2x8x8xbf16>
    "tpu.trace_start"() <{level = 10 : i32, message = "bqd,bkd->bqk"}> : () -> ()
    %cst_34 = arith.constant dense<0.000000e+00> : vector<2x8x8xf32>
    %107 = tpu.matmul %104, %105, %cst_34 {dimension_numbers = #tpu.dot_dimension_numbers<[2], [2], [1], [1], [0, 0, 0, 1, 1, 1], [0], [0]>} : vector<2x8x8xbf16>, vector<2x8x8xbf16>, vector<2x8x8xf32> -> vector<2x8x8xf32>
    "tpu.trace_stop"() : () -> ()
    %108 = arith.addf %107, %33 : vector<2x8x8xf32>
    %cst_35 = arith.constant dense<0xFF800000> : vector<2x8xf32>
    %109 = vector.multi_reduction <maximumf>, %108, %cst_35 [2] : vector<2x8x8xf32> to vector<2x8xf32>
    %110 = vector.shape_cast %109 : vector<2x8xf32> to vector<2x8x1xf32>
    %111 = vector.broadcast %110 : vector<2x8x1xf32> to vector<2x8x8xf32>
    %112 = arith.subf %108, %111 : vector<2x8x8xf32>
    %113 = math.exp %112 : vector<2x8x8xf32>
    %cst_36 = arith.constant dense<0.000000e+00> : vector<2x8xf32>
    %114 = vector.multi_reduction <add>, %113, %cst_36 [2] : vector<2x8x8xf32> to vector<2x8xf32>
    %115 = vector.shape_cast %114 : vector<2x8xf32> to vector<2x8x1xf32>
    %116 = tpu.reciprocal %115 {approx = true} : vector<2x8x1xf32> -> vector<2x8x1xf32>
    %117 = vector.broadcast %116 : vector<2x8x1xf32> to vector<2x8x8xf32>
    %118 = arith.mulf %113, %117 : vector<2x8x8xf32>
    %119 = arith.truncf %118 : vector<2x8x8xf32> to vector<2x8x8xbf16>
    "tpu.trace_start"() <{level = 10 : i32, message = "bqk,bkd->bqd"}> : () -> ()
    %cst_37 = arith.constant dense<0.000000e+00> : vector<2x8x8xf32>
    %120 = tpu.matmul %119, %106, %cst_37 {dimension_numbers = #tpu.dot_dimension_numbers<[2], [1], [1], [2], [0, 0, 0, 1, 1, 2], [0], [0]>} : vector<2x8x8xbf16>, vector<2x8x8xbf16>, vector<2x8x8xf32> -> vector<2x8x8xf32>
    "tpu.trace_stop"() : () -> ()
    %121 = tpu.concatenate %69, %86, %103, %120 in 2 : vector<2x8x8xf32>, vector<2x8x8xf32>, vector<2x8x8xf32>, vector<2x8x8xf32> -> vector<2x8x32xf32>
    %122 = vector.shape_cast %121 : vector<2x8x32xf32> to vector<16x32xf32>
    %123 = arith.truncf %122 : vector<16x32xf32> to vector<16x32xbf16>
    %c0_38 = arith.constant 0 : index
    %c0_39 = arith.constant 0 : index
    %c0_40 = arith.constant 0 : index
    %124 = vector.load %arg6[%c0_38, %c0_39, %c0_40] : memref<2x32x32xbf16, #tpu.memory_space<vmem>>, vector<1x32x32xbf16>
    %125 = vector.shape_cast %124 : vector<1x32x32xbf16> to vector<32x32xbf16>
    %cst_41 = arith.constant dense<0.000000e+00> : vector<16x32xf32>
    %126 = tpu.matmul %123, %125, %cst_41 {dimension_numbers = #tpu.dot_dimension_numbers<[1], [0], [0], [1], [0, 0, 1, 1], [], []>} : vector<16x32xbf16>, vector<32x32xbf16>, vector<16x32xf32> -> vector<16x32xf32>
    %c0_42 = arith.constant 0 : index
    %c0_43 = arith.constant 0 : index
    %c0_44 = arith.constant 0 : index
    %127 = vector.load %arg7[%c0_42, %c0_43, %c0_44] : memref<2x1x32xf32, #tpu.memory_space<vmem>>, vector<1x1x32xf32>
    %128 = vector.shape_cast %127 : vector<1x1x32xf32> to vector<1x32xf32>
    %129 = vector.broadcast %128 : vector<1x32xf32> to vector<16x32xf32>
    %130 = arith.addf %126, %129 : vector<16x32xf32>
    %131 = arith.addf %130, %24 : vector<16x32xf32>
    %c0_45 = arith.constant 0 : index
    %c0_46 = arith.constant 0 : index
    %c0_47 = arith.constant 0 : index
    %132 = vector.load %arg8[%c0_45, %c0_46, %c0_47] : memref<2x1x32xf32, #tpu.memory_space<vmem>>, vector<1x1x32xf32>
    %133 = vector.shape_cast %132 : vector<1x1x32xf32> to vector<1x32xf32>
    %c0_48 = arith.constant 0 : index
    %c0_49 = arith.constant 0 : index
    %c0_50 = arith.constant 0 : index
    %134 = vector.load %arg9[%c0_48, %c0_49, %c0_50] : memref<2x1x32xf32, #tpu.memory_space<vmem>>, vector<1x1x32xf32>
    %135 = vector.shape_cast %134 : vector<1x1x32xf32> to vector<1x32xf32>
    %cst_51 = arith.constant dense<0.000000e+00> : vector<16xf32>
    %136 = vector.multi_reduction <add>, %131, %cst_51 [1] : vector<16x32xf32> to vector<16xf32>
    %137 = vector.shape_cast %136 : vector<16xf32> to vector<16x1xf32>
    %cst_52 = arith.constant 3.200000e+01 : f32
    %138 = vector.broadcast %cst_52 : f32 to vector<16x1xf32>
    %139 = arith.divf %137, %138 : vector<16x1xf32>
    %140 = vector.broadcast %139 : vector<16x1xf32> to vector<16x32xf32>
    %141 = arith.subf %131, %140 : vector<16x32xf32>
    %142 = arith.mulf %141, %141 : vector<16x32xf32>
    %cst_53 = arith.constant dense<0.000000e+00> : vector<16xf32>
    %143 = vector.multi_reduction <add>, %142, %cst_53 [1] : vector<16x32xf32> to vector<16xf32>
    %144 = vector.shape_cast %143 : vector<16xf32> to vector<16x1xf32>
    %cst_54 = arith.constant 3.200000e+01 : f32
    %145 = vector.broadcast %cst_54 : f32 to vector<16x1xf32>
    %146 = arith.divf %144, %145 : vector<16x1xf32>
    %147 = vector.broadcast %139 : vector<16x1xf32> to vector<16x32xf32>
    %148 = arith.subf %131, %147 : vector<16x32xf32>
    %cst_55 = arith.constant 9.99999996E-13 : f32
    %149 = vector.broadcast %cst_55 : f32 to vector<16x1xf32>
    %150 = arith.addf %146, %149 : vector<16x1xf32>
    %151 = math.rsqrt %150 : vector<16x1xf32>
    %152 = vector.broadcast %151 : vector<16x1xf32> to vector<16x32xf32>
    %153 = arith.mulf %148, %152 : vector<16x32xf32>
    %154 = vector.broadcast %133 : vector<1x32xf32> to vector<16x32xf32>
    %155 = arith.mulf %153, %154 : vector<16x32xf32>
    %156 = vector.broadcast %135 : vector<1x32xf32> to vector<16x32xf32>
    %157 = arith.addf %155, %156 : vector<16x32xf32>
    %158 = arith.truncf %157 : vector<16x32xf32> to vector<16x32xbf16>
    %c0_56 = arith.constant 0 : index
    %c0_57 = arith.constant 0 : index
    %c0_58 = arith.constant 0 : index
    %159 = vector.load %arg10[%c0_56, %c0_57, %c0_58] : memref<2x32x64xbf16, #tpu.memory_space<vmem>>, vector<1x32x64xbf16>
    %160 = vector.shape_cast %159 : vector<1x32x64xbf16> to vector<32x64xbf16>
    %cst_59 = arith.constant dense<0.000000e+00> : vector<16x64xf32>
    %161 = tpu.matmul %158, %160, %cst_59 {dimension_numbers = #tpu.dot_dimension_numbers<[1], [0], [0], [1], [0, 0, 1, 1], [], []>} : vector<16x32xbf16>, vector<32x64xbf16>, vector<16x64xf32> -> vector<16x64xf32>
    %c0_60 = arith.constant 0 : index
    %c0_61 = arith.constant 0 : index
    %c0_62 = arith.constant 0 : index
    %162 = vector.load %arg11[%c0_60, %c0_61, %c0_62] : memref<2x1x64xf32, #tpu.memory_space<vmem>>, vector<1x1x64xf32>
    %163 = vector.shape_cast %162 : vector<1x1x64xf32> to vector<1x64xf32>
    %164 = vector.broadcast %163 : vector<1x64xf32> to vector<16x64xf32>
    %165 = arith.addf %161, %164 : vector<16x64xf32>
    %cst_63 = arith.constant 5.000000e-01 : f32
    %166 = vector.broadcast %cst_63 : f32 to vector<16x64xf32>
    %167 = arith.mulf %166, %165 : vector<16x64xf32>
    %cst_64 = arith.constant 4.471500e-02 : f32
    %168 = vector.broadcast %cst_64 : f32 to vector<16x64xf32>
    %169 = arith.mulf %168, %165 : vector<16x64xf32>
    %170 = arith.mulf %169, %165 : vector<16x64xf32>
    %171 = arith.mulf %170, %165 : vector<16x64xf32>
    %172 = arith.addf %165, %171 : vector<16x64xf32>
    %cst_65 = arith.constant 0.797884583 : f32
    %173 = vector.broadcast %cst_65 : f32 to vector<16x64xf32>
    %174 = arith.mulf %173, %172 : vector<16x64xf32>
    %175 = math.tanh %174 : vector<16x64xf32>
    %cst_66 = arith.constant 1.000000e+00 : f32
    %176 = vector.broadcast %cst_66 : f32 to vector<16x64xf32>
    %177 = arith.addf %176, %175 : vector<16x64xf32>
    %178 = arith.mulf %167, %177 : vector<16x64xf32>
    %179 = arith.truncf %178 : vector<16x64xf32> to vector<16x64xbf16>
    %c0_67 = arith.constant 0 : index
    %c0_68 = arith.constant 0 : index
    %c0_69 = arith.constant 0 : index
    %180 = vector.load %arg12[%c0_67, %c0_68, %c0_69] : memref<2x64x32xbf16, #tpu.memory_space<vmem>>, vector<1x64x32xbf16>
    %181 = vector.shape_cast %180 : vector<1x64x32xbf16> to vector<64x32xbf16>
    %cst_70 = arith.constant dense<0.000000e+00> : vector<16x32xf32>
    %182 = tpu.matmul %179, %181, %cst_70 {dimension_numbers = #tpu.dot_dimension_numbers<[1], [0], [0], [1], [0, 0, 1, 1], [], []>} : vector<16x64xbf16>, vector<64x32xbf16>, vector<16x32xf32> -> vector<16x32xf32>
    %c0_71 = arith.constant 0 : index
    %c0_72 = arith.constant 0 : index
    %c0_73 = arith.constant 0 : index
    %183 = vector.load %arg13[%c0_71, %c0_72, %c0_73] : memref<2x1x32xf32, #tpu.memory_space<vmem>>, vector<1x1x32xf32>
    %184 = vector.shape_cast %183 : vector<1x1x32xf32> to vector<1x32xf32>
    %185 = vector.broadcast %184 : vector<1x32xf32> to vector<16x32xf32>
    %186 = arith.addf %182, %185 : vector<16x32xf32>
    %187 = arith.addf %186, %157 : vector<16x32xf32>
    %c0_74 = arith.constant 0 : index
    %c0_75 = arith.constant 0 : index
    %c0_76 = arith.constant 0 : index
    %188 = vector.load %arg14[%c0_74, %c0_75, %c0_76] : memref<2x1x32xf32, #tpu.memory_space<vmem>>, vector<1x1x32xf32>
    %189 = vector.shape_cast %188 : vector<1x1x32xf32> to vector<1x32xf32>
    %c0_77 = arith.constant 0 : index
    %c0_78 = arith.constant 0 : index
    %c0_79 = arith.constant 0 : index
    %190 = vector.load %arg15[%c0_77, %c0_78, %c0_79] : memref<2x1x32xf32, #tpu.memory_space<vmem>>, vector<1x1x32xf32>
    %191 = vector.shape_cast %190 : vector<1x1x32xf32> to vector<1x32xf32>
    %cst_80 = arith.constant dense<0.000000e+00> : vector<16xf32>
    %192 = vector.multi_reduction <add>, %187, %cst_80 [1] : vector<16x32xf32> to vector<16xf32>
    %193 = vector.shape_cast %192 : vector<16xf32> to vector<16x1xf32>
    %cst_81 = arith.constant 3.200000e+01 : f32
    %194 = vector.broadcast %cst_81 : f32 to vector<16x1xf32>
    %195 = arith.divf %193, %194 : vector<16x1xf32>
    %196 = vector.broadcast %195 : vector<16x1xf32> to vector<16x32xf32>
    %197 = arith.subf %187, %196 : vector<16x32xf32>
    %198 = arith.mulf %197, %197 : vector<16x32xf32>
    %cst_82 = arith.constant dense<0.000000e+00> : vector<16xf32>
    %199 = vector.multi_reduction <add>, %198, %cst_82 [1] : vector<16x32xf32> to vector<16xf32>
    %200 = vector.shape_cast %199 : vector<16xf32> to vector<16x1xf32>
    %cst_83 = arith.constant 3.200000e+01 : f32
    %201 = vector.broadcast %cst_83 : f32 to vector<16x1xf32>
    %202 = arith.divf %200, %201 : vector<16x1xf32>
    %203 = vector.broadcast %195 : vector<16x1xf32> to vector<16x32xf32>
    %204 = arith.subf %187, %203 : vector<16x32xf32>
    %cst_84 = arith.constant 9.99999996E-13 : f32
    %205 = vector.broadcast %cst_84 : f32 to vector<16x1xf32>
    %206 = arith.addf %202, %205 : vector<16x1xf32>
    %207 = math.rsqrt %206 : vector<16x1xf32>
    %208 = vector.broadcast %207 : vector<16x1xf32> to vector<16x32xf32>
    %209 = arith.mulf %204, %208 : vector<16x32xf32>
    %210 = vector.broadcast %189 : vector<1x32xf32> to vector<16x32xf32>
    %211 = arith.mulf %209, %210 : vector<16x32xf32>
    %212 = vector.broadcast %191 : vector<1x32xf32> to vector<16x32xf32>
    %213 = arith.addf %211, %212 : vector<16x32xf32>
    %214 = arith.truncf %213 : vector<16x32xf32> to vector<16x32xbf16>
    %c1 = arith.constant 1 : index
    %c0_85 = arith.constant 0 : index
    %c0_86 = arith.constant 0 : index
    %215 = vector.load %arg4[%c1, %c0_85, %c0_86] : memref<2x32x96xbf16, #tpu.memory_space<vmem>>, vector<1x32x96xbf16>
    %216 = vector.shape_cast %215 : vector<1x32x96xbf16> to vector<32x96xbf16>
    %cst_87 = arith.constant dense<0.000000e+00> : vector<16x96xf32>
    %217 = tpu.matmul %214, %216, %cst_87 {dimension_numbers = #tpu.dot_dimension_numbers<[1], [0], [0], [1], [0, 0, 1, 1], [], []>} : vector<16x32xbf16>, vector<32x96xbf16>, vector<16x96xf32> -> vector<16x96xf32>
    %c1_88 = arith.constant 1 : index
    %c0_89 = arith.constant 0 : index
    %c0_90 = arith.constant 0 : index
    %218 = vector.load %arg5[%c1_88, %c0_89, %c0_90] : memref<2x1x96xf32, #tpu.memory_space<vmem>>, vector<1x1x96xf32>
    %219 = vector.shape_cast %218 : vector<1x1x96xf32> to vector<1x96xf32>
    %220 = vector.broadcast %219 : vector<1x96xf32> to vector<16x96xf32>
    %221 = arith.addf %217, %220 : vector<16x96xf32>
    %222 = vector.extract_strided_slice %221 {offsets = [0, 0], sizes = [16, 32], strides = [1, 1]} : vector<16x96xf32> to vector<16x32xf32>
    %223 = vector.shape_cast %222 : vector<16x32xf32> to vector<2x8x32xf32>
    %224 = vector.extract_strided_slice %221 {offsets = [0, 32], sizes = [16, 32], strides = [1, 1]} : vector<16x96xf32> to vector<16x32xf32>
    %225 = vector.shape_cast %224 : vector<16x32xf32> to vector<2x8x32xf32>
    %226 = vector.extract_strided_slice %221 {offsets = [0, 64], sizes = [16, 32], strides = [1, 1]} : vector<16x96xf32> to vector<16x32xf32>
    %227 = vector.shape_cast %226 : vector<16x32xf32> to vector<2x8x32xf32>
    %228 = vector.extract_strided_slice %223 {offsets = [0, 0, 0], sizes = [2, 1, 32], strides = [1, 1, 1]} : vector<2x8x32xf32> to vector<2x1x32xf32>
    %229 = vector.shape_cast %213 : vector<16x32xf32> to vector<2x8x32xf32>
    %230 = vector.extract_strided_slice %229 {offsets = [0, 0, 0], sizes = [2, 1, 32], strides = [1, 1, 1]} : vector<2x8x32xf32> to vector<2x1x32xf32>
    %231 = vector.shape_cast %230 : vector<2x1x32xf32> to vector<2x32xf32>
    %232 = vector.extract_strided_slice %33 {offsets = [0, 0, 0], sizes = [2, 1, 8], strides = [1, 1, 1]} : vector<2x8x8xf32> to vector<2x1x8xf32>
    %cst_91 = arith.constant 0.353553385 : f32
    %233 = vector.broadcast %cst_91 : f32 to vector<2x1x32xf32>
    %234 = arith.mulf %228, %233 : vector<2x1x32xf32>
    %235 = arith.truncf %234 : vector<2x1x32xf32> to vector<2x1x32xbf16>
    %236 = arith.truncf %225 : vector<2x8x32xf32> to vector<2x8x32xbf16>
    %237 = arith.truncf %227 : vector<2x8x32xf32> to vector<2x8x32xbf16>
    %238 = vector.extract_strided_slice %235 {offsets = [0, 0, 0], sizes = [2, 1, 8], strides = [1, 1, 1]} : vector<2x1x32xbf16> to vector<2x1x8xbf16>
    %239 = vector.extract_strided_slice %236 {offsets = [0, 0, 0], sizes = [2, 8, 8], strides = [1, 1, 1]} : vector<2x8x32xbf16> to vector<2x8x8xbf16>
    %240 = vector.extract_strided_slice %237 {offsets = [0, 0, 0], sizes = [2, 8, 8], strides = [1, 1, 1]} : vector<2x8x32xbf16> to vector<2x8x8xbf16>
    "tpu.trace_start"() <{level = 10 : i32, message = "bqd,bkd->bqk"}> : () -> ()
    %cst_92 = arith.constant dense<0.000000e+00> : vector<2x1x8xf32>
    %241 = tpu.matmul %238, %239, %cst_92 {dimension_numbers = #tpu.dot_dimension_numbers<[2], [2], [1], [1], [0, 0, 0, 1, 1, 1], [0], [0]>} : vector<2x1x8xbf16>, vector<2x8x8xbf16>, vector<2x1x8xf32> -> vector<2x1x8xf32>
    "tpu.trace_stop"() : () -> ()
    %242 = arith.addf %241, %232 : vector<2x1x8xf32>
    %cst_93 = arith.constant dense<0xFF800000> : vector<2x1xf32>
    %243 = vector.multi_reduction <maximumf>, %242, %cst_93 [2] : vector<2x1x8xf32> to vector<2x1xf32>
    %244 = vector.shape_cast %243 : vector<2x1xf32> to vector<2x1x1xf32>
    %245 = vector.broadcast %244 : vector<2x1x1xf32> to vector<2x1x8xf32>
    %246 = arith.subf %242, %245 : vector<2x1x8xf32>
    %247 = math.exp %246 : vector<2x1x8xf32>
    %cst_94 = arith.constant dense<0.000000e+00> : vector<2x1xf32>
    %248 = vector.multi_reduction <add>, %247, %cst_94 [2] : vector<2x1x8xf32> to vector<2x1xf32>
    %249 = vector.shape_cast %248 : vector<2x1xf32> to vector<2x1x1xf32>
    %250 = tpu.reciprocal %249 {approx = true} : vector<2x1x1xf32> -> vector<2x1x1xf32>
    %251 = vector.broadcast %250 : vector<2x1x1xf32> to vector<2x1x8xf32>
    %252 = arith.mulf %247, %251 : vector<2x1x8xf32>
    %253 = arith.truncf %252 : vector<2x1x8xf32> to vector<2x1x8xbf16>
    "tpu.trace_start"() <{level = 10 : i32, message = "bqk,bkd->bqd"}> : () -> ()
    %cst_95 = arith.constant dense<0.000000e+00> : vector<2x1x8xf32>
    %254 = tpu.matmul %253, %240, %cst_95 {dimension_numbers = #tpu.dot_dimension_numbers<[2], [1], [1], [2], [0, 0, 0, 1, 1, 2], [0], [0]>} : vector<2x1x8xbf16>, vector<2x8x8xbf16>, vector<2x1x8xf32> -> vector<2x1x8xf32>
    "tpu.trace_stop"() : () -> ()
    %255 = vector.extract_strided_slice %235 {offsets = [0, 0, 8], sizes = [2, 1, 8], strides = [1, 1, 1]} : vector<2x1x32xbf16> to vector<2x1x8xbf16>
    %256 = vector.extract_strided_slice %236 {offsets = [0, 0, 8], sizes = [2, 8, 8], strides = [1, 1, 1]} : vector<2x8x32xbf16> to vector<2x8x8xbf16>
    %257 = vector.extract_strided_slice %237 {offsets = [0, 0, 8], sizes = [2, 8, 8], strides = [1, 1, 1]} : vector<2x8x32xbf16> to vector<2x8x8xbf16>
    "tpu.trace_start"() <{level = 10 : i32, message = "bqd,bkd->bqk"}> : () -> ()
    %cst_96 = arith.constant dense<0.000000e+00> : vector<2x1x8xf32>
    %258 = tpu.matmul %255, %256, %cst_96 {dimension_numbers = #tpu.dot_dimension_numbers<[2], [2], [1], [1], [0, 0, 0, 1, 1, 1], [0], [0]>} : vector<2x1x8xbf16>, vector<2x8x8xbf16>, vector<2x1x8xf32> -> vector<2x1x8xf32>
    "tpu.trace_stop"() : () -> ()
    %259 = arith.addf %258, %232 : vector<2x1x8xf32>
    %cst_97 = arith.constant dense<0xFF800000> : vector<2x1xf32>
    %260 = vector.multi_reduction <maximumf>, %259, %cst_97 [2] : vector<2x1x8xf32> to vector<2x1xf32>
    %261 = vector.shape_cast %260 : vector<2x1xf32> to vector<2x1x1xf32>
    %262 = vector.broadcast %261 : vector<2x1x1xf32> to vector<2x1x8xf32>
    %263 = arith.subf %259, %262 : vector<2x1x8xf32>
    %264 = math.exp %263 : vector<2x1x8xf32>
    %cst_98 = arith.constant dense<0.000000e+00> : vector<2x1xf32>
    %265 = vector.multi_reduction <add>, %264, %cst_98 [2] : vector<2x1x8xf32> to vector<2x1xf32>
    %266 = vector.shape_cast %265 : vector<2x1xf32> to vector<2x1x1xf32>
    %267 = tpu.reciprocal %266 {approx = true} : vector<2x1x1xf32> -> vector<2x1x1xf32>
    %268 = vector.broadcast %267 : vector<2x1x1xf32> to vector<2x1x8xf32>
    %269 = arith.mulf %264, %268 : vector<2x1x8xf32>
    %270 = arith.truncf %269 : vector<2x1x8xf32> to vector<2x1x8xbf16>
    "tpu.trace_start"() <{level = 10 : i32, message = "bqk,bkd->bqd"}> : () -> ()
    %cst_99 = arith.constant dense<0.000000e+00> : vector<2x1x8xf32>
    %271 = tpu.matmul %270, %257, %cst_99 {dimension_numbers = #tpu.dot_dimension_numbers<[2], [1], [1], [2], [0, 0, 0, 1, 1, 2], [0], [0]>} : vector<2x1x8xbf16>, vector<2x8x8xbf16>, vector<2x1x8xf32> -> vector<2x1x8xf32>
    "tpu.trace_stop"() : () -> ()
    %272 = vector.extract_strided_slice %235 {offsets = [0, 0, 16], sizes = [2, 1, 8], strides = [1, 1, 1]} : vector<2x1x32xbf16> to vector<2x1x8xbf16>
    %273 = vector.extract_strided_slice %236 {offsets = [0, 0, 16], sizes = [2, 8, 8], strides = [1, 1, 1]} : vector<2x8x32xbf16> to vector<2x8x8xbf16>
    %274 = vector.extract_strided_slice %237 {offsets = [0, 0, 16], sizes = [2, 8, 8], strides = [1, 1, 1]} : vector<2x8x32xbf16> to vector<2x8x8xbf16>
    "tpu.trace_start"() <{level = 10 : i32, message = "bqd,bkd->bqk"}> : () -> ()
    %cst_100 = arith.constant dense<0.000000e+00> : vector<2x1x8xf32>
    %275 = tpu.matmul %272, %273, %cst_100 {dimension_numbers = #tpu.dot_dimension_numbers<[2], [2], [1], [1], [0, 0, 0, 1, 1, 1], [0], [0]>} : vector<2x1x8xbf16>, vector<2x8x8xbf16>, vector<2x1x8xf32> -> vector<2x1x8xf32>
    "tpu.trace_stop"() : () -> ()
    %276 = arith.addf %275, %232 : vector<2x1x8xf32>
    %cst_101 = arith.constant dense<0xFF800000> : vector<2x1xf32>
    %277 = vector.multi_reduction <maximumf>, %276, %cst_101 [2] : vector<2x1x8xf32> to vector<2x1xf32>
    %278 = vector.shape_cast %277 : vector<2x1xf32> to vector<2x1x1xf32>
    %279 = vector.broadcast %278 : vector<2x1x1xf32> to vector<2x1x8xf32>
    %280 = arith.subf %276, %279 : vector<2x1x8xf32>
    %281 = math.exp %280 : vector<2x1x8xf32>
    %cst_102 = arith.constant dense<0.000000e+00> : vector<2x1xf32>
    %282 = vector.multi_reduction <add>, %281, %cst_102 [2] : vector<2x1x8xf32> to vector<2x1xf32>
    %283 = vector.shape_cast %282 : vector<2x1xf32> to vector<2x1x1xf32>
    %284 = tpu.reciprocal %283 {approx = true} : vector<2x1x1xf32> -> vector<2x1x1xf32>
    %285 = vector.broadcast %284 : vector<2x1x1xf32> to vector<2x1x8xf32>
    %286 = arith.mulf %281, %285 : vector<2x1x8xf32>
    %287 = arith.truncf %286 : vector<2x1x8xf32> to vector<2x1x8xbf16>
    "tpu.trace_start"() <{level = 10 : i32, message = "bqk,bkd->bqd"}> : () -> ()
    %cst_103 = arith.constant dense<0.000000e+00> : vector<2x1x8xf32>
    %288 = tpu.matmul %287, %274, %cst_103 {dimension_numbers = #tpu.dot_dimension_numbers<[2], [1], [1], [2], [0, 0, 0, 1, 1, 2], [0], [0]>} : vector<2x1x8xbf16>, vector<2x8x8xbf16>, vector<2x1x8xf32> -> vector<2x1x8xf32>
    "tpu.trace_stop"() : () -> ()
    %289 = vector.extract_strided_slice %235 {offsets = [0, 0, 24], sizes = [2, 1, 8], strides = [1, 1, 1]} : vector<2x1x32xbf16> to vector<2x1x8xbf16>
    %290 = vector.extract_strided_slice %236 {offsets = [0, 0, 24], sizes = [2, 8, 8], strides = [1, 1, 1]} : vector<2x8x32xbf16> to vector<2x8x8xbf16>
    %291 = vector.extract_strided_slice %237 {offsets = [0, 0, 24], sizes = [2, 8, 8], strides = [1, 1, 1]} : vector<2x8x32xbf16> to vector<2x8x8xbf16>
    "tpu.trace_start"() <{level = 10 : i32, message = "bqd,bkd->bqk"}> : () -> ()
    %cst_104 = arith.constant dense<0.000000e+00> : vector<2x1x8xf32>
    %292 = tpu.matmul %289, %290, %cst_104 {dimension_numbers = #tpu.dot_dimension_numbers<[2], [2], [1], [1], [0, 0, 0, 1, 1, 1], [0], [0]>} : vector<2x1x8xbf16>, vector<2x8x8xbf16>, vector<2x1x8xf32> -> vector<2x1x8xf32>
    "tpu.trace_stop"() : () -> ()
    %293 = arith.addf %292, %232 : vector<2x1x8xf32>
    %cst_105 = arith.constant dense<0xFF800000> : vector<2x1xf32>
    %294 = vector.multi_reduction <maximumf>, %293, %cst_105 [2] : vector<2x1x8xf32> to vector<2x1xf32>
    %295 = vector.shape_cast %294 : vector<2x1xf32> to vector<2x1x1xf32>
    %296 = vector.broadcast %295 : vector<2x1x1xf32> to vector<2x1x8xf32>
    %297 = arith.subf %293, %296 : vector<2x1x8xf32>
    %298 = math.exp %297 : vector<2x1x8xf32>
    %cst_106 = arith.constant dense<0.000000e+00> : vector<2x1xf32>
    %299 = vector.multi_reduction <add>, %298, %cst_106 [2] : vector<2x1x8xf32> to vector<2x1xf32>
    %300 = vector.shape_cast %299 : vector<2x1xf32> to vector<2x1x1xf32>
    %301 = tpu.reciprocal %300 {approx = true} : vector<2x1x1xf32> -> vector<2x1x1xf32>
    %302 = vector.broadcast %301 : vector<2x1x1xf32> to vector<2x1x8xf32>
    %303 = arith.mulf %298, %302 : vector<2x1x8xf32>
    %304 = arith.truncf %303 : vector<2x1x8xf32> to vector<2x1x8xbf16>
    "tpu.trace_start"() <{level = 10 : i32, message = "bqk,bkd->bqd"}> : () -> ()
    %cst_107 = arith.constant dense<0.000000e+00> : vector<2x1x8xf32>
    %305 = tpu.matmul %304, %291, %cst_107 {dimension_numbers = #tpu.dot_dimension_numbers<[2], [1], [1], [2], [0, 0, 0, 1, 1, 2], [0], [0]>} : vector<2x1x8xbf16>, vector<2x8x8xbf16>, vector<2x1x8xf32> -> vector<2x1x8xf32>
    "tpu.trace_stop"() : () -> ()
    %306 = tpu.concatenate %254, %271, %288, %305 in 2 : vector<2x1x8xf32>, vector<2x1x8xf32>, vector<2x1x8xf32>, vector<2x1x8xf32> -> vector<2x1x32xf32>
    %307 = vector.shape_cast %306 : vector<2x1x32xf32> to vector<2x32xf32>
    %308 = arith.truncf %307 : vector<2x32xf32> to vector<2x32xbf16>
    %c1_108 = arith.constant 1 : index
    %c0_109 = arith.constant 0 : index
    %c0_110 = arith.constant 0 : index
    %309 = vector.load %arg6[%c1_108, %c0_109, %c0_110] : memref<2x32x32xbf16, #tpu.memory_space<vmem>>, vector<1x32x32xbf16>
    %310 = vector.shape_cast %309 : vector<1x32x32xbf16> to vector<32x32xbf16>
    %cst_111 = arith.constant dense<0.000000e+00> : vector<2x32xf32>
    %311 = tpu.matmul %308, %310, %cst_111 {dimension_numbers = #tpu.dot_dimension_numbers<[1], [0], [0], [1], [0, 0, 1, 1], [], []>} : vector<2x32xbf16>, vector<32x32xbf16>, vector<2x32xf32> -> vector<2x32xf32>
    %c1_112 = arith.constant 1 : index
    %c0_113 = arith.constant 0 : index
    %c0_114 = arith.constant 0 : index
    %312 = vector.load %arg7[%c1_112, %c0_113, %c0_114] : memref<2x1x32xf32, #tpu.memory_space<vmem>>, vector<1x1x32xf32>
    %313 = vector.shape_cast %312 : vector<1x1x32xf32> to vector<1x32xf32>
    %314 = vector.broadcast %313 : vector<1x32xf32> to vector<2x32xf32>
    %315 = arith.addf %311, %314 : vector<2x32xf32>
    %316 = arith.addf %315, %231 : vector<2x32xf32>
    %c1_115 = arith.constant 1 : index
    %c0_116 = arith.constant 0 : index
    %c0_117 = arith.constant 0 : index
    %317 = vector.load %arg8[%c1_115, %c0_116, %c0_117] : memref<2x1x32xf32, #tpu.memory_space<vmem>>, vector<1x1x32xf32>
    %318 = vector.shape_cast %317 : vector<1x1x32xf32> to vector<1x32xf32>
    %c1_118 = arith.constant 1 : index
    %c0_119 = arith.constant 0 : index
    %c0_120 = arith.constant 0 : index
    %319 = vector.load %arg9[%c1_118, %c0_119, %c0_120] : memref<2x1x32xf32, #tpu.memory_space<vmem>>, vector<1x1x32xf32>
    %320 = vector.shape_cast %319 : vector<1x1x32xf32> to vector<1x32xf32>
    %cst_121 = arith.constant dense<0.000000e+00> : vector<2xf32>
    %321 = vector.multi_reduction <add>, %316, %cst_121 [1] : vector<2x32xf32> to vector<2xf32>
    %322 = vector.shape_cast %321 : vector<2xf32> to vector<2x1xf32>
    %cst_122 = arith.constant 3.200000e+01 : f32
    %323 = vector.broadcast %cst_122 : f32 to vector<2x1xf32>
    %324 = arith.divf %322, %323 : vector<2x1xf32>
    %325 = vector.broadcast %324 : vector<2x1xf32> to vector<2x32xf32>
    %326 = arith.subf %316, %325 : vector<2x32xf32>
    %327 = arith.mulf %326, %326 : vector<2x32xf32>
    %cst_123 = arith.constant dense<0.000000e+00> : vector<2xf32>
    %328 = vector.multi_reduction <add>, %327, %cst_123 [1] : vector<2x32xf32> to vector<2xf32>
    %329 = vector.shape_cast %328 : vector<2xf32> to vector<2x1xf32>
    %cst_124 = arith.constant 3.200000e+01 : f32
    %330 = vector.broadcast %cst_124 : f32 to vector<2x1xf32>
    %331 = arith.divf %329, %330 : vector<2x1xf32>
    %332 = vector.broadcast %324 : vector<2x1xf32> to vector<2x32xf32>
    %333 = arith.subf %316, %332 : vector<2x32xf32>
    %cst_125 = arith.constant 9.99999996E-13 : f32
    %334 = vector.broadcast %cst_125 : f32 to vector<2x1xf32>
    %335 = arith.addf %331, %334 : vector<2x1xf32>
    %336 = math.rsqrt %335 : vector<2x1xf32>
    %337 = vector.broadcast %336 : vector<2x1xf32> to vector<2x32xf32>
    %338 = arith.mulf %333, %337 : vector<2x32xf32>
    %339 = vector.broadcast %318 : vector<1x32xf32> to vector<2x32xf32>
    %340 = arith.mulf %338, %339 : vector<2x32xf32>
    %341 = vector.broadcast %320 : vector<1x32xf32> to vector<2x32xf32>
    %342 = arith.addf %340, %341 : vector<2x32xf32>
    %343 = arith.truncf %342 : vector<2x32xf32> to vector<2x32xbf16>
    %c1_126 = arith.constant 1 : index
    %c0_127 = arith.constant 0 : index
    %c0_128 = arith.constant 0 : index
    %344 = vector.load %arg10[%c1_126, %c0_127, %c0_128] : memref<2x32x64xbf16, #tpu.memory_space<vmem>>, vector<1x32x64xbf16>
    %345 = vector.shape_cast %344 : vector<1x32x64xbf16> to vector<32x64xbf16>
    %cst_129 = arith.constant dense<0.000000e+00> : vector<2x64xf32>
    %346 = tpu.matmul %343, %345, %cst_129 {dimension_numbers = #tpu.dot_dimension_numbers<[1], [0], [0], [1], [0, 0, 1, 1], [], []>} : vector<2x32xbf16>, vector<32x64xbf16>, vector<2x64xf32> -> vector<2x64xf32>
    %c1_130 = arith.constant 1 : index
    %c0_131 = arith.constant 0 : index
    %c0_132 = arith.constant 0 : index
    %347 = vector.load %arg11[%c1_130, %c0_131, %c0_132] : memref<2x1x64xf32, #tpu.memory_space<vmem>>, vector<1x1x64xf32>
    %348 = vector.shape_cast %347 : vector<1x1x64xf32> to vector<1x64xf32>
    %349 = vector.broadcast %348 : vector<1x64xf32> to vector<2x64xf32>
    %350 = arith.addf %346, %349 : vector<2x64xf32>
    %cst_133 = arith.constant 5.000000e-01 : f32
    %351 = vector.broadcast %cst_133 : f32 to vector<2x64xf32>
    %352 = arith.mulf %351, %350 : vector<2x64xf32>
    %cst_134 = arith.constant 4.471500e-02 : f32
    %353 = vector.broadcast %cst_134 : f32 to vector<2x64xf32>
    %354 = arith.mulf %353, %350 : vector<2x64xf32>
    %355 = arith.mulf %354, %350 : vector<2x64xf32>
    %356 = arith.mulf %355, %350 : vector<2x64xf32>
    %357 = arith.addf %350, %356 : vector<2x64xf32>
    %cst_135 = arith.constant 0.797884583 : f32
    %358 = vector.broadcast %cst_135 : f32 to vector<2x64xf32>
    %359 = arith.mulf %358, %357 : vector<2x64xf32>
    %360 = math.tanh %359 : vector<2x64xf32>
    %cst_136 = arith.constant 1.000000e+00 : f32
    %361 = vector.broadcast %cst_136 : f32 to vector<2x64xf32>
    %362 = arith.addf %361, %360 : vector<2x64xf32>
    %363 = arith.mulf %352, %362 : vector<2x64xf32>
    %364 = arith.truncf %363 : vector<2x64xf32> to vector<2x64xbf16>
    %c1_137 = arith.constant 1 : index
    %c0_138 = arith.constant 0 : index
    %c0_139 = arith.constant 0 : index
    %365 = vector.load %arg12[%c1_137, %c0_138, %c0_139] : memref<2x64x32xbf16, #tpu.memory_space<vmem>>, vector<1x64x32xbf16>
    %366 = vector.shape_cast %365 : vector<1x64x32xbf16> to vector<64x32xbf16>
    %cst_140 = arith.constant dense<0.000000e+00> : vector<2x32xf32>
    %367 = tpu.matmul %364, %366, %cst_140 {dimension_numbers = #tpu.dot_dimension_numbers<[1], [0], [0], [1], [0, 0, 1, 1], [], []>} : vector<2x64xbf16>, vector<64x32xbf16>, vector<2x32xf32> -> vector<2x32xf32>
    %c1_141 = arith.constant 1 : index
    %c0_142 = arith.constant 0 : index
    %c0_143 = arith.constant 0 : index
    %368 = vector.load %arg13[%c1_141, %c0_142, %c0_143] : memref<2x1x32xf32, #tpu.memory_space<vmem>>, vector<1x1x32xf32>
    %369 = vector.shape_cast %368 : vector<1x1x32xf32> to vector<1x32xf32>
    %370 = vector.broadcast %369 : vector<1x32xf32> to vector<2x32xf32>
    %371 = arith.addf %367, %370 : vector<2x32xf32>
    %372 = arith.addf %371, %342 : vector<2x32xf32>
    %c1_144 = arith.constant 1 : index
    %c0_145 = arith.constant 0 : index
    %c0_146 = arith.constant 0 : index
    %373 = vector.load %arg14[%c1_144, %c0_145, %c0_146] : memref<2x1x32xf32, #tpu.memory_space<vmem>>, vector<1x1x32xf32>
    %374 = vector.shape_cast %373 : vector<1x1x32xf32> to vector<1x32xf32>
    %c1_147 = arith.constant 1 : index
    %c0_148 = arith.constant 0 : index
    %c0_149 = arith.constant 0 : index
    %375 = vector.load %arg15[%c1_147, %c0_148, %c0_149] : memref<2x1x32xf32, #tpu.memory_space<vmem>>, vector<1x1x32xf32>
    %376 = vector.shape_cast %375 : vector<1x1x32xf32> to vector<1x32xf32>
    %cst_150 = arith.constant dense<0.000000e+00> : vector<2xf32>
    %377 = vector.multi_reduction <add>, %372, %cst_150 [1] : vector<2x32xf32> to vector<2xf32>
    %378 = vector.shape_cast %377 : vector<2xf32> to vector<2x1xf32>
    %cst_151 = arith.constant 3.200000e+01 : f32
    %379 = vector.broadcast %cst_151 : f32 to vector<2x1xf32>
    %380 = arith.divf %378, %379 : vector<2x1xf32>
    %381 = vector.broadcast %380 : vector<2x1xf32> to vector<2x32xf32>
    %382 = arith.subf %372, %381 : vector<2x32xf32>
    %383 = arith.mulf %382, %382 : vector<2x32xf32>
    %cst_152 = arith.constant dense<0.000000e+00> : vector<2xf32>
    %384 = vector.multi_reduction <add>, %383, %cst_152 [1] : vector<2x32xf32> to vector<2xf32>
    %385 = vector.shape_cast %384 : vector<2xf32> to vector<2x1xf32>
    %cst_153 = arith.constant 3.200000e+01 : f32
    %386 = vector.broadcast %cst_153 : f32 to vector<2x1xf32>
    %387 = arith.divf %385, %386 : vector<2x1xf32>
    %388 = vector.broadcast %380 : vector<2x1xf32> to vector<2x32xf32>
    %389 = arith.subf %372, %388 : vector<2x32xf32>
    %cst_154 = arith.constant 9.99999996E-13 : f32
    %390 = vector.broadcast %cst_154 : f32 to vector<2x1xf32>
    %391 = arith.addf %387, %390 : vector<2x1xf32>
    %392 = math.rsqrt %391 : vector<2x1xf32>
    %393 = vector.broadcast %392 : vector<2x1xf32> to vector<2x32xf32>
    %394 = arith.mulf %389, %393 : vector<2x32xf32>
    %395 = vector.broadcast %374 : vector<1x32xf32> to vector<2x32xf32>
    %396 = arith.mulf %394, %395 : vector<2x32xf32>
    %397 = vector.broadcast %376 : vector<1x32xf32> to vector<2x32xf32>
    %398 = arith.addf %396, %397 : vector<2x32xf32>
    %c0_155 = arith.constant 0 : index
    %c0_156 = arith.constant 0 : index
    %399 = vector.load %arg16[%c0_155, %c0_156] : memref<2x32xf32, #tpu.memory_space<vmem>>, vector<2x32xf32>
    tpu.vector_store %arg16[%c0_155, %c0_156], %398 {strides = array<i32>} : memref<2x32xf32, #tpu.memory_space<vmem>>, vector<2x32xf32>,
    return
  }
}

</mosaic_0001>

<llo_original>
// kernel: text_encoder_forward.1
$region0: #{text_encoder_forward.1}
  #allocation0 [shape = 'u32[]', space=smem, size = 0x4, offset = 0x4, fixed_abs, tag = 'smem constant byte address 0x4 - core index']
  #allocation1 [shape = 'u32[144,128]{1,0:T(1,128)}', space=vmem, size = 0x12000, scoped, tag = 'internal scratch']
  %s0 = inlined_call_operand.vmem [shape: f32[16,32], index: 0, kind: input, shape index: {}]
  %s1 = inlined_call_operand.vmem [shape: f32[2,8], index: 1, kind: input, shape index: {}]
  %s2 = inlined_call_operand.vmem [shape: f32[1,32], index: 2, kind: input, shape index: {}]
  %s3 = inlined_call_operand.vmem [shape: f32[1,32], index: 3, kind: input, shape index: {}]
  %s4 = inlined_call_operand.vmem [shape: bf16[2,32,96], index: 4, kind: input, shape index: {}]
  %s5 = inlined_call_operand.vmem [shape: f32[2,1,96], index: 5, kind: input, shape index: {}]
  %s6 = inlined_call_operand.vmem [shape: bf16[2,32,32], index: 6, kind: input, shape index: {}]
  %s7 = inlined_call_operand.vmem [shape: f32[2,1,32], index: 7, kind: input, shape index: {}]
  %s8 = inlined_call_operand.vmem [shape: f32[2,1,32], index: 8, kind: input, shape index: {}]
  %s9 = inlined_call_operand.vmem [shape: f32[2,1,32], index: 9, kind: input, shape index: {}]
  %s10 = inlined_call_operand.vmem [shape: bf16[2,32,64], index: 10, kind: input, shape index: {}]
  %s11 = inlined_call_operand.vmem [shape: f32[2,1,64], index: 11, kind: input, shape index: {}]
  %s12 = inlined_call_operand.vmem [shape: bf16[2,64,32], index: 12, kind: input, shape index: {}]
  %s13 = inlined_call_operand.vmem [shape: f32[2,1,32], index: 13, kind: input, shape index: {}]
  %s14 = inlined_call_operand.vmem [shape: f32[2,1,32], index: 14, kind: input, shape index: {}]
  %s15 = inlined_call_operand.vmem [shape: f32[2,1,32], index: 15, kind: input, shape index: {}]
  %s16 = inlined_call_operand.hbm [shape: f32[2,32], index: 16, kind: output, shape index: {}]
  %s17 = sld [smem:[#allocation0]]
  $region74: #{text_encoder_forward.1} parent=0
    _
  %s19 = ssub.s32 1, %s17
  %s20 = scalar_select 0, %s19, %s17
  $region1: #{text_encoder_forward.1} parent=0
    #allocation2 [shape = 'u8[1024]{0}', space=vmem, size = 0x400, scoped, tag = 'output window, operand 0, single buffered']
    #allocation3 [shape = 's32[1]{0}', space=sflag, size = 0x4, scoped, tag = 'scoped memory for text_encoder_forward.1']
    %21 = vsyncpa [#allocation3], 0
    // Predicated region
    $region2: #{text_encoder_forward.1} parent=1 // pred_check
      _
    $region3: #{text_encoder_forward.1} parent=1 // pred_check_branch
      %23 = sbr.rel (0) target = $region5
    $region4: #{text_encoder_forward.1} parent=1 // pred_region
      _
    $region5: #{text_encoder_forward.1} parent=1 // pred_fallthru
      _
    // Predicated region
    $region6: #{text_encoder_forward.1} parent=1 // pred_check
      _
    $region7: #{text_encoder_forward.1} parent=1 // pred_check_branch
      %25 = sbr.rel (0) target = $region9
    $region8: #{text_encoder_forward.1} parent=1 // pred_region
      _
    $region9: #{text_encoder_forward.1} parent=1 // pred_fallthru
      _
    // Predicated region
    $region10: #{text_encoder_forward.1} parent=1 // pred_check
      _
    $region11: #{text_encoder_forward.1} parent=1 // pred_check_branch
      %27 = sbr.rel (0) target = $region13
    $region12: #{text_encoder_forward.1} parent=1 // pred_region
      _
    $region13: #{text_encoder_forward.1} parent=1 // pred_fallthru
      _
    // Predicated region
    $region14: #{text_encoder_forward.1} parent=1 // pred_check
      _
    $region15: #{text_encoder_forward.1} parent=1 // pred_check_branch
      %29 = sbr.rel (0) target = $region17
    $region16: #{text_encoder_forward.1} parent=1 // pred_region
      _
    $region17: #{text_encoder_forward.1} parent=1 // pred_fallthru
      _
    // Predicated region
    $region18: #{text_encoder_forward.1} parent=1 // pred_check
      _
    $region19: #{text_encoder_forward.1} parent=1 // pred_check_branch
      %31 = sbr.rel (0) target = $region21
    $region20: #{text_encoder_forward.1} parent=1 // pred_region
      _
    $region21: #{text_encoder_forward.1} parent=1 // pred_fallthru
      _
    // Predicated region
    $region22: #{text_encoder_forward.1} parent=1 // pred_check
      _
    $region23: #{text_encoder_forward.1} parent=1 // pred_check_branch
      %33 = sbr.rel (0) target = $region25
    $region24: #{text_encoder_forward.1} parent=1 // pred_region
      _
    $region25: #{text_encoder_forward.1} parent=1 // pred_fallthru
      _
    // Predicated region
    $region26: #{text_encoder_forward.1} parent=1 // pred_check
      _
    $region27: #{text_encoder_forward.1} parent=1 // pred_check_branch
      %35 = sbr.rel (0) target = $region29
    $region28: #{text_encoder_forward.1} parent=1 // pred_region
      _
    $region29: #{text_encoder_forward.1} parent=1 // pred_fallthru
      _
    // Predicated region
    $region30: #{text_encoder_forward.1} parent=1 // pred_check
      _
    $region31: #{text_encoder_forward.1} parent=1 // pred_check_branch
      %37 = sbr.rel (0) target = $region33
    $region32: #{text_encoder_forward.1} parent=1 // pred_region
      _
    $region33: #{text_encoder_forward.1} parent=1 // pred_fallthru
      _
    // Predicated region
    $region34: #{text_encoder_forward.1} parent=1 // pred_check
      _
    $region35: #{text_encoder_forward.1} parent=1 // pred_check_branch
      %39 = sbr.rel (0) target = $region37
    $region36: #{text_encoder_forward.1} parent=1 // pred_region
      _
    $region37: #{text_encoder_forward.1} parent=1 // pred_fallthru
      _
    // Predicated region
    $region38: #{text_encoder_forward.1} parent=1 // pred_check
      _
    $region39: #{text_encoder_forward.1} parent=1 // pred_check_branch
      %41 = sbr.rel (0) target = $region41
    $region40: #{text_encoder_forward.1} parent=1 // pred_region
      _
    $region41: #{text_encoder_forward.1} parent=1 // pred_fallthru
      _
    // Predicated region
    $region42: #{text_encoder_forward.1} parent=1 // pred_check
      _
    $region43: #{text_encoder_forward.1} parent=1 // pred_check_branch
      %43 = sbr.rel (0) target = $region45
    $region44: #{text_encoder_forward.1} parent=1 // pred_region
      _
    $region45: #{text_encoder_forward.1} parent=1 // pred_fallthru
      _
    // Predicated region
    $region46: #{text_encoder_forward.1} parent=1 // pred_check
      _
    $region47: #{text_encoder_forward.1} parent=1 // pred_check_branch
      %45 = sbr.rel (0) target = $region49
    $region48: #{text_encoder_forward.1} parent=1 // pred_region
      _
    $region49: #{text_encoder_forward.1} parent=1 // pred_fallthru
      _
    // Predicated region
    $region50: #{text_encoder_forward.1} parent=1 // pred_check
      _
    $region51: #{text_encoder_forward.1} parent=1 // pred_check_branch
      %47 = sbr.rel (0) target = $region53
    $region52: #{text_encoder_forward.1} parent=1 // pred_region
      _
    $region53: #{text_encoder_forward.1} parent=1 // pred_fallthru
      _
    // Predicated region
    $region54: #{text_encoder_forward.1} parent=1 // pred_check
      _
    $region55: #{text_encoder_forward.1} parent=1 // pred_check_branch
      %49 = sbr.rel (0) target = $region57
    $region56: #{text_encoder_forward.1} parent=1 // pred_region
      _
    $region57: #{text_encoder_forward.1} parent=1 // pred_fallthru
      _
    // Predicated region
    $region58: #{text_encoder_forward.1} parent=1 // pred_check
      _
    $region59: #{text_encoder_forward.1} parent=1 // pred_check_branch
      %51 = sbr.rel (0) target = $region61
    $region60: #{text_encoder_forward.1} parent=1 // pred_region
      _
    $region61: #{text_encoder_forward.1} parent=1 // pred_fallthru
      _
    // Predicated region
    $region62: #{text_encoder_forward.1} parent=1 // pred_check
      _
    $region63: #{text_encoder_forward.1} parent=1 // pred_check_branch
      %53 = sbr.rel (0) target = $region65
    $region64: #{text_encoder_forward.1} parent=1 // pred_region
      _
    $region65: #{text_encoder_forward.1} parent=1 // pred_fallthru
      _
    %v55 = vld [vmem:[%s0] sm:$0xff]
    %v56 = vld [vmem:[%s0 + $0x8] sm:$0xff]
    %v57 = vld [vmem:[%s2] sm:$0x1]
    %v58 = vld [vmem:[%s3] sm:$0x1]
    %vm59 = vcmask 261120
    %v60 = vsel %vm59, %v55, 0.0
    %61 = vadd.xlane.f32.xlu0 %v60
    %v62 = vpop.xlane.xlu0 %61
    %v63 = vsel %vm59, %v56, 0.0
    %64 = vadd.xlane.f32.xlu0 %v63
    %v65 = vpop.xlane.xlu0 %64
    %v66 = vrcp.pop 32.0
    %v67 = vmul.f32 %v62, %v66
    %v68 = vmul.f32 %v65, %v66
    %v69 = vsub.f32 %v55, %v67
    %v70 = vsub.f32 %v56, %v68
    %v71 = vmul.f32 %v69, %v69
    %v72 = vmul.f32 %v70, %v70
    %v73 = vsel %vm59, %v71, 0.0
    %74 = vadd.xlane.f32.xlu0 %v73
    %v75 = vpop.xlane.xlu0 %74
    %v76 = vsel %vm59, %v72, 0.0
    %77 = vadd.xlane.f32.xlu0 %v76
    %v78 = vpop.xlane.xlu0 %77
    %v79 = vmul.f32 %v75, %v66
    %v80 = vmul.f32 %v78, %v66
    %v81 = vadd.f32 %v79, 1e-12
    %v82 = vadd.f32 %v80, 1e-12
    %v83 = vrsqrt.pop %v81
    %v84 = vrsqrt.pop %v82
    %v85 = vmul.f32 %v69, %v83
    %v86 = vmul.f32 %v70, %v84
    %v88 = vlaneseq
    %v89 = vshrl.u32 %v88, 7
    %v90 = vsub.s32 0, %v89
    %v91 = vrot.slane %v57, %v90
    %v93 = vmul.f32 %v85, %v91
    %v94 = vmul.f32 %v86, %v91
    %v96 = vlaneseq
    %v97 = vshrl.u32 %v96, 7
    %v98 = vsub.s32 0, %v97
    %v99 = vrot.slane %v58, %v98
    %v101 = vadd.f32 %v93, %v99
    %v102 = vadd.f32 %v94, %v99
    %v103 = vld [vmem:[%s1] sm:$0x3]
    %vm104 = vcmp.eq.f32.partialorder %v103, 0.0
    %v105 = vsel %vm104, -1e+30, 0.0
    %v108 = vunpack.c.l.s4 1966171168
    %v109 = vunpack.c.0.s8 %v108
    %v110 = vlaneseq
    %v111 = vshrl.u32 %v110, 7
    %v112 = vsub.s32 %v109, %v111
    %v113 = vrot.slane %v105, %v112
    %v114 = vcombine.high %v113, %v113
    %v116 = vunpack.c.l.s4 1966171168
    %v117 = vunpack.c.0.s8 %v116
    %v118 = vlaneseq
    %v119 = vshrl.u32 %v118, 7
    %v120 = vsub.s32 %v117, %v119
    %v121 = vrot.slane %v113, %v120
    %v123 = vunpack.c.l.s4 1966171168
    %v124 = vunpack.c.0.s8 %v123
    %v125 = vlaneseq
    %v126 = vshrl.u32 %v125, 7
    %v127 = vsub.s32 %v124, %v126
    %v128 = vrot.slane %v114, %v127
    %v131 = vlaneseq
    %v132 = vshrl.u32 %v131, 7
    %v133 = vsub.s32 0, %v132
    %v134 = vrot.slane %v121, %v133
    %v135 = vlaneseq
    %v136 = vshrl.u32 %v135, 7
    %v137 = vsub.s32 0, %v136
    %v138 = vrot.slane %v128, %v137
    %v141 = vpack.c.bf16 %v102, %v101
    %v142 = vld [vmem:[%s4] sm:$0xf]
    %v143 = vld [vmem:[%s4 + $0x4] sm:$0xf]
    %v144 = vld [vmem:[%s4 + $0x8] sm:$0xf]
    %v145 = vld [vmem:[%s4 + $0xc] sm:$0xf]
    %v146 = vld [vmem:[%s5] sm:$0x1]
    %v148 = vlaneseq
    %v149 = vshrl.u32 %v148, 7
    %v150 = vsub.s32 0, %v149
    %v151 = vrot.slane %v146, %v150
    %v157 = vunpack.c.l.b16 %v142
    %v158 = vunpack.c.l.b16 %v143
    %v159 = vunpack.c.l.b16 %v144
    %v160 = vunpack.c.l.b16 %v145
    %v161 = vpack.c.b16 %v158, %v157
    %v162 = vpack.c.b16 %v160, %v159
    %v166 = vsel %vm59, %v141, 0
    %168 = vmatprep.subr.bf16.mxu0 0
    %169 = vmatpush1.bf16.msra.mxu0 %v161
    %170 = vmatprep.subr.bf16.mxu0 0
    %171 = vmatpush1.bf16.msra.mxu0 %v162
    %172 = vmatprep.subr.bf16.mxu0 0
    %173 = vmatpush1.bf16.msra.mxu0 0
    %174 = vmatprep.subr.bf16.mxu0 0
    %175 = vmatpush1.bf16.msra.mxu0 0
    %176 = vmatprep.subr.bf16.mxu0 0
    %177 = vmatpush1.bf16.msra.mxu0 0
    %178 = vmatprep.subr.bf16.mxu0 0
    %179 = vmatpush1.bf16.msra.mxu0 0
    %180 = vmatprep.subr.bf16.mxu0 0
    %181 = vmatpush1.bf16.msra.mxu0 0
    %182 = vmatprep.subr.bf16.mxu0 0
    %183 = vmatpush1.bf16.msra.mxu0 0
    %184 = vmatprep.subr.bf16.mxu0 0
    %185 = vmatpush1.bf16.msra.mxu0 0
    %186 = vmatprep.subr.bf16.mxu0 0
    %187 = vmatpush1.bf16.msra.mxu0 0
    %188 = vmatprep.subr.bf16.mxu0 0
    %189 = vmatpush1.bf16.msra.mxu0 0
    %190 = vmatprep.subr.bf16.mxu0 0
    %191 = vmatpush1.bf16.msra.mxu0 0
    %192 = vmatprep.subr.bf16.mxu0 0
    %193 = vmatpush1.bf16.msra.mxu0 0
    %194 = vmatprep.subr.bf16.mxu0 0
    %195 = vmatpush1.bf16.msra.mxu0 0
    %196 = vmatprep.subr.bf16.mxu0 0
    %197 = vmatpush1.bf16.msra.mxu0 0
    %198 = vmatprep.subr.bf16.mxu0 0
    %199 = vmatpush1.bf16.msra.mxu0 0
    %200 = vmatprep.mubr.bf16.mxu0 0
    %201 = vmatmul.mubr.bf16.gmra.mrb[0].mxu0 %v166
    %v202 = vpop.f32.mrb[0].mxu0
    %v203 = vadd.f32 %v151, %v202
    %v204 = vpop.f32.mrb[0].mxu0
    %v205 = vpop.f32.mrb[0].mxu0
    %v206 = vadd.f32 %v151, %v205
    %v207 = vpop.f32.mrb[0].mxu0
    %208 = vdwg.mxu0
    %v209 = vmul.f32 %v203, 0.35355338
    %v210 = vmul.f32 %v206, 0.35355338
    %v211 = vpack.c.bf16 %v209, %v209
    %v212 = vpack.c.bf16 %v210, %v210
    %v213 = vpack.c.bf16 %v203, %v203
    %v214 = vpack.c.bf16 %v206, %v206
    %216 = vrot.lane.b32.xlu0 %v213, 96
    %v217 = vpop.permute.xlu0 %216
    %vm218 = vcmask 64512
    %v220 = vsel %vm218, %v211, 0
    %v223 = vsel %vm218, %v217, 0
    %225 = vmatprep.subr.bf16.mxu0 0
    %226 = vmatpush1.bf16.xpose.msra.mxu0 %v223
    %227 = vmatprep.subr.bf16.mxu0 0
    %228 = vmatpush1.bf16.xpose.msra.mxu0 0
    %229 = vmatprep.subr.bf16.mxu0 0
    %230 = vmatpush1.bf16.xpose.msra.mxu0 0
    %231 = vmatprep.subr.bf16.mxu0 0
    %232 = vmatpush1.bf16.xpose.msra.mxu0 0
    %233 = vmatprep.subr.bf16.mxu0 0
    %234 = vmatpush1.bf16.xpose.msra.mxu0 0
    %235 = vmatprep.subr.bf16.mxu0 0
    %236 = vmatpush1.bf16.xpose.msra.mxu0 0
    %237 = vmatprep.subr.bf16.mxu0 0
    %238 = vmatpush1.bf16.xpose.msra.mxu0 0
    %239 = vmatprep.subr.bf16.mxu0 0
    %240 = vmatpush1.bf16.xpose.msra.mxu0 0
    %241 = vmatprep.subr.bf16.mxu0 0
    %242 = vmatpush1.bf16.xpose.msra.mxu0 0
    %243 = vmatprep.subr.bf16.mxu0 0
    %244 = vmatpush1.bf16.xpose.msra.mxu0 0
    %245 = vmatprep.subr.bf16.mxu0 0
    %246 = vmatpush1.bf16.xpose.msra.mxu0 0
    %247 = vmatprep.subr.bf16.mxu0 0
    %248 = vmatpush1.bf16.xpose.msra.mxu0 0
    %249 = vmatprep.subr.bf16.mxu0 0
    %250 = vmatpush1.bf16.xpose.msra.mxu0 0
    %251 = vmatprep.subr.bf16.mxu0 0
    %252 = vmatpush1.bf16.xpose.msra.mxu0 0
    %253 = vmatprep.subr.bf16.mxu0 0
    %254 = vmatpush1.bf16.xpose.msra.mxu0 0
    %255 = vmatprep.subr.bf16.mxu0 0
    %256 = vmatpush1.bf16.xpose.msra.mxu0 0
    %257 = vmatprep.mubr.bf16.mxu0 0
    %258 = vmatmul.mubr.bf16.gmra.mrb[0].mxu0 %v220
    %v259 = vpop.f32.mrb[0].mxu0
    %v260 = vadd.f32 %v134, %v259
    %v261 = vpop.f32.mrb[0].mxu0
    %v262 = vpop.f32.mrb[0].mxu0
    %v263 = vpop.f32.mrb[0].mxu0
    %264 = vdwg.mxu0
    %266 = vrot.lane.b32.xlu0 %v214, 96
    %v267 = vpop.permute.xlu0 %266
    %v269 = vsel %vm218, %v212, 0
    %v272 = vsel %vm218, %v267, 0
    %274 = vmatprep.subr.bf16.mxu0 0
    %275 = vmatpush1.bf16.xpose.msra.mxu0 %v272
    %276 = vmatprep.subr.bf16.mxu0 0
    %277 = vmatpush1.bf16.xpose.msra.mxu0 0
    %278 = vmatprep.subr.bf16.mxu0 0
    %279 = vmatpush1.bf16.xpose.msra.mxu0 0
    %280 = vmatprep.subr.bf16.mxu0 0
    %281 = vmatpush1.bf16.xpose.msra.mxu0 0
    %282 = vmatprep.subr.bf16.mxu0 0
    %283 = vmatpush1.bf16.xpose.msra.mxu0 0
    %284 = vmatprep.subr.bf16.mxu0 0
    %285 = vmatpush1.bf16.xpose.msra.mxu0 0
    %286 = vmatprep.subr.bf16.mxu0 0
    %287 = vmatpush1.bf16.xpose.msra.mxu0 0
    %288 = vmatprep.subr.bf16.mxu0 0
    %289 = vmatpush1.bf16.xpose.msra.mxu0 0
    %290 = vmatprep.subr.bf16.mxu0 0
    %291 = vmatpush1.bf16.xpose.msra.mxu0 0
    %292 = vmatprep.subr.bf16.mxu0 0
    %293 = vmatpush1.bf16.xpose.msra.mxu0 0
    %294 = vmatprep.subr.bf16.mxu0 0
    %295 = vmatpush1.bf16.xpose.msra.mxu0 0
    %296 = vmatprep.subr.bf16.mxu0 0
    %297 = vmatpush1.bf16.xpose.msra.mxu0 0
    %298 = vmatprep.subr.bf16.mxu0 0
    %299 = vmatpush1.bf16.xpose.msra.mxu0 0
    %300 = vmatprep.subr.bf16.mxu0 0
    %301 = vmatpush1.bf16.xpose.msra.mxu0 0
    %302 = vmatprep.subr.bf16.mxu0 0
    %303 = vmatpush1.bf16.xpose.msra.mxu0 0
    %304 = vmatprep.subr.bf16.mxu0 0
    %305 = vmatpush1.bf16.xpose.msra.mxu0 0
    %306 = vmatprep.mubr.bf16.mxu0 0
    %307 = vmatmul.mubr.bf16.gmra.mrb[0].mxu0 %v269
    %v308 = vpop.f32.mrb[0].mxu0
    %v309 = vadd.f32 %v138, %v308
    %v310 = vpop.f32.mrb[0].mxu0
    %v311 = vpop.f32.mrb[0].mxu0
    %v312 = vpop.f32.mrb[0].mxu0
    %313 = vdwg.mxu0
    %v314 = vsel %vm218, %v260, -inf
    %315 = vmax.xlane.f32.xlu0 %v314
    %v316 = vpop.xlane.xlu0 %315
    %v317 = vsel %vm218, %v309, -inf
    %318 = vmax.xlane.f32.xlu0 %v317
    %v319 = vpop.xlane.xlu0 %318
    %v320 = vsub.f32 %v260, %v316
    %v321 = vsub.f32 %v309, %v319
    %v322 = vmul.f32 %v320, 1.442695
    %v323 = vpow.pop %v322
    %v324 = vmul.f32 %v321, 1.442695
    %v325 = vpow.pop %v324
    %v326 = vsel %vm218, %v323, 0.0
    %327 = vadd.xlane.f32.xlu0 %v326
    %v328 = vpop.xlane.xlu0 %327
    %v329 = vsel %vm218, %v325, 0.0
    %330 = vadd.xlane.f32.xlu0 %v329
    %v331 = vpop.xlane.xlu0 %330
    %v332 = vrcp.pop %v328
    %v333 = vrcp.pop %v331
    %v334 = vmul.f32 %v323, %v332
    %v335 = vmul.f32 %v325, %v333
    %v336 = vpack.c.bf16 %v334, %v334
    %v337 = vpack.c.bf16 %v335, %v335
    %338 = vrot.lane.b32.xlu0 %v213, 64
    %v339 = vpop.permute.xlu0 %338
    %v341 = vsel %vm218, %v336, 0
    %vm343 = vcmask 1043456
    %v345 = vsel %vm343, %v339, 0
    %347 = vmatprep.subr.bf16.mxu0 0
    %348 = vmatpush1.bf16.msra.mxu0 %v345
    %349 = vmatprep.subr.bf16.mxu0 0
    %350 = vmatpush1.bf16.msra.mxu0 0
    %351 = vmatprep.subr.bf16.mxu0 0
    %352 = vmatpush1.bf16.msra.mxu0 0
    %353 = vmatprep.subr.bf16.mxu0 0
    %354 = vmatpush1.bf16.msra.mxu0 0
    %355 = vmatprep.subr.bf16.mxu0 0
    %356 = vmatpush1.bf16.msra.mxu0 0
    %357 = vmatprep.subr.bf16.mxu0 0
    %358 = vmatpush1.bf16.msra.mxu0 0
    %359 = vmatprep.subr.bf16.mxu0 0
    %360 = vmatpush1.bf16.msra.mxu0 0
    %361 = vmatprep.subr.bf16.mxu0 0
    %362 = vmatpush1.bf16.msra.mxu0 0
    %363 = vmatprep.subr.bf16.mxu0 0
    %364 = vmatpush1.bf16.msra.mxu0 0
    %365 = vmatprep.subr.bf16.mxu0 0
    %366 = vmatpush1.bf16.msra.mxu0 0
    %367 = vmatprep.subr.bf16.mxu0 0
    %368 = vmatpush1.bf16.msra.mxu0 0
    %369 = vmatprep.subr.bf16.mxu0 0
    %370 = vmatpush1.bf16.msra.mxu0 0
    %371 = vmatprep.subr.bf16.mxu0 0
    %372 = vmatpush1.bf16.msra.mxu0 0
    %373 = vmatprep.subr.bf16.mxu0 0
    %374 = vmatpush1.bf16.msra.mxu0 0
    %375 = vmatprep.subr.bf16.mxu0 0
    %376 = vmatpush1.bf16.msra.mxu0 0
    %377 = vmatprep.subr.bf16.mxu0 0
    %378 = vmatpush1.bf16.msra.mxu0 0
    %379 = vmatprep.mubr.bf16.mxu0 0
    %380 = vmatmul.mubr.bf16.gmra.mrb[0].mxu0 %v341
    %v381 = vpop.f32.mrb[0].mxu0
    %v382 = vadd.f32 0.0, %v381
    %v383 = vpop.f32.mrb[0].mxu0
    %v384 = vpop.f32.mrb[0].mxu0
    %v385 = vpop.f32.mrb[0].mxu0
    %386 = vdwg.mxu0
    %387 = vrot.lane.b32.xlu0 %v214, 64
    %v388 = vpop.permute.xlu0 %387
    %v390 = vsel %vm218, %v337, 0
    %v393 = vsel %vm343, %v388, 0
    %395 = vmatprep.subr.bf16.mxu0 0
    %396 = vmatpush1.bf16.msra.mxu0 %v393
    %397 = vmatprep.subr.bf16.mxu0 0
    %398 = vmatpush1.bf16.msra.mxu0 0
    %399 = vmatprep.subr.bf16.mxu0 0
    %400 = vmatpush1.bf16.msra.mxu0 0
    %401 = vmatprep.subr.bf16.mxu0 0
    %402 = vmatpush1.bf16.msra.mxu0 0
    %403 = vmatprep.subr.bf16.mxu0 0
    %404 = vmatpush1.bf16.msra.mxu0 0
    %405 = vmatprep.subr.bf16.mxu0 0
    %406 = vmatpush1.bf16.msra.mxu0 0
    %407 = vmatprep.subr.bf16.mxu0 0
    %408 = vmatpush1.bf16.msra.mxu0 0
    %409 = vmatprep.subr.bf16.mxu0 0
    %410 = vmatpush1.bf16.msra.mxu0 0
    %411 = vmatprep.subr.bf16.mxu0 0
    %412 = vmatpush1.bf16.msra.mxu0 0
    %413 = vmatprep.subr.bf16.mxu0 0
    %414 = vmatpush1.bf16.msra.mxu0 0
    %415 = vmatprep.subr.bf16.mxu0 0
    %416 = vmatpush1.bf16.msra.mxu0 0
    %417 = vmatprep.subr.bf16.mxu0 0
    %418 = vmatpush1.bf16.msra.mxu0 0
    %419 = vmatprep.subr.bf16.mxu0 0
    %420 = vmatpush1.bf16.msra.mxu0 0
    %421 = vmatprep.subr.bf16.mxu0 0
    %422 = vmatpush1.bf16.msra.mxu0 0
    %423 = vmatprep.subr.bf16.mxu0 0
    %424 = vmatpush1.bf16.msra.mxu0 0
    %425 = vmatprep.subr.bf16.mxu0 0
    %426 = vmatpush1.bf16.msra.mxu0 0
    %427 = vmatprep.mubr.bf16.mxu0 0
    %428 = vmatmul.mubr.bf16.gmra.mrb[0].mxu0 %v390
    %v429 = vpop.f32.mrb[0].mxu0
    %v430 = vadd.f32 0.0, %v429
    %v431 = vpop.f32.mrb[0].mxu0
    %v432 = vpop.f32.mrb[0].mxu0
    %v433 = vpop.f32.mrb[0].mxu0
    %434 = vdwg.mxu0
    %436 = vrot.lane.b32.xlu0 %v211, 120
    %v437 = vpop.permute.xlu0 %436
    %438 = vrot.lane.b32.xlu0 %v213, 88
    %v439 = vpop.permute.xlu0 %438
    %v441 = vsel %vm218, %v437, 0
    %v444 = vsel %vm218, %v439, 0
    %446 = vmatprep.subr.bf16.mxu0 0
    %447 = vmatpush1.bf16.xpose.msra.mxu0 %v444
    %448 = vmatprep.subr.bf16.mxu0 0
    %449 = vmatpush1.bf16.xpose.msra.mxu0 0
    %450 = vmatprep.subr.bf16.mxu0 0
    %451 = vmatpush1.bf16.xpose.msra.mxu0 0
    %452 = vmatprep.subr.bf16.mxu0 0
    %453 = vmatpush1.bf16.xpose.msra.mxu0 0
    %454 = vmatprep.subr.bf16.mxu0 0
    %455 = vmatpush1.bf16.xpose.msra.mxu0 0
    %456 = vmatprep.subr.bf16.mxu0 0
    %457 = vmatpush1.bf16.xpose.msra.mxu0 0
    %458 = vmatprep.subr.bf16.mxu0 0
    %459 = vmatpush1.bf16.xpose.msra.mxu0 0
    %460 = vmatprep.subr.bf16.mxu0 0
    %461 = vmatpush1.bf16.xpose.msra.mxu0 0
    %462 = vmatprep.subr.bf16.mxu0 0
    %463 = vmatpush1.bf16.xpose.msra.mxu0 0
    %464 = vmatprep.subr.bf16.mxu0 0
    %465 = vmatpush1.bf16.xpose.msra.mxu0 0
    %466 = vmatprep.subr.bf16.mxu0 0
    %467 = vmatpush1.bf16.xpose.msra.mxu0 0
    %468 = vmatprep.subr.bf16.mxu0 0
    %469 = vmatpush1.bf16.xpose.msra.mxu0 0
    %470 = vmatprep.subr.bf16.mxu0 0
    %471 = vmatpush1.bf16.xpose.msra.mxu0 0
    %472 = vmatprep.subr.bf16.mxu0 0
    %473 = vmatpush1.bf16.xpose.msra.mxu0 0
    %474 = vmatprep.subr.bf16.mxu0 0
    %475 = vmatpush1.bf16.xpose.msra.mxu0 0
    %476 = vmatprep.subr.bf16.mxu0 0
    %477 = vmatpush1.bf16.xpose.msra.mxu0 0
    %478 = vmatprep.mubr.bf16.mxu0 0
    %479 = vmatmul.mubr.bf16.gmra.mrb[0].mxu0 %v441
    %v480 = vpop.f32.mrb[0].mxu0
    %v481 = vadd.f32 %v134, %v480
    %v482 = vpop.f32.mrb[0].mxu0
    %v483 = vpop.f32.mrb[0].mxu0
    %v484 = vpop.f32.mrb[0].mxu0
    %485 = vdwg.mxu0
    %487 = vrot.lane.b32.xlu0 %v212, 120
    %v488 = vpop.permute.xlu0 %487
    %489 = vrot.lane.b32.xlu0 %v214, 88
    %v490 = vpop.permute.xlu0 %489
    %v492 = vsel %vm218, %v488, 0
    %v495 = vsel %vm218, %v490, 0
    %497 = vmatprep.subr.bf16.mxu0 0
    %498 = vmatpush1.bf16.xpose.msra.mxu0 %v495
    %499 = vmatprep.subr.bf16.mxu0 0
    %500 = vmatpush1.bf16.xpose.msra.mxu0 0
    %501 = vmatprep.subr.bf16.mxu0 0
    %502 = vmatpush1.bf16.xpose.msra.mxu0 0
    %503 = vmatprep.subr.bf16.mxu0 0
    %504 = vmatpush1.bf16.xpose.msra.mxu0 0
    %505 = vmatprep.subr.bf16.mxu0 0
    %506 = vmatpush1.bf16.xpose.msra.mxu0 0
    %507 = vmatprep.subr.bf16.mxu0 0
    %508 = vmatpush1.bf16.xpose.msra.mxu0 0
    %509 = vmatprep.subr.bf16.mxu0 0
    %510 = vmatpush1.bf16.xpose.msra.mxu0 0
    %511 = vmatprep.subr.bf16.mxu0 0
    %512 = vmatpush1.bf16.xpose.msra.mxu0 0
    %513 = vmatprep.subr.bf16.mxu0 0
    %514 = vmatpush1.bf16.xpose.msra.mxu0 0
    %515 = vmatprep.subr.bf16.mxu0 0
    %516 = vmatpush1.bf16.xpose.msra.mxu0 0
    %517 = vmatprep.subr.bf16.mxu0 0
    %518 = vmatpush1.bf16.xpose.msra.mxu0 0
    %519 = vmatprep.subr.bf16.mxu0 0
    %520 = vmatpush1.bf16.xpose.msra.mxu0 0
    %521 = vmatprep.subr.bf16.mxu0 0
    %522 = vmatpush1.bf16.xpose.msra.mxu0 0
    %523 = vmatprep.subr.bf16.mxu0 0
    %524 = vmatpush1.bf16.xpose.msra.mxu0 0
    %525 = vmatprep.subr.bf16.mxu0 0
    %526 = vmatpush1.bf16.xpose.msra.mxu0 0
    %527 = vmatprep.subr.bf16.mxu0 0
    %528 = vmatpush1.bf16.xpose.msra.mxu0 0
    %529 = vmatprep.mubr.bf16.mxu0 0
    %530 = vmatmul.mubr.bf16.gmra.mrb[0].mxu0 %v492
    %v531 = vpop.f32.mrb[0].mxu0
    %v532 = vadd.f32 %v138, %v531
    %v533 = vpop.f32.mrb[0].mxu0
    %v534 = vpop.f32.mrb[0].mxu0
    %v535 = vpop.f32.mrb[0].mxu0
    %536 = vdwg.mxu0
    %v537 = vsel %vm218, %v481, -inf
    %538 = vmax.xlane.f32.xlu0 %v537
    %v539 = vpop.xlane.xlu0 %538
    %v540 = vsel %vm218, %v532, -inf
    %541 = vmax.xlane.f32.xlu0 %v540
    %v542 = vpop.xlane.xlu0 %541
    %v543 = vsub.f32 %v481, %v539
    %v544 = vsub.f32 %v532, %v542
    %v545 = vmul.f32 %v543, 1.442695
    %v546 = vpow.pop %v545
    %v547 = vmul.f32 %v544, 1.442695
    %v548 = vpow.pop %v547
    %v549 = vsel %vm218, %v546, 0.0
    %550 = vadd.xlane.f32.xlu0 %v549
    %v551 = vpop.xlane.xlu0 %550
    %v552 = vsel %vm218, %v548, 0.0
    %553 = vadd.xlane.f32.xlu0 %v552
    %v554 = vpop.xlane.xlu0 %553
    %v555 = vrcp.pop %v551
    %v556 = vrcp.pop %v554
    %v557 = vmul.f32 %v546, %v555
    %v558 = vmul.f32 %v548, %v556
    %v559 = vpack.c.bf16 %v557, %v557
    %v560 = vpack.c.bf16 %v558, %v558
    %561 = vrot.lane.b32.xlu0 %v213, 56
    %v562 = vpop.permute.xlu0 %561
    %v564 = vsel %vm218, %v559, 0
    %v567 = vsel %vm343, %v562, 0
    %569 = vmatprep.subr.bf16.mxu0 0
    %570 = vmatpush1.bf16.msra.mxu0 %v567
    %571 = vmatprep.subr.bf16.mxu0 0
    %572 = vmatpush1.bf16.msra.mxu0 0
    %573 = vmatprep.subr.bf16.mxu0 0
    %574 = vmatpush1.bf16.msra.mxu0 0
    %575 = vmatprep.subr.bf16.mxu0 0
    %576 = vmatpush1.bf16.msra.mxu0 0
    %577 = vmatprep.subr.bf16.mxu0 0
    %578 = vmatpush1.bf16.msra.mxu0 0
    %579 = vmatprep.subr.bf16.mxu0 0
    %580 = vmatpush1.bf16.msra.mxu0 0
    %581 = vmatprep.subr.bf16.mxu0 0
    %582 = vmatpush1.bf16.msra.mxu0 0
    %583 = vmatprep.subr.bf16.mxu0 0
    %584 = vmatpush1.bf16.msra.mxu0 0
    %585 = vmatprep.subr.bf16.mxu0 0
    %586 = vmatpush1.bf16.msra.mxu0 0
    %587 = vmatprep.subr.bf16.mxu0 0
    %588 = vmatpush1.bf16.msra.mxu0 0
    %589 = vmatprep.subr.bf16.mxu0 0
    %590 = vmatpush1.bf16.msra.mxu0 0
    %591 = vmatprep.subr.bf16.mxu0 0
    %592 = vmatpush1.bf16.msra.mxu0 0
    %593 = vmatprep.subr.bf16.mxu0 0
    %594 = vmatpush1.bf16.msra.mxu0 0
    %595 = vmatprep.subr.bf16.mxu0 0
    %596 = vmatpush1.bf16.msra.mxu0 0
    %597 = vmatprep.subr.bf16.mxu0 0
    %598 = vmatpush1.bf16.msra.mxu0 0
    %599 = vmatprep.subr.bf16.mxu0 0
    %600 = vmatpush1.bf16.msra.mxu0 0
    %601 = vmatprep.mubr.bf16.mxu0 0
    %602 = vmatmul.mubr.bf16.gmra.mrb[0].mxu0 %v564
    %v603 = vpop.f32.mrb[0].mxu0
    %v604 = vadd.f32 0.0, %v603
    %v605 = vpop.f32.mrb[0].mxu0
    %v606 = vpop.f32.mrb[0].mxu0
    %v607 = vpop.f32.mrb[0].mxu0
    %608 = vdwg.mxu0
    %609 = vrot.lane.b32.xlu0 %v214, 56
    %v610 = vpop.permute.xlu0 %609
    %v612 = vsel %vm218, %v560, 0
    %v615 = vsel %vm343, %v610, 0
    %617 = vmatprep.subr.bf16.mxu0 0
    %618 = vmatpush1.bf16.msra.mxu0 %v615
    %619 = vmatprep.subr.bf16.mxu0 0
    %620 = vmatpush1.bf16.msra.mxu0 0
    %621 = vmatprep.subr.bf16.mxu0 0
    %622 = vmatpush1.bf16.msra.mxu0 0
    %623 = vmatprep.subr.bf16.mxu0 0
    %624 = vmatpush1.bf16.msra.mxu0 0
    %625 = vmatprep.subr.bf16.mxu0 0
    %626 = vmatpush1.bf16.msra.mxu0 0
    %627 = vmatprep.subr.bf16.mxu0 0
    %628 = vmatpush1.bf16.msra.mxu0 0
    %629 = vmatprep.subr.bf16.mxu0 0
    %630 = vmatpush1.bf16.msra.mxu0 0
    %631 = vmatprep.subr.bf16.mxu0 0
    %632 = vmatpush1.bf16.msra.mxu0 0
    %633 = vmatprep.subr.bf16.mxu0 0
    %634 = vmatpush1.bf16.msra.mxu0 0
    %635 = vmatprep.subr.bf16.mxu0 0
    %636 = vmatpush1.bf16.msra.mxu0 0
    %637 = vmatprep.subr.bf16.mxu0 0
    %638 = vmatpush1.bf16.msra.mxu0 0
    %639 = vmatprep.subr.bf16.mxu0 0
    %640 = vmatpush1.bf16.msra.mxu0 0
    %641 = vmatprep.subr.bf16.mxu0 0
    %642 = vmatpush1.bf16.msra.mxu0 0
    %643 = vmatprep.subr.bf16.mxu0 0
    %644 = vmatpush1.bf16.msra.mxu0 0
    %645 = vmatprep.subr.bf16.mxu0 0
    %646 = vmatpush1.bf16.msra.mxu0 0
    %647 = vmatprep.subr.bf16.mxu0 0
    %648 = vmatpush1.bf16.msra.mxu0 0
    %649 = vmatprep.mubr.bf16.mxu0 0
    %650 = vmatmul.mubr.bf16.gmra.mrb[0].mxu0 %v612
    %v651 = vpop.f32.mrb[0].mxu0
    %v652 = vadd.f32 0.0, %v651
    %v653 = vpop.f32.mrb[0].mxu0
    %v654 = vpop.f32.mrb[0].mxu0
    %v655 = vpop.f32.mrb[0].mxu0
    %656 = vdwg.mxu0
    %657 = vrot.lane.b32.xlu0 %v211, 112
    %v658 = vpop.permute.xlu0 %657
    %659 = vrot.lane.b32.xlu0 %v213, 80
    %v660 = vpop.permute.xlu0 %659
    %v662 = vsel %vm218, %v658, 0
    %v665 = vsel %vm218, %v660, 0
    %667 = vmatprep.subr.bf16.mxu0 0
    %668 = vmatpush1.bf16.xpose.msra.mxu0 %v665
    %669 = vmatprep.subr.bf16.mxu0 0
    %670 = vmatpush1.bf16.xpose.msra.mxu0 0
    %671 = vmatprep.subr.bf16.mxu0 0
    %672 = vmatpush1.bf16.xpose.msra.mxu0 0
    %673 = vmatprep.subr.bf16.mxu0 0
    %674 = vmatpush1.bf16.xpose.msra.mxu0 0
    %675 = vmatprep.subr.bf16.mxu0 0
    %676 = vmatpush1.bf16.xpose.msra.mxu0 0
    %677 = vmatprep.subr.bf16.mxu0 0
    %678 = vmatpush1.bf16.xpose.msra.mxu0 0
    %679 = vmatprep.subr.bf16.mxu0 0
    %680 = vmatpush1.bf16.xpose.msra.mxu0 0
    %681 = vmatprep.subr.bf16.mxu0 0
    %682 = vmatpush1.bf16.xpose.msra.mxu0 0
    %683 = vmatprep.subr.bf16.mxu0 0
    %684 = vmatpush1.bf16.xpose.msra.mxu0 0
    %685 = vmatprep.subr.bf16.mxu0 0
    %686 = vmatpush1.bf16.xpose.msra.mxu0 0
    %687 = vmatprep.subr.bf16.mxu0 0
    %688 = vmatpush1.bf16.xpose.msra.mxu0 0
    %689 = vmatprep.subr.bf16.mxu0 0
    %690 = vmatpush1.bf16.xpose.msra.mxu0 0
    %691 = vmatprep.subr.bf16.mxu0 0
    %692 = vmatpush1.bf16.xpose.msra.mxu0 0
    %693 = vmatprep.subr.bf16.mxu0 0
    %694 = vmatpush1.bf16.xpose.msra.mxu0 0
    %695 = vmatprep.subr.bf16.mxu0 0
    %696 = vmatpush1.bf16.xpose.msra.mxu0 0
    %697 = vmatprep.subr.bf16.mxu0 0
    %698 = vmatpush1.bf16.xpose.msra.mxu0 0
    %699 = vmatprep.mubr.bf16.mxu0 0
    %700 = vmatmul.mubr.bf16.gmra.mrb[0].mxu0 %v662
    %v701 = vpop.f32.mrb[0].mxu0
    %v702 = vadd.f32 %v134, %v701
    %v703 = vpop.f32.mrb[0].mxu0
    %v704 = vpop.f32.mrb[0].mxu0
    %v705 = vpop.f32.mrb[0].mxu0
    %706 = vdwg.mxu0
    %707 = vrot.lane.b32.xlu0 %v212, 112
    %v708 = vpop.permute.xlu0 %707
    %709 = vrot.lane.b32.xlu0 %v214, 80
    %v710 = vpop.permute.xlu0 %709
    %v712 = vsel %vm218, %v708, 0
    %v715 = vsel %vm218, %v710, 0
    %717 = vmatprep.subr.bf16.mxu0 0
    %718 = vmatpush1.bf16.xpose.msra.mxu0 %v715
    %719 = vmatprep.subr.bf16.mxu0 0
    %720 = vmatpush1.bf16.xpose.msra.mxu0 0
    %721 = vmatprep.subr.bf16.mxu0 0
    %722 = vmatpush1.bf16.xpose.msra.mxu0 0
    %723 = vmatprep.subr.bf16.mxu0 0
    %724 = vmatpush1.bf16.xpose.msra.mxu0 0
    %725 = vmatprep.subr.bf16.mxu0 0
    %726 = vmatpush1.bf16.xpose.msra.mxu0 0
    %727 = vmatprep.subr.bf16.mxu0 0
    %728 = vmatpush1.bf16.xpose.msra.mxu0 0
    %729 = vmatprep.subr.bf16.mxu0 0
    %730 = vmatpush1.bf16.xpose.msra.mxu0 0
    %731 = vmatprep.subr.bf16.mxu0 0
    %732 = vmatpush1.bf16.xpose.msra.mxu0 0
    %733 = vmatprep.subr.bf16.mxu0 0
    %734 = vmatpush1.bf16.xpose.msra.mxu0 0
    %735 = vmatprep.subr.bf16.mxu0 0
    %736 = vmatpush1.bf16.xpose.msra.mxu0 0
    %737 = vmatprep.subr.bf16.mxu0 0
    %738 = vmatpush1.bf16.xpose.msra.mxu0 0
    %739 = vmatprep.subr.bf16.mxu0 0
    %740 = vmatpush1.bf16.xpose.msra.mxu0 0
    %741 = vmatprep.subr.bf16.mxu0 0
    %742 = vmatpush1.bf16.xpose.msra.mxu0 0
    %743 = vmatprep.subr.bf16.mxu0 0
    %744 = vmatpush1.bf16.xpose.msra.mxu0 0
    %745 = vmatprep.subr.bf16.mxu0 0
    %746 = vmatpush1.bf16.xpose.msra.mxu0 0
    %747 = vmatprep.subr.bf16.mxu0 0
    %748 = vmatpush1.bf16.xpose.msra.mxu0 0
    %749 = vmatprep.mubr.bf16.mxu0 0
    %750 = vmatmul.mubr.bf16.gmra.mrb[0].mxu0 %v712
    %v751 = vpop.f32.mrb[0].mxu0
    %v752 = vadd.f32 %v138, %v751
    %v753 = vpop.f32.mrb[0].mxu0
    %v754 = vpop.f32.mrb[0].mxu0
    %v755 = vpop.f32.mrb[0].mxu0
    %756 = vdwg.mxu0
    %v757 = vsel %vm218, %v702, -inf
    %758 = vmax.xlane.f32.xlu0 %v757
    %v759 = vpop.xlane.xlu0 %758
    %v760 = vsel %vm218, %v752, -inf
    %761 = vmax.xlane.f32.xlu0 %v760
    %v762 = vpop.xlane.xlu0 %761
    %v763 = vsub.f32 %v702, %v759
    %v764 = vsub.f32 %v752, %v762
    %v765 = vmul.f32 %v763, 1.442695
    %v766 = vpow.pop %v765
    %v767 = vmul.f32 %v764, 1.442695
    %v768 = vpow.pop %v767
    %v769 = vsel %vm218, %v766, 0.0
    %770 = vadd.xlane.f32.xlu0 %v769
    %v771 = vpop.xlane.xlu0 %770
    %v772 = vsel %vm218, %v768, 0.0
    %773 = vadd.xlane.f32.xlu0 %v772
    %v774 = vpop.xlane.xlu0 %773
    %v775 = vrcp.pop %v771
    %v776 = vrcp.pop %v774
    %v777 = vmul.f32 %v766, %v775
    %v778 = vmul.f32 %v768, %v776
    %v779 = vpack.c.bf16 %v777, %v777
    %v780 = vpack.c.bf16 %v778, %v778
    %781 = vrot.lane.b32.xlu0 %v213, 48
    %v782 = vpop.permute.xlu0 %781
    %v784 = vsel %vm218, %v779, 0
    %v787 = vsel %vm343, %v782, 0
    %789 = vmatprep.subr.bf16.mxu0 0
    %790 = vmatpush1.bf16.msra.mxu0 %v787
    %791 = vmatprep.subr.bf16.mxu0 0
    %792 = vmatpush1.bf16.msra.mxu0 0
    %793 = vmatprep.subr.bf16.mxu0 0
    %794 = vmatpush1.bf16.msra.mxu0 0
    %795 = vmatprep.subr.bf16.mxu0 0
    %796 = vmatpush1.bf16.msra.mxu0 0
    %797 = vmatprep.subr.bf16.mxu0 0
    %798 = vmatpush1.bf16.msra.mxu0 0
    %799 = vmatprep.subr.bf16.mxu0 0
    %800 = vmatpush1.bf16.msra.mxu0 0
    %801 = vmatprep.subr.bf16.mxu0 0
    %802 = vmatpush1.bf16.msra.mxu0 0
    %803 = vmatprep.subr.bf16.mxu0 0
    %804 = vmatpush1.bf16.msra.mxu0 0
    %805 = vmatprep.subr.bf16.mxu0 0
    %806 = vmatpush1.bf16.msra.mxu0 0
    %807 = vmatprep.subr.bf16.mxu0 0
    %808 = vmatpush1.bf16.msra.mxu0 0
    %809 = vmatprep.subr.bf16.mxu0 0
    %810 = vmatpush1.bf16.msra.mxu0 0
    %811 = vmatprep.subr.bf16.mxu0 0
    %812 = vmatpush1.bf16.msra.mxu0 0
    %813 = vmatprep.subr.bf16.mxu0 0
    %814 = vmatpush1.bf16.msra.mxu0 0
    %815 = vmatprep.subr.bf16.mxu0 0
    %816 = vmatpush1.bf16.msra.mxu0 0
    %817 = vmatprep.subr.bf16.mxu0 0
    %818 = vmatpush1.bf16.msra.mxu0 0
    %819 = vmatprep.subr.bf16.mxu0 0
    %820 = vmatpush1.bf16.msra.mxu0 0
    %821 = vmatprep.mubr.bf16.mxu0 0
    %822 = vmatmul.mubr.bf16.gmra.mrb[0].mxu0 %v784
    %v823 = vpop.f32.mrb[0].mxu0
    %v824 = vadd.f32 0.0, %v823
    %v825 = vpop.f32.mrb[0].mxu0
    %v826 = vpop.f32.mrb[0].mxu0
    %v827 = vpop.f32.mrb[0].mxu0
    %828 = vdwg.mxu0
    %829 = vrot.lane.b32.xlu0 %v214, 48
    %v830 = vpop.permute.xlu0 %829
    %v832 = vsel %vm218, %v780, 0
    %v835 = vsel %vm343, %v830, 0
    %837 = vmatprep.subr.bf16.mxu0 0
    %838 = vmatpush1.bf16.msra.mxu0 %v835
    %839 = vmatprep.subr.bf16.mxu0 0
    %840 = vmatpush1.bf16.msra.mxu0 0
    %841 = vmatprep.subr.bf16.mxu0 0
    %842 = vmatpush1.bf16.msra.mxu0 0
    %843 = vmatprep.subr.bf16.mxu0 0
    %844 = vmatpush1.bf16.msra.mxu0 0
    %845 = vmatprep.subr.bf16.mxu0 0
    %846 = vmatpush1.bf16.msra.mxu0 0
    %847 = vmatprep.subr.bf16.mxu0 0
    %848 = vmatpush1.bf16.msra.mxu0 0
    %849 = vmatprep.subr.bf16.mxu0 0
    %850 = vmatpush1.bf16.msra.mxu0 0
    %851 = vmatprep.subr.bf16.mxu0 0
    %852 = vmatpush1.bf16.msra.mxu0 0
    %853 = vmatprep.subr.bf16.mxu0 0
    %854 = vmatpush1.bf16.msra.mxu0 0
    %855 = vmatprep.subr.bf16.mxu0 0
    %856 = vmatpush1.bf16.msra.mxu0 0
    %857 = vmatprep.subr.bf16.mxu0 0
    %858 = vmatpush1.bf16.msra.mxu0 0
    %859 = vmatprep.subr.bf16.mxu0 0
    %860 = vmatpush1.bf16.msra.mxu0 0
    %861 = vmatprep.subr.bf16.mxu0 0
    %862 = vmatpush1.bf16.msra.mxu0 0
    %863 = vmatprep.subr.bf16.mxu0 0
    %864 = vmatpush1.bf16.msra.mxu0 0
    %865 = vmatprep.subr.bf16.mxu0 0
    %866 = vmatpush1.bf16.msra.mxu0 0
    %867 = vmatprep.subr.bf16.mxu0 0
    %868 = vmatpush1.bf16.msra.mxu0 0
    %869 = vmatprep.mubr.bf16.mxu0 0
    %870 = vmatmul.mubr.bf16.gmra.mrb[0].mxu0 %v832
    %v871 = vpop.f32.mrb[0].mxu0
    %v872 = vadd.f32 0.0, %v871
    %v873 = vpop.f32.mrb[0].mxu0
    %v874 = vpop.f32.mrb[0].mxu0
    %v875 = vpop.f32.mrb[0].mxu0
    %876 = vdwg.mxu0
    %877 = vrot.lane.b32.xlu0 %v211, 104
    %v878 = vpop.permute.xlu0 %877
    %879 = vrot.lane.b32.xlu0 %v213, 72
    %v880 = vpop.permute.xlu0 %879
    %v882 = vsel %vm218, %v878, 0
    %v885 = vsel %vm218, %v880, 0
    %887 = vmatprep.subr.bf16.mxu0 0
    %888 = vmatpush1.bf16.xpose.msra.mxu0 %v885
    %889 = vmatprep.subr.bf16.mxu0 0
    %890 = vmatpush1.bf16.xpose.msra.mxu0 0
    %891 = vmatprep.subr.bf16.mxu0 0
    %892 = vmatpush1.bf16.xpose.msra.mxu0 0
    %893 = vmatprep.subr.bf16.mxu0 0
    %894 = vmatpush1.bf16.xpose.msra.mxu0 0
    %895 = vmatprep.subr.bf16.mxu0 0
    %896 = vmatpush1.bf16.xpose.msra.mxu0 0
    %897 = vmatprep.subr.bf16.mxu0 0
    %898 = vmatpush1.bf16.xpose.msra.mxu0 0
    %899 = vmatprep.subr.bf16.mxu0 0
    %900 = vmatpush1.bf16.xpose.msra.mxu0 0
    %901 = vmatprep.subr.bf16.mxu0 0
    %902 = vmatpush1.bf16.xpose.msra.mxu0 0
    %903 = vmatprep.subr.bf16.mxu0 0
    %904 = vmatpush1.bf16.xpose.msra.mxu0 0
    %905 = vmatprep.subr.bf16.mxu0 0
    %906 = vmatpush1.bf16.xpose.msra.mxu0 0
    %907 = vmatprep.subr.bf16.mxu0 0
    %908 = vmatpush1.bf16.xpose.msra.mxu0 0
    %909 = vmatprep.subr.bf16.mxu0 0
    %910 = vmatpush1.bf16.xpose.msra.mxu0 0
    %911 = vmatprep.subr.bf16.mxu0 0
    %912 = vmatpush1.bf16.xpose.msra.mxu0 0
    %913 = vmatprep.subr.bf16.mxu0 0
    %914 = vmatpush1.bf16.xpose.msra.mxu0 0
    %915 = vmatprep.subr.bf16.mxu0 0
    %916 = vmatpush1.bf16.xpose.msra.mxu0 0
    %917 = vmatprep.subr.bf16.mxu0 0
    %918 = vmatpush1.bf16.xpose.msra.mxu0 0
    %919 = vmatprep.mubr.bf16.mxu0 0
    %920 = vmatmul.mubr.bf16.gmra.mrb[0].mxu0 %v882
    %v921 = vpop.f32.mrb[0].mxu0
    %v922 = vadd.f32 %v134, %v921
    %v923 = vpop.f32.mrb[0].mxu0
    %v924 = vpop.f32.mrb[0].mxu0
    %v925 = vpop.f32.mrb[0].mxu0
    %926 = vdwg.mxu0
    %927 = vrot.lane.b32.xlu0 %v212, 104
    %v928 = vpop.permute.xlu0 %927
    %929 = vrot.lane.b32.xlu0 %v214, 72
    %v930 = vpop.permute.xlu0 %929
    %v932 = vsel %vm218, %v928, 0
    %v935 = vsel %vm218, %v930, 0
    %937 = vmatprep.subr.bf16.mxu0 0
    %938 = vmatpush1.bf16.xpose.msra.mxu0 %v935
    %939 = vmatprep.subr.bf16.mxu0 0
    %940 = vmatpush1.bf16.xpose.msra.mxu0 0
    %941 = vmatprep.subr.bf16.mxu0 0
    %942 = vmatpush1.bf16.xpose.msra.mxu0 0
    %943 = vmatprep.subr.bf16.mxu0 0
    %944 = vmatpush1.bf16.xpose.msra.mxu0 0
    %945 = vmatprep.subr.bf16.mxu0 0
    %946 = vmatpush1.bf16.xpose.msra.mxu0 0
    %947 = vmatprep.subr.bf16.mxu0 0
    %948 = vmatpush1.bf16.xpose.msra.mxu0 0
    %949 = vmatprep.subr.bf16.mxu0 0
    %950 = vmatpush1.bf16.xpose.msra.mxu0 0
    %951 = vmatprep.subr.bf16.mxu0 0
    %952 = vmatpush1.bf16.xpose.msra.mxu0 0
    %953 = vmatprep.subr.bf16.mxu0 0
    %954 = vmatpush1.bf16.xpose.msra.mxu0 0
    %955 = vmatprep.subr.bf16.mxu0 0
    %956 = vmatpush1.bf16.xpose.msra.mxu0 0
    %957 = vmatprep.subr.bf16.mxu0 0
    %958 = vmatpush1.bf16.xpose.msra.mxu0 0
    %959 = vmatprep.subr.bf16.mxu0 0
    %960 = vmatpush1.bf16.xpose.msra.mxu0 0
    %961 = vmatprep.subr.bf16.mxu0 0
    %962 = vmatpush1.bf16.xpose.msra.mxu0 0
    %963 = vmatprep.subr.bf16.mxu0 0
    %964 = vmatpush1.bf16.xpose.msra.mxu0 0
    %965 = vmatprep.subr.bf16.mxu0 0
    %966 = vmatpush1.bf16.xpose.msra.mxu0 0
    %967 = vmatprep.subr.bf16.mxu0 0
    %968 = vmatpush1.bf16.xpose.msra.mxu0 0
    %969 = vmatprep.mubr.bf16.mxu0 0
    %970 = vmatmul.mubr.bf16.gmra.mrb[0].mxu0 %v932
    %v971 = vpop.f32.mrb[0].mxu0
    %v972 = vadd.f32 %v138, %v971
    %v973 = vpop.f32.mrb[0].mxu0
    %v974 = vpop.f32.mrb[0].mxu0
    %v975 = vpop.f32.mrb[0].mxu0
    %976 = vdwg.mxu0
    %v977 = vsel %vm218, %v922, -inf
    %978 = vmax.xlane.f32.xlu0 %v977
    %v979 = vpop.xlane.xlu0 %978
    %v980 = vsel %vm218, %v972, -inf
    %981 = vmax.xlane.f32.xlu0 %v980
    %v982 = vpop.xlane.xlu0 %981
    %v983 = vsub.f32 %v922, %v979
    %v984 = vsub.f32 %v972, %v982
    %v985 = vmul.f32 %v983, 1.442695
    %v986 = vpow.pop %v985
    %v987 = vmul.f32 %v984, 1.442695
    %v988 = vpow.pop %v987
    %v989 = vsel %vm218, %v986, 0.0
    %990 = vadd.xlane.f32.xlu0 %v989
    %v991 = vpop.xlane.xlu0 %990
    %v992 = vsel %vm218, %v988, 0.0
    %993 = vadd.xlane.f32.xlu0 %v992
    %v994 = vpop.xlane.xlu0 %993
    %v995 = vrcp.pop %v991
    %v996 = vrcp.pop %v994
    %v997 = vmul.f32 %v986, %v995
    %v998 = vmul.f32 %v988, %v996
    %v999 = vpack.c.bf16 %v997, %v997
    %v1000 = vpack.c.bf16 %v998, %v998
    %1001 = vrot.lane.b32.xlu0 %v213, 40
    %v1002 = vpop.permute.xlu0 %1001
    %v1004 = vsel %vm218, %v999, 0
    %v1007 = vsel %vm343, %v1002, 0
    %1009 = vmatprep.subr.bf16.mxu0 0
    %1010 = vmatpush1.bf16.msra.mxu0 %v1007
    %1011 = vmatprep.subr.bf16.mxu0 0
    %1012 = vmatpush1.bf16.msra.mxu0 0
    %1013 = vmatprep.subr.bf16.mxu0 0
    %1014 = vmatpush1.bf16.msra.mxu0 0
    %1015 = vmatprep.subr.bf16.mxu0 0
    %1016 = vmatpush1.bf16.msra.mxu0 0
    %1017 = vmatprep.subr.bf16.mxu0 0
    %1018 = vmatpush1.bf16.msra.mxu0 0
    %1019 = vmatprep.subr.bf16.mxu0 0
    %1020 = vmatpush1.bf16.msra.mxu0 0
    %1021 = vmatprep.subr.bf16.mxu0 0
    %1022 = vmatpush1.bf16.msra.mxu0 0
    %1023 = vmatprep.subr.bf16.mxu0 0
    %1024 = vmatpush1.bf16.msra.mxu0 0
    %1025 = vmatprep.subr.bf16.mxu0 0
    %1026 = vmatpush1.bf16.msra.mxu0 0
    %1027 = vmatprep.subr.bf16.mxu0 0
    %1028 = vmatpush1.bf16.msra.mxu0 0
    %1029 = vmatprep.subr.bf16.mxu0 0
    %1030 = vmatpush1.bf16.msra.mxu0 0
    %1031 = vmatprep.subr.bf16.mxu0 0
    %1032 = vmatpush1.bf16.msra.mxu0 0
    %1033 = vmatprep.subr.bf16.mxu0 0
    %1034 = vmatpush1.bf16.msra.mxu0 0
    %1035 = vmatprep.subr.bf16.mxu0 0
    %1036 = vmatpush1.bf16.msra.mxu0 0
    %1037 = vmatprep.subr.bf16.mxu0 0
    %1038 = vmatpush1.bf16.msra.mxu0 0
    %1039 = vmatprep.subr.bf16.mxu0 0
    %1040 = vmatpush1.bf16.msra.mxu0 0
    %1041 = vmatprep.mubr.bf16.mxu0 0
    %1042 = vmatmul.mubr.bf16.gmra.mrb[0].mxu0 %v1004
    %v1043 = vpop.f32.mrb[0].mxu0
    %v1044 = vadd.f32 0.0, %v1043
    %v1045 = vpop.f32.mrb[0].mxu0
    %v1046 = vpop.f32.mrb[0].mxu0
    %v1047 = vpop.f32.mrb[0].mxu0
    %1048 = vdwg.mxu0
    %1049 = vrot.lane.b32.xlu0 %v214, 40
    %v1050 = vpop.permute.xlu0 %1049
    %v1052 = vsel %vm218, %v1000, 0
    %v1055 = vsel %vm343, %v1050, 0
    %1057 = vmatprep.subr.bf16.mxu0 0
    %1058 = vmatpush1.bf16.msra.mxu0 %v1055
    %1059 = vmatprep.subr.bf16.mxu0 0
    %1060 = vmatpush1.bf16.msra.mxu0 0
    %1061 = vmatprep.subr.bf16.mxu0 0
    %1062 = vmatpush1.bf16.msra.mxu0 0
    %1063 = vmatprep.subr.bf16.mxu0 0
    %1064 = vmatpush1.bf16.msra.mxu0 0
    %1065 = vmatprep.subr.bf16.mxu0 0
    %1066 = vmatpush1.bf16.msra.mxu0 0
    %1067 = vmatprep.subr.bf16.mxu0 0
    %1068 = vmatpush1.bf16.msra.mxu0 0
    %1069 = vmatprep.subr.bf16.mxu0 0
    %1070 = vmatpush1.bf16.msra.mxu0 0
    %1071 = vmatprep.subr.bf16.mxu0 0
    %1072 = vmatpush1.bf16.msra.mxu0 0
    %1073 = vmatprep.subr.bf16.mxu0 0
    %1074 = vmatpush1.bf16.msra.mxu0 0
    %1075 = vmatprep.subr.bf16.mxu0 0
    %1076 = vmatpush1.bf16.msra.mxu0 0
    %1077 = vmatprep.subr.bf16.mxu0 0
    %1078 = vmatpush1.bf16.msra.mxu0 0
    %1079 = vmatprep.subr.bf16.mxu0 0
    %1080 = vmatpush1.bf16.msra.mxu0 0
    %1081 = vmatprep.subr.bf16.mxu0 0
    %1082 = vmatpush1.bf16.msra.mxu0 0
    %1083 = vmatprep.subr.bf16.mxu0 0
    %1084 = vmatpush1.bf16.msra.mxu0 0
    %1085 = vmatprep.subr.bf16.mxu0 0
    %1086 = vmatpush1.bf16.msra.mxu0 0
    %1087 = vmatprep.subr.bf16.mxu0 0
    %1088 = vmatpush1.bf16.msra.mxu0 0
    %1089 = vmatprep.mubr.bf16.mxu0 0
    %1090 = vmatmul.mubr.bf16.gmra.mrb[0].mxu0 %v1052
    %v1091 = vpop.f32.mrb[0].mxu0
    %v1092 = vadd.f32 0.0, %v1091
    %v1093 = vpop.f32.mrb[0].mxu0
    %v1094 = vpop.f32.mrb[0].mxu0
    %v1095 = vpop.f32.mrb[0].mxu0
    %1096 = vdwg.mxu0
    %1099 = vrot.lane.b32.xlu0 %v604, 8
    %v1100 = vpop.permute.xlu0 %1099
    %1101 = vrot.lane.b32.xlu0 %v652, 8
    %v1102 = vpop.permute.xlu0 %1101
    %1107 = vrot.lane.b32.xlu0 %v824, 16
    %v1108 = vpop.permute.xlu0 %1107
    %1109 = vrot.lane.b32.xlu0 %v872, 16
    %v1110 = vpop.permute.xlu0 %1109
    %1115 = vrot.lane.b32.xlu0 %v1044, 24
    %v1116 = vpop.permute.xlu0 %1115
    %1117 = vrot.lane.b32.xlu0 %v1092, 24
    %v1118 = vpop.permute.xlu0 %1117
    %v1121 = vsel %vm218, %v382, %v1100
    %v1122 = vsel %vm218, %v430, %v1102
    %vm1123 = vcmask 130048
    %v1124 = vsel %vm1123, %v1121, %v1108
    %v1125 = vsel %vm1123, %v1122, %v1110
    %vm1126 = vcmask 195584
    %v1127 = vsel %vm1126, %v1124, %v1116
    %v1128 = vsel %vm1126, %v1125, %v1118
    %v1129 = vpack.c.bf16 %v1128, %v1127
    %v1130 = vld [vmem:[%s6] sm:$0xf]
    %v1131 = vld [vmem:[%s6 + $0x4] sm:$0xf]
    %v1132 = vld [vmem:[%s6 + $0x8] sm:$0xf]
    %v1133 = vld [vmem:[%s6 + $0xc] sm:$0xf]
    %v1134 = vld [vmem:[%s7] sm:$0x1]
    %v1136 = vlaneseq
    %v1137 = vshrl.u32 %v1136, 7
    %v1138 = vsub.s32 0, %v1137
    %v1139 = vrot.slane %v1134, %v1138
    %v1145 = vunpack.c.l.b16 %v1130
    %v1146 = vunpack.c.l.b16 %v1131
    %v1147 = vunpack.c.l.b16 %v1132
    %v1148 = vunpack.c.l.b16 %v1133
    %v1149 = vpack.c.b16 %v1146, %v1145
    %v1150 = vpack.c.b16 %v1148, %v1147
    %v1154 = vsel %vm59, %v1129, 0
    %1156 = vmatprep.subr.bf16.mxu0 0
    %1157 = vmatpush1.bf16.msra.mxu0 %v1149
    %1158 = vmatprep.subr.bf16.mxu0 0
    %1159 = vmatpush1.bf16.msra.mxu0 %v1150
    %1160 = vmatprep.subr.bf16.mxu0 0
    %1161 = vmatpush1.bf16.msra.mxu0 0
    %1162 = vmatprep.subr.bf16.mxu0 0
    %1163 = vmatpush1.bf16.msra.mxu0 0
    %1164 = vmatprep.subr.bf16.mxu0 0
    %1165 = vmatpush1.bf16.msra.mxu0 0
    %1166 = vmatprep.subr.bf16.mxu0 0
    %1167 = vmatpush1.bf16.msra.mxu0 0
    %1168 = vmatprep.subr.bf16.mxu0 0
    %1169 = vmatpush1.bf16.msra.mxu0 0
    %1170 = vmatprep.subr.bf16.mxu0 0
    %1171 = vmatpush1.bf16.msra.mxu0 0
    %1172 = vmatprep.subr.bf16.mxu0 0
    %1173 = vmatpush1.bf16.msra.mxu0 0
    %1174 = vmatprep.subr.bf16.mxu0 0
    %1175 = vmatpush1.bf16.msra.mxu0 0
    %1176 = vmatprep.subr.bf16.mxu0 0
    %1177 = vmatpush1.bf16.msra.mxu0 0
    %1178 = vmatprep.subr.bf16.mxu0 0
    %1179 = vmatpush1.bf16.msra.mxu0 0
    %1180 = vmatprep.subr.bf16.mxu0 0
    %1181 = vmatpush1.bf16.msra.mxu0 0
    %1182 = vmatprep.subr.bf16.mxu0 0
    %1183 = vmatpush1.bf16.msra.mxu0 0
    %1184 = vmatprep.subr.bf16.mxu0 0
    %1185 = vmatpush1.bf16.msra.mxu0 0
    %1186 = vmatprep.subr.bf16.mxu0 0
    %1187 = vmatpush1.bf16.msra.mxu0 0
    %1188 = vmatprep.mubr.bf16.mxu0 0
    %1189 = vmatmul.mubr.bf16.gmra.mrb[0].mxu0 %v1154
    %v1190 = vpop.f32.mrb[0].mxu0
    %v1191 = vadd.f32 %v1139, %v1190
    %v1192 = vpop.f32.mrb[0].mxu0
    %v1193 = vpop.f32.mrb[0].mxu0
    %v1194 = vadd.f32 %v1139, %v1193
    %v1195 = vpop.f32.mrb[0].mxu0
    %1196 = vdwg.mxu0
    %v1197 = vadd.f32 %v1191, %v101
    %v1198 = vadd.f32 %v1194, %v102
    %v1199 = vld [vmem:[%s8] sm:$0x1]
    %v1200 = vld [vmem:[%s9] sm:$0x1]
    %v1201 = vsel %vm59, %v1197, 0.0
    %1202 = vadd.xlane.f32.xlu0 %v1201
    %v1203 = vpop.xlane.xlu0 %1202
    %v1204 = vsel %vm59, %v1198, 0.0
    %1205 = vadd.xlane.f32.xlu0 %v1204
    %v1206 = vpop.xlane.xlu0 %1205
    %v1207 = vmul.f32 %v1203, %v66
    %v1208 = vmul.f32 %v1206, %v66
    %v1209 = vsub.f32 %v1197, %v1207
    %v1210 = vsub.f32 %v1198, %v1208
    %v1211 = vmul.f32 %v1209, %v1209
    %v1212 = vmul.f32 %v1210, %v1210
    %v1213 = vsel %vm59, %v1211, 0.0
    %1214 = vadd.xlane.f32.xlu0 %v1213
    %v1215 = vpop.xlane.xlu0 %1214
    %v1216 = vsel %vm59, %v1212, 0.0
    %1217 = vadd.xlane.f32.xlu0 %v1216
    %v1218 = vpop.xlane.xlu0 %1217
    %v1219 = vmul.f32 %v1215, %v66
    %v1220 = vmul.f32 %v1218, %v66
    %v1221 = vadd.f32 %v1219, 1e-12
    %v1222 = vadd.f32 %v1220, 1e-12
    %v1223 = vrsqrt.pop %v1221
    %v1224 = vrsqrt.pop %v1222
    %v1225 = vmul.f32 %v1209, %v1223
    %v1226 = vmul.f32 %v1210, %v1224
    %v1228 = vlaneseq
    %v1229 = vshrl.u32 %v1228, 7
    %v1230 = vsub.s32 0, %v1229
    %v1231 = vrot.slane %v1199, %v1230
    %v1233 = vmul.f32 %v1225, %v1231
    %v1234 = vmul.f32 %v1226, %v1231
    %v1236 = vlaneseq
    %v1237 = vshrl.u32 %v1236, 7
    %v1238 = vsub.s32 0, %v1237
    %v1239 = vrot.slane %v1200, %v1238
    %v1241 = vadd.f32 %v1233, %v1239
    %v1242 = vadd.f32 %v1234, %v1239
    %v1243 = vpack.c.bf16 %v1242, %v1241
    %v1244 = vld [vmem:[%s10] sm:$0xf]
    %v1245 = vld [vmem:[%s10 + $0x4] sm:$0xf]
    %v1246 = vld [vmem:[%s10 + $0x8] sm:$0xf]
    %v1247 = vld [vmem:[%s10 + $0xc] sm:$0xf]
    %v1248 = vld [vmem:[%s11] sm:$0x1]
    %v1250 = vlaneseq
    %v1251 = vshrl.u32 %v1250, 7
    %v1252 = vsub.s32 0, %v1251
    %v1253 = vrot.slane %v1248, %v1252
    %v1259 = vunpack.c.l.b16 %v1244
    %v1260 = vunpack.c.l.b16 %v1245
    %v1261 = vunpack.c.l.b16 %v1246
    %v1262 = vunpack.c.l.b16 %v1247
    %v1263 = vpack.c.b16 %v1260, %v1259
    %v1264 = vpack.c.b16 %v1262, %v1261
    %v1268 = vsel %vm59, %v1243, 0
    %1270 = vmatprep.subr.bf16.mxu0 0
    %1271 = vmatpush1.bf16.msra.mxu0 %v1263
    %1272 = vmatprep.subr.bf16.mxu0 0
    %1273 = vmatpush1.bf16.msra.mxu0 %v1264
    %1274 = vmatprep.subr.bf16.mxu0 0
    %1275 = vmatpush1.bf16.msra.mxu0 0
    %1276 = vmatprep.subr.bf16.mxu0 0
    %1277 = vmatpush1.bf16.msra.mxu0 0
    %1278 = vmatprep.subr.bf16.mxu0 0
    %1279 = vmatpush1.bf16.msra.mxu0 0
    %1280 = vmatprep.subr.bf16.mxu0 0
    %1281 = vmatpush1.bf16.msra.mxu0 0
    %1282 = vmatprep.subr.bf16.mxu0 0
    %1283 = vmatpush1.bf16.msra.mxu0 0
    %1284 = vmatprep.subr.bf16.mxu0 0
    %1285 = vmatpush1.bf16.msra.mxu0 0
    %1286 = vmatprep.subr.bf16.mxu0 0
    %1287 = vmatpush1.bf16.msra.mxu0 0
    %1288 = vmatprep.subr.bf16.mxu0 0
    %1289 = vmatpush1.bf16.msra.mxu0 0
    %1290 = vmatprep.subr.bf16.mxu0 0
    %1291 = vmatpush1.bf16.msra.mxu0 0
    %1292 = vmatprep.subr.bf16.mxu0 0
    %1293 = vmatpush1.bf16.msra.mxu0 0
    %1294 = vmatprep.subr.bf16.mxu0 0
    %1295 = vmatpush1.bf16.msra.mxu0 0
    %1296 = vmatprep.subr.bf16.mxu0 0
    %1297 = vmatpush1.bf16.msra.mxu0 0
    %1298 = vmatprep.subr.bf16.mxu0 0
    %1299 = vmatpush1.bf16.msra.mxu0 0
    %1300 = vmatprep.subr.bf16.mxu0 0
    %1301 = vmatpush1.bf16.msra.mxu0 0
    %1302 = vmatprep.mubr.bf16.mxu0 0
    %1303 = vmatmul.mubr.bf16.gmra.mrb[0].mxu0 %v1268
    %v1304 = vpop.f32.mrb[0].mxu0
    %v1305 = vadd.f32 %v1253, %v1304
    %v1306 = vpop.f32.mrb[0].mxu0
    %v1307 = vpop.f32.mrb[0].mxu0
    %v1308 = vadd.f32 %v1253, %v1307
    %v1309 = vpop.f32.mrb[0].mxu0
    %1310 = vdwg.mxu0
    %v1311 = vmul.f32 %v1305, 0.5
    %v1312 = vmul.f32 %v1308, 0.5
    %v1313 = vmul.f32 %v1305, 0.044715
    %v1314 = vmul.f32 %v1308, 0.044715
    %v1315 = vmul.f32 %v1313, %v1305
    %v1316 = vmul.f32 %v1314, %v1308
    %v1317 = vmul.f32 %v1315, %v1305
    %v1318 = vmul.f32 %v1316, %v1308
    %v1319 = vadd.f32 %v1305, %v1317
    %v1320 = vadd.f32 %v1308, %v1318
    %v1321 = vmul.f32 %v1319, 0.7978846
    %v1322 = vmul.f32 %v1320, 0.7978846
    %v1323 = vtanh.pop %v1321
    %v1324 = vtanh.pop %v1322
    %v1325 = vadd.f32 %v1323, 1.0
    %v1326 = vadd.f32 %v1324, 1.0
    %v1327 = vmul.f32 %v1311, %v1325
    %v1328 = vmul.f32 %v1312, %v1326
    %v1329 = vpack.c.bf16 %v1328, %v1327
    %v1330 = vld [vmem:[%s12] sm:$0xf]
    %v1331 = vld [vmem:[%s12 + $0x4] sm:$0xf]
    %v1332 = vld [vmem:[%s12 + $0x8] sm:$0xf]
    %v1333 = vld [vmem:[%s12 + $0xc] sm:$0xf]
    %v1334 = vld [vmem:[%s12 + $0x10] sm:$0xf]
    %v1335 = vld [vmem:[%s12 + $0x14] sm:$0xf]
    %v1336 = vld [vmem:[%s12 + $0x18] sm:$0xf]
    %v1337 = vld [vmem:[%s12 + $0x1c] sm:$0xf]
    %v1338 = vld [vmem:[%s13] sm:$0x1]
    %v1340 = vlaneseq
    %v1341 = vshrl.u32 %v1340, 7
    %v1342 = vsub.s32 0, %v1341
    %v1343 = vrot.slane %v1338, %v1342
    %v1353 = vunpack.c.l.b16 %v1330
    %v1354 = vunpack.c.l.b16 %v1331
    %v1355 = vunpack.c.l.b16 %v1332
    %v1356 = vunpack.c.l.b16 %v1333
    %v1357 = vunpack.c.l.b16 %v1334
    %v1358 = vunpack.c.l.b16 %v1335
    %v1359 = vunpack.c.l.b16 %v1336
    %v1360 = vunpack.c.l.b16 %v1337
    %v1361 = vpack.c.b16 %v1354, %v1353
    %v1362 = vpack.c.b16 %v1356, %v1355
    %v1363 = vpack.c.b16 %v1358, %v1357
    %v1364 = vpack.c.b16 %v1360, %v1359
    %vm1369 = vcmask 523264
    %v1371 = vsel %vm1369, %v1329, 0
    %1373 = vmatprep.subr.bf16.mxu0 0
    %1374 = vmatpush1.bf16.msra.mxu0 %v1361
    %1375 = vmatprep.subr.bf16.mxu0 0
    %1376 = vmatpush1.bf16.msra.mxu0 %v1362
    %1377 = vmatprep.subr.bf16.mxu0 0
    %1378 = vmatpush1.bf16.msra.mxu0 %v1363
    %1379 = vmatprep.subr.bf16.mxu0 0
    %1380 = vmatpush1.bf16.msra.mxu0 %v1364
    %1381 = vmatprep.subr.bf16.mxu0 0
    %1382 = vmatpush1.bf16.msra.mxu0 0
    %1383 = vmatprep.subr.bf16.mxu0 0
    %1384 = vmatpush1.bf16.msra.mxu0 0
    %1385 = vmatprep.subr.bf16.mxu0 0
    %1386 = vmatpush1.bf16.msra.mxu0 0
    %1387 = vmatprep.subr.bf16.mxu0 0
    %1388 = vmatpush1.bf16.msra.mxu0 0
    %1389 = vmatprep.subr.bf16.mxu0 0
    %1390 = vmatpush1.bf16.msra.mxu0 0
    %1391 = vmatprep.subr.bf16.mxu0 0
    %1392 = vmatpush1.bf16.msra.mxu0 0
    %1393 = vmatprep.subr.bf16.mxu0 0
    %1394 = vmatpush1.bf16.msra.mxu0 0
    %1395 = vmatprep.subr.bf16.mxu0 0
    %1396 = vmatpush1.bf16.msra.mxu0 0
    %1397 = vmatprep.subr.bf16.mxu0 0
    %1398 = vmatpush1.bf16.msra.mxu0 0
    %1399 = vmatprep.subr.bf16.mxu0 0
    %1400 = vmatpush1.bf16.msra.mxu0 0
    %1401 = vmatprep.subr.bf16.mxu0 0
    %1402 = vmatpush1.bf16.msra.mxu0 0
    %1403 = vmatprep.subr.bf16.mxu0 0
    %1404 = vmatpush1.bf16.msra.mxu0 0
    %1405 = vmatprep.mubr.bf16.mxu0 0
    %1406 = vmatmul.mubr.bf16.gmra.mrb[0].mxu0 %v1371
    %v1407 = vpop.f32.mrb[0].mxu0
    %v1408 = vadd.f32 %v1343, %v1407
    %v1409 = vpop.f32.mrb[0].mxu0
    %v1410 = vpop.f32.mrb[0].mxu0
    %v1411 = vadd.f32 %v1343, %v1410
    %v1412 = vpop.f32.mrb[0].mxu0
    %1413 = vdwg.mxu0
    %v1414 = vadd.f32 %v1408, %v1241
    %v1415 = vadd.f32 %v1411, %v1242
    %v1416 = vld [vmem:[%s14] sm:$0x1]
    %v1417 = vld [vmem:[%s15] sm:$0x1]
    %v1418 = vsel %vm59, %v1414, 0.0
    %1419 = vadd.xlane.f32.xlu0 %v1418
    %v1420 = vpop.xlane.xlu0 %1419
    %v1421 = vsel %vm59, %v1415, 0.0
    %1422 = vadd.xlane.f32.xlu0 %v1421
    %v1423 = vpop.xlane.xlu0 %1422
    %v1424 = vmul.f32 %v1420, %v66
    %v1425 = vmul.f32 %v1423, %v66
    %v1426 = vsub.f32 %v1414, %v1424
    %v1427 = vsub.f32 %v1415, %v1425
    %v1428 = vmul.f32 %v1426, %v1426
    %v1429 = vmul.f32 %v1427, %v1427
    %v1430 = vsel %vm59, %v1428, 0.0
    %1431 = vadd.xlane.f32.xlu0 %v1430
    %v1432 = vpop.xlane.xlu0 %1431
    %v1433 = vsel %vm59, %v1429, 0.0
    %1434 = vadd.xlane.f32.xlu0 %v1433
    %v1435 = vpop.xlane.xlu0 %1434
    %v1436 = vmul.f32 %v1432, %v66
    %v1437 = vmul.f32 %v1435, %v66
    %v1438 = vadd.f32 %v1436, 1e-12
    %v1439 = vadd.f32 %v1437, 1e-12
    %v1440 = vrsqrt.pop %v1438
    %v1441 = vrsqrt.pop %v1439
    %v1442 = vmul.f32 %v1426, %v1440
    %v1443 = vmul.f32 %v1427, %v1441
    %v1445 = vlaneseq
    %v1446 = vshrl.u32 %v1445, 7
    %v1447 = vsub.s32 0, %v1446
    %v1448 = vrot.slane %v1416, %v1447
    %v1450 = vmul.f32 %v1442, %v1448
    %v1451 = vmul.f32 %v1443, %v1448
    %v1453 = vlaneseq
    %v1454 = vshrl.u32 %v1453, 7
    %v1455 = vsub.s32 0, %v1454
    %v1456 = vrot.slane %v1417, %v1455
    %v1458 = vadd.f32 %v1450, %v1456
    %v1459 = vadd.f32 %v1451, %v1456
    %v1460 = vpack.c.bf16 %v1459, %v1458
    %s1461 = scalar_lea.vmem %s4, 16
    %v1462 = vld [vmem:[%s1461] sm:$0xf]
    %v1463 = vld [vmem:[%s1461 + $0x4] sm:$0xf]
    %v1464 = vld [vmem:[%s1461 + $0x8] sm:$0xf]
    %v1465 = vld [vmem:[%s1461 + $0xc] sm:$0xf]
    %s1466 = scalar_lea.vmem %s5, 1
    %v1467 = vld [vmem:[%s1466] sm:$0x1]
    %v1469 = vlaneseq
    %v1470 = vshrl.u32 %v1469, 7
    %v1471 = vsub.s32 0, %v1470
    %v1472 = vrot.slane %v1467, %v1471
    %v1478 = vunpack.c.l.b16 %v1462
    %v1479 = vunpack.c.l.b16 %v1463
    %v1480 = vunpack.c.l.b16 %v1464
    %v1481 = vunpack.c.l.b16 %v1465
    %v1482 = vpack.c.b16 %v1479, %v1478
    %v1483 = vpack.c.b16 %v1481, %v1480
    %v1487 = vsel %vm59, %v1460, 0
    %1489 = vmatprep.subr.bf16.mxu0 0
    %1490 = vmatpush1.bf16.msra.mxu0 %v1482
    %1491 = vmatprep.subr.bf16.mxu0 0
    %1492 = vmatpush1.bf16.msra.mxu0 %v1483
    %1493 = vmatprep.subr.bf16.mxu0 0
    %1494 = vmatpush1.bf16.msra.mxu0 0
    %1495 = vmatprep.subr.bf16.mxu0 0
    %1496 = vmatpush1.bf16.msra.mxu0 0
    %1497 = vmatprep.subr.bf16.mxu0 0
    %1498 = vmatpush1.bf16.msra.mxu0 0
    %1499 = vmatprep.subr.bf16.mxu0 0
    %1500 = vmatpush1.bf16.msra.mxu0 0
    %1501 = vmatprep.subr.bf16.mxu0 0
    %1502 = vmatpush1.bf16.msra.mxu0 0
    %1503 = vmatprep.subr.bf16.mxu0 0
    %1504 = vmatpush1.bf16.msra.mxu0 0
    %1505 = vmatprep.subr.bf16.mxu0 0
    %1506 = vmatpush1.bf16.msra.mxu0 0
    %1507 = vmatprep.subr.bf16.mxu0 0
    %1508 = vmatpush1.bf16.msra.mxu0 0
    %1509 = vmatprep.subr.bf16.mxu0 0
    %1510 = vmatpush1.bf16.msra.mxu0 0
    %1511 = vmatprep.subr.bf16.mxu0 0
    %1512 = vmatpush1.bf16.msra.mxu0 0
    %1513 = vmatprep.subr.bf16.mxu0 0
    %1514 = vmatpush1.bf16.msra.mxu0 0
    %1515 = vmatprep.subr.bf16.mxu0 0
    %1516 = vmatpush1.bf16.msra.mxu0 0
    %1517 = vmatprep.subr.bf16.mxu0 0
    %1518 = vmatpush1.bf16.msra.mxu0 0
    %1519 = vmatprep.subr.bf16.mxu0 0
    %1520 = vmatpush1.bf16.msra.mxu0 0
    %1521 = vmatprep.mubr.bf16.mxu0 0
    %1522 = vmatmul.mubr.bf16.gmra.mrb[0].mxu0 %v1487
    %v1523 = vpop.f32.mrb[0].mxu0
    %v1524 = vadd.f32 %v1472, %v1523
    %v1525 = vpop.f32.mrb[0].mxu0
    %v1526 = vpop.f32.mrb[0].mxu0
    %v1527 = vadd.f32 %v1472, %v1526
    %v1528 = vpop.f32.mrb[0].mxu0
    %1529 = vdwg.mxu0
    %v1530 = vmul.f32 %v1524, 0.35355338
    %v1531 = vmul.f32 %v1527, 0.35355338
    %v1532 = vpack.c.bf16 %v1530, %v1530
    %v1533 = vpack.c.bf16 %v1531, %v1531
    %v1534 = vpack.c.bf16 %v1524, %v1524
    %v1535 = vpack.c.bf16 %v1527, %v1527
    %1537 = vrot.lane.b32.xlu0 %v1534, 96
    %v1538 = vpop.permute.xlu0 %1537
    %v1540 = vsel %vm218, %v1532, 0
    %v1543 = vsel %vm218, %v1538, 0
    %1545 = vmatprep.subr.bf16.mxu0 0
    %1546 = vmatpush1.bf16.xpose.msra.mxu0 %v1543
    %1547 = vmatprep.subr.bf16.mxu0 0
    %1548 = vmatpush1.bf16.xpose.msra.mxu0 0
    %1549 = vmatprep.subr.bf16.mxu0 0
    %1550 = vmatpush1.bf16.xpose.msra.mxu0 0
    %1551 = vmatprep.subr.bf16.mxu0 0
    %1552 = vmatpush1.bf16.xpose.msra.mxu0 0
    %1553 = vmatprep.subr.bf16.mxu0 0
    %1554 = vmatpush1.bf16.xpose.msra.mxu0 0
    %1555 = vmatprep.subr.bf16.mxu0 0
    %1556 = vmatpush1.bf16.xpose.msra.mxu0 0
    %1557 = vmatprep.subr.bf16.mxu0 0
    %1558 = vmatpush1.bf16.xpose.msra.mxu0 0
    %1559 = vmatprep.subr.bf16.mxu0 0
    %1560 = vmatpush1.bf16.xpose.msra.mxu0 0
    %1561 = vmatprep.subr.bf16.mxu0 0
    %1562 = vmatpush1.bf16.xpose.msra.mxu0 0
    %1563 = vmatprep.subr.bf16.mxu0 0
    %1564 = vmatpush1.bf16.xpose.msra.mxu0 0
    %1565 = vmatprep.subr.bf16.mxu0 0
    %1566 = vmatpush1.bf16.xpose.msra.mxu0 0
    %1567 = vmatprep.subr.bf16.mxu0 0
    %1568 = vmatpush1.bf16.xpose.msra.mxu0 0
    %1569 = vmatprep.subr.bf16.mxu0 0
    %1570 = vmatpush1.bf16.xpose.msra.mxu0 0
    %1571 = vmatprep.subr.bf16.mxu0 0
    %1572 = vmatpush1.bf16.xpose.msra.mxu0 0
    %1573 = vmatprep.subr.bf16.mxu0 0
    %1574 = vmatpush1.bf16.xpose.msra.mxu0 0
    %1575 = vmatprep.subr.bf16.mxu0 0
    %1576 = vmatpush1.bf16.xpose.msra.mxu0 0
    %1577 = vmatprep.mubr.bf16.mxu0 0
    %1578 = vmatmul.mubr.bf16.gmra.mrb[0].mxu0 %v1540
    %v1579 = vpop.f32.mrb[0].mxu0
    %v1580 = vadd.f32 %v121, %v1579
    %v1581 = vpop.f32.mrb[0].mxu0
    %v1582 = vpop.f32.mrb[0].mxu0
    %v1583 = vpop.f32.mrb[0].mxu0
    %1584 = vdwg.mxu0
    %1586 = vrot.lane.b32.xlu0 %v1535, 96
    %v1587 = vpop.permute.xlu0 %1586
    %v1589 = vsel %vm218, %v1533, 0
    %v1592 = vsel %vm218, %v1587, 0
    %1594 = vmatprep.subr.bf16.mxu0 0
    %1595 = vmatpush1.bf16.xpose.msra.mxu0 %v1592
    %1596 = vmatprep.subr.bf16.mxu0 0
    %1597 = vmatpush1.bf16.xpose.msra.mxu0 0
    %1598 = vmatprep.subr.bf16.mxu0 0
    %1599 = vmatpush1.bf16.xpose.msra.mxu0 0
    %1600 = vmatprep.subr.bf16.mxu0 0
    %1601 = vmatpush1.bf16.xpose.msra.mxu0 0
    %1602 = vmatprep.subr.bf16.mxu0 0
    %1603 = vmatpush1.bf16.xpose.msra.mxu0 0
    %1604 = vmatprep.subr.bf16.mxu0 0
    %1605 = vmatpush1.bf16.xpose.msra.mxu0 0
    %1606 = vmatprep.subr.bf16.mxu0 0
    %1607 = vmatpush1.bf16.xpose.msra.mxu0 0
    %1608 = vmatprep.subr.bf16.mxu0 0
    %1609 = vmatpush1.bf16.xpose.msra.mxu0 0
    %1610 = vmatprep.subr.bf16.mxu0 0
    %1611 = vmatpush1.bf16.xpose.msra.mxu0 0
    %1612 = vmatprep.subr.bf16.mxu0 0
    %1613 = vmatpush1.bf16.xpose.msra.mxu0 0
    %1614 = vmatprep.subr.bf16.mxu0 0
    %1615 = vmatpush1.bf16.xpose.msra.mxu0 0
    %1616 = vmatprep.subr.bf16.mxu0 0
    %1617 = vmatpush1.bf16.xpose.msra.mxu0 0
    %1618 = vmatprep.subr.bf16.mxu0 0
    %1619 = vmatpush1.bf16.xpose.msra.mxu0 0
    %1620 = vmatprep.subr.bf16.mxu0 0
    %1621 = vmatpush1.bf16.xpose.msra.mxu0 0
    %1622 = vmatprep.subr.bf16.mxu0 0
    %1623 = vmatpush1.bf16.xpose.msra.mxu0 0
    %1624 = vmatprep.subr.bf16.mxu0 0
    %1625 = vmatpush1.bf16.xpose.msra.mxu0 0
    %1626 = vmatprep.mubr.bf16.mxu0 0
    %1627 = vmatmul.mubr.bf16.gmra.mrb[0].mxu0 %v1589
    %v1628 = vpop.f32.mrb[0].mxu0
    %v1629 = vadd.f32 %v128, %v1628
    %v1630 = vpop.f32.mrb[0].mxu0
    %v1631 = vpop.f32.mrb[0].mxu0
    %v1632 = vpop.f32.mrb[0].mxu0
    %1633 = vdwg.mxu0
    %vm1634 = vcmask 57344
    %v1635 = vsel %vm1634, %v1580, -inf
    %1636 = vmax.xlane.f32.xlu0 %v1635
    %v1637 = vpop.xlane.xlu0 %1636
    %v1638 = vsel %vm1634, %v1629, -inf
    %1639 = vmax.xlane.f32.xlu0 %v1638
    %v1640 = vpop.xlane.xlu0 %1639
    %v1641 = vsub.f32 %v1580, %v1637
    %v1642 = vsub.f32 %v1629, %v1640
    %v1643 = vmul.f32 %v1641, 1.442695
    %v1644 = vpow.pop %v1643
    %v1645 = vmul.f32 %v1642, 1.442695
    %v1646 = vpow.pop %v1645
    %v1647 = vsel %vm1634, %v1644, 0.0
    %1648 = vadd.xlane.f32.xlu0 %v1647
    %v1649 = vpop.xlane.xlu0 %1648
    %v1650 = vsel %vm1634, %v1646, 0.0
    %1651 = vadd.xlane.f32.xlu0 %v1650
    %v1652 = vpop.xlane.xlu0 %1651
    %v1653 = vrcp.pop %v1649
    %v1654 = vrcp.pop %v1652
    %v1655 = vmul.f32 %v1644, %v1653
    %v1656 = vmul.f32 %v1646, %v1654
    %v1657 = vpack.c.bf16 %v1655, %v1655
    %v1658 = vpack.c.bf16 %v1656, %v1656
    %1659 = vrot.lane.b32.xlu0 %v1534, 64
    %v1660 = vpop.permute.xlu0 %1659
    %v1662 = vsel %vm218, %v1657, 0
    %v1665 = vsel %vm343, %v1660, 0
    %1667 = vmatprep.subr.bf16.mxu0 0
    %1668 = vmatpush1.bf16.msra.mxu0 %v1665
    %1669 = vmatprep.subr.bf16.mxu0 0
    %1670 = vmatpush1.bf16.msra.mxu0 0
    %1671 = vmatprep.subr.bf16.mxu0 0
    %1672 = vmatpush1.bf16.msra.mxu0 0
    %1673 = vmatprep.subr.bf16.mxu0 0
    %1674 = vmatpush1.bf16.msra.mxu0 0
    %1675 = vmatprep.subr.bf16.mxu0 0
    %1676 = vmatpush1.bf16.msra.mxu0 0
    %1677 = vmatprep.subr.bf16.mxu0 0
    %1678 = vmatpush1.bf16.msra.mxu0 0
    %1679 = vmatprep.subr.bf16.mxu0 0
    %1680 = vmatpush1.bf16.msra.mxu0 0
    %1681 = vmatprep.subr.bf16.mxu0 0
    %1682 = vmatpush1.bf16.msra.mxu0 0
    %1683 = vmatprep.subr.bf16.mxu0 0
    %1684 = vmatpush1.bf16.msra.mxu0 0
    %1685 = vmatprep.subr.bf16.mxu0 0
    %1686 = vmatpush1.bf16.msra.mxu0 0
    %1687 = vmatprep.subr.bf16.mxu0 0
    %1688 = vmatpush1.bf16.msra.mxu0 0
    %1689 = vmatprep.subr.bf16.mxu0 0
    %1690 = vmatpush1.bf16.msra.mxu0 0
    %1691 = vmatprep.subr.bf16.mxu0 0
    %1692 = vmatpush1.bf16.msra.mxu0 0
    %1693 = vmatprep.subr.bf16.mxu0 0
    %1694 = vmatpush1.bf16.msra.mxu0 0
    %1695 = vmatprep.subr.bf16.mxu0 0
    %1696 = vmatpush1.bf16.msra.mxu0 0
    %1697 = vmatprep.subr.bf16.mxu0 0
    %1698 = vmatpush1.bf16.msra.mxu0 0
    %1699 = vmatprep.mubr.bf16.mxu0 0
    %1700 = vmatmul.mubr.bf16.gmra.mrb[0].mxu0 %v1662
    %v1701 = vpop.f32.mrb[0].mxu0
    %v1702 = vadd.f32 0.0, %v1701
    %v1703 = vpop.f32.mrb[0].mxu0
    %v1704 = vpop.f32.mrb[0].mxu0
    %v1705 = vpop.f32.mrb[0].mxu0
    %1706 = vdwg.mxu0
    %1707 = vrot.lane.b32.xlu0 %v1535, 64
    %v1708 = vpop.permute.xlu0 %1707
    %v1710 = vsel %vm218, %v1658, 0
    %v1713 = vsel %vm343, %v1708, 0
    %1715 = vmatprep.subr.bf16.mxu0 0
    %1716 = vmatpush1.bf16.msra.mxu0 %v1713
    %1717 = vmatprep.subr.bf16.mxu0 0
    %1718 = vmatpush1.bf16.msra.mxu0 0
    %1719 = vmatprep.subr.bf16.mxu0 0
    %1720 = vmatpush1.bf16.msra.mxu0 0
    %1721 = vmatprep.subr.bf16.mxu0 0
    %1722 = vmatpush1.bf16.msra.mxu0 0
    %1723 = vmatprep.subr.bf16.mxu0 0
    %1724 = vmatpush1.bf16.msra.mxu0 0
    %1725 = vmatprep.subr.bf16.mxu0 0
    %1726 = vmatpush1.bf16.msra.mxu0 0
    %1727 = vmatprep.subr.bf16.mxu0 0
    %1728 = vmatpush1.bf16.msra.mxu0 0
    %1729 = vmatprep.subr.bf16.mxu0 0
    %1730 = vmatpush1.bf16.msra.mxu0 0
    %1731 = vmatprep.subr.bf16.mxu0 0
    %1732 = vmatpush1.bf16.msra.mxu0 0
    %1733 = vmatprep.subr.bf16.mxu0 0
    %1734 = vmatpush1.bf16.msra.mxu0 0
    %1735 = vmatprep.subr.bf16.mxu0 0
    %1736 = vmatpush1.bf16.msra.mxu0 0
    %1737 = vmatprep.subr.bf16.mxu0 0
    %1738 = vmatpush1.bf16.msra.mxu0 0
    %1739 = vmatprep.subr.bf16.mxu0 0
    %1740 = vmatpush1.bf16.msra.mxu0 0
    %1741 = vmatprep.subr.bf16.mxu0 0
    %1742 = vmatpush1.bf16.msra.mxu0 0
    %1743 = vmatprep.subr.bf16.mxu0 0
    %1744 = vmatpush1.bf16.msra.mxu0 0
    %1745 = vmatprep.subr.bf16.mxu0 0
    %1746 = vmatpush1.bf16.msra.mxu0 0
    %1747 = vmatprep.mubr.bf16.mxu0 0
    %1748 = vmatmul.mubr.bf16.gmra.mrb[0].mxu0 %v1710
    %v1749 = vpop.f32.mrb[0].mxu0
    %v1750 = vadd.f32 0.0, %v1749
    %v1751 = vpop.f32.mrb[0].mxu0
    %v1752 = vpop.f32.mrb[0].mxu0
    %v1753 = vpop.f32.mrb[0].mxu0
    %1754 = vdwg.mxu0
    %1756 = vrot.lane.b32.xlu0 %v1532, 120
    %v1757 = vpop.permute.xlu0 %1756
    %1758 = vrot.lane.b32.xlu0 %v1534, 88
    %v1759 = vpop.permute.xlu0 %1758
    %v1761 = vsel %vm218, %v1757, 0
    %v1764 = vsel %vm218, %v1759, 0
    %1766 = vmatprep.subr.bf16.mxu0 0
    %1767 = vmatpush1.bf16.xpose.msra.mxu0 %v1764
    %1768 = vmatprep.subr.bf16.mxu0 0
    %1769 = vmatpush1.bf16.xpose.msra.mxu0 0
    %1770 = vmatprep.subr.bf16.mxu0 0
    %1771 = vmatpush1.bf16.xpose.msra.mxu0 0
    %1772 = vmatprep.subr.bf16.mxu0 0
    %1773 = vmatpush1.bf16.xpose.msra.mxu0 0
    %1774 = vmatprep.subr.bf16.mxu0 0
    %1775 = vmatpush1.bf16.xpose.msra.mxu0 0
    %1776 = vmatprep.subr.bf16.mxu0 0
    %1777 = vmatpush1.bf16.xpose.msra.mxu0 0
    %1778 = vmatprep.subr.bf16.mxu0 0
    %1779 = vmatpush1.bf16.xpose.msra.mxu0 0
    %1780 = vmatprep.subr.bf16.mxu0 0
    %1781 = vmatpush1.bf16.xpose.msra.mxu0 0
    %1782 = vmatprep.subr.bf16.mxu0 0
    %1783 = vmatpush1.bf16.xpose.msra.mxu0 0
    %1784 = vmatprep.subr.bf16.mxu0 0
    %1785 = vmatpush1.bf16.xpose.msra.mxu0 0
    %1786 = vmatprep.subr.bf16.mxu0 0
    %1787 = vmatpush1.bf16.xpose.msra.mxu0 0
    %1788 = vmatprep.subr.bf16.mxu0 0
    %1789 = vmatpush1.bf16.xpose.msra.mxu0 0
    %1790 = vmatprep.subr.bf16.mxu0 0
    %1791 = vmatpush1.bf16.xpose.msra.mxu0 0
    %1792 = vmatprep.subr.bf16.mxu0 0
    %1793 = vmatpush1.bf16.xpose.msra.mxu0 0
    %1794 = vmatprep.subr.bf16.mxu0 0
    %1795 = vmatpush1.bf16.xpose.msra.mxu0 0
    %1796 = vmatprep.subr.bf16.mxu0 0
    %1797 = vmatpush1.bf16.xpose.msra.mxu0 0
    %1798 = vmatprep.mubr.bf16.mxu0 0
    %1799 = vmatmul.mubr.bf16.gmra.mrb[0].mxu0 %v1761
    %v1800 = vpop.f32.mrb[0].mxu0
    %v1801 = vadd.f32 %v121, %v1800
    %v1802 = vpop.f32.mrb[0].mxu0
    %v1803 = vpop.f32.mrb[0].mxu0
    %v1804 = vpop.f32.mrb[0].mxu0
    %1805 = vdwg.mxu0
    %1807 = vrot.lane.b32.xlu0 %v1533, 120
    %v1808 = vpop.permute.xlu0 %1807
    %1809 = vrot.lane.b32.xlu0 %v1535, 88
    %v1810 = vpop.permute.xlu0 %1809
    %v1812 = vsel %vm218, %v1808, 0
    %v1815 = vsel %vm218, %v1810, 0
    %1817 = vmatprep.subr.bf16.mxu0 0
    %1818 = vmatpush1.bf16.xpose.msra.mxu0 %v1815
    %1819 = vmatprep.subr.bf16.mxu0 0
    %1820 = vmatpush1.bf16.xpose.msra.mxu0 0
    %1821 = vmatprep.subr.bf16.mxu0 0
    %1822 = vmatpush1.bf16.xpose.msra.mxu0 0
    %1823 = vmatprep.subr.bf16.mxu0 0
    %1824 = vmatpush1.bf16.xpose.msra.mxu0 0
    %1825 = vmatprep.subr.bf16.mxu0 0
    %1826 = vmatpush1.bf16.xpose.msra.mxu0 0
    %1827 = vmatprep.subr.bf16.mxu0 0
    %1828 = vmatpush1.bf16.xpose.msra.mxu0 0
    %1829 = vmatprep.subr.bf16.mxu0 0
    %1830 = vmatpush1.bf16.xpose.msra.mxu0 0
    %1831 = vmatprep.subr.bf16.mxu0 0
    %1832 = vmatpush1.bf16.xpose.msra.mxu0 0
    %1833 = vmatprep.subr.bf16.mxu0 0
    %1834 = vmatpush1.bf16.xpose.msra.mxu0 0
    %1835 = vmatprep.subr.bf16.mxu0 0
    %1836 = vmatpush1.bf16.xpose.msra.mxu0 0
    %1837 = vmatprep.subr.bf16.mxu0 0
    %1838 = vmatpush1.bf16.xpose.msra.mxu0 0
    %1839 = vmatprep.subr.bf16.mxu0 0
    %1840 = vmatpush1.bf16.xpose.msra.mxu0 0
    %1841 = vmatprep.subr.bf16.mxu0 0
    %1842 = vmatpush1.bf16.xpose.msra.mxu0 0
    %1843 = vmatprep.subr.bf16.mxu0 0
    %1844 = vmatpush1.bf16.xpose.msra.mxu0 0
    %1845 = vmatprep.subr.bf16.mxu0 0
    %1846 = vmatpush1.bf16.xpose.msra.mxu0 0
    %1847 = vmatprep.subr.bf16.mxu0 0
    %1848 = vmatpush1.bf16.xpose.msra.mxu0 0
    %1849 = vmatprep.mubr.bf16.mxu0 0
    %1850 = vmatmul.mubr.bf16.gmra.mrb[0].mxu0 %v1812
    %v1851 = vpop.f32.mrb[0].mxu0
    %v1852 = vadd.f32 %v128, %v1851
    %v1853 = vpop.f32.mrb[0].mxu0
    %v1854 = vpop.f32.mrb[0].mxu0
    %v1855 = vpop.f32.mrb[0].mxu0
    %1856 = vdwg.mxu0
    %v1857 = vsel %vm1634, %v1801, -inf
    %1858 = vmax.xlane.f32.xlu0 %v1857
    %v1859 = vpop.xlane.xlu0 %1858
    %v1860 = vsel %vm1634, %v1852, -inf
    %1861 = vmax.xlane.f32.xlu0 %v1860
    %v1862 = vpop.xlane.xlu0 %1861
    %v1863 = vsub.f32 %v1801, %v1859
    %v1864 = vsub.f32 %v1852, %v1862
    %v1865 = vmul.f32 %v1863, 1.442695
    %v1866 = vpow.pop %v1865
    %v1867 = vmul.f32 %v1864, 1.442695
    %v1868 = vpow.pop %v1867
    %v1869 = vsel %vm1634, %v1866, 0.0
    %1870 = vadd.xlane.f32.xlu0 %v1869
    %v1871 = vpop.xlane.xlu0 %1870
    %v1872 = vsel %vm1634, %v1868, 0.0
    %1873 = vadd.xlane.f32.xlu0 %v1872
    %v1874 = vpop.xlane.xlu0 %1873
    %v1875 = vrcp.pop %v1871
    %v1876 = vrcp.pop %v1874
    %v1877 = vmul.f32 %v1866, %v1875
    %v1878 = vmul.f32 %v1868, %v1876
    %v1879 = vpack.c.bf16 %v1877, %v1877
    %v1880 = vpack.c.bf16 %v1878, %v1878
    %1881 = vrot.lane.b32.xlu0 %v1534, 56
    %v1882 = vpop.permute.xlu0 %1881
    %v1884 = vsel %vm218, %v1879, 0
    %v1887 = vsel %vm343, %v1882, 0
    %1889 = vmatprep.subr.bf16.mxu0 0
    %1890 = vmatpush1.bf16.msra.mxu0 %v1887
    %1891 = vmatprep.subr.bf16.mxu0 0
    %1892 = vmatpush1.bf16.msra.mxu0 0
    %1893 = vmatprep.subr.bf16.mxu0 0
    %1894 = vmatpush1.bf16.msra.mxu0 0
    %1895 = vmatprep.subr.bf16.mxu0 0
    %1896 = vmatpush1.bf16.msra.mxu0 0
    %1897 = vmatprep.subr.bf16.mxu0 0
    %1898 = vmatpush1.bf16.msra.mxu0 0
    %1899 = vmatprep.subr.bf16.mxu0 0
    %1900 = vmatpush1.bf16.msra.mxu0 0
    %1901 = vmatprep.subr.bf16.mxu0 0
    %1902 = vmatpush1.bf16.msra.mxu0 0
    %1903 = vmatprep.subr.bf16.mxu0 0
    %1904 = vmatpush1.bf16.msra.mxu0 0
    %1905 = vmatprep.subr.bf16.mxu0 0
    %1906 = vmatpush1.bf16.msra.mxu0 0
    %1907 = vmatprep.subr.bf16.mxu0 0
    %1908 = vmatpush1.bf16.msra.mxu0 0
    %1909 = vmatprep.subr.bf16.mxu0 0
    %1910 = vmatpush1.bf16.msra.mxu0 0
    %1911 = vmatprep.subr.bf16.mxu0 0
    %1912 = vmatpush1.bf16.msra.mxu0 0
    %1913 = vmatprep.subr.bf16.mxu0 0
    %1914 = vmatpush1.bf16.msra.mxu0 0
    %1915 = vmatprep.subr.bf16.mxu0 0
    %1916 = vmatpush1.bf16.msra.mxu0 0
    %1917 = vmatprep.subr.bf16.mxu0 0
    %1918 = vmatpush1.bf16.msra.mxu0 0
    %1919 = vmatprep.subr.bf16.mxu0 0
    %1920 = vmatpush1.bf16.msra.mxu0 0
    %1921 = vmatprep.mubr.bf16.mxu0 0
    %1922 = vmatmul.mubr.bf16.gmra.mrb[0].mxu0 %v1884
    %v1923 = vpop.f32.mrb[0].mxu0
    %v1924 = vadd.f32 0.0, %v1923
    %v1925 = vpop.f32.mrb[0].mxu0
    %v1926 = vpop.f32.mrb[0].mxu0
    %v1927 = vpop.f32.mrb[0].mxu0
    %1928 = vdwg.mxu0
    %1929 = vrot.lane.b32.xlu0 %v1535, 56
    %v1930 = vpop.permute.xlu0 %1929
    %v1932 = vsel %vm218, %v1880, 0
    %v1935 = vsel %vm343, %v1930, 0
    %1937 = vmatprep.subr.bf16.mxu0 0
    %1938 = vmatpush1.bf16.msra.mxu0 %v1935
    %1939 = vmatprep.subr.bf16.mxu0 0
    %1940 = vmatpush1.bf16.msra.mxu0 0
    %1941 = vmatprep.subr.bf16.mxu0 0
    %1942 = vmatpush1.bf16.msra.mxu0 0
    %1943 = vmatprep.subr.bf16.mxu0 0
    %1944 = vmatpush1.bf16.msra.mxu0 0
    %1945 = vmatprep.subr.bf16.mxu0 0
    %1946 = vmatpush1.bf16.msra.mxu0 0
    %1947 = vmatprep.subr.bf16.mxu0 0
    %1948 = vmatpush1.bf16.msra.mxu0 0
    %1949 = vmatprep.subr.bf16.mxu0 0
    %1950 = vmatpush1.bf16.msra.mxu0 0
    %1951 = vmatprep.subr.bf16.mxu0 0
    %1952 = vmatpush1.bf16.msra.mxu0 0
    %1953 = vmatprep.subr.bf16.mxu0 0
    %1954 = vmatpush1.bf16.msra.mxu0 0
    %1955 = vmatprep.subr.bf16.mxu0 0
    %1956 = vmatpush1.bf16.msra.mxu0 0
    %1957 = vmatprep.subr.bf16.mxu0 0
    %1958 = vmatpush1.bf16.msra.mxu0 0
    %1959 = vmatprep.subr.bf16.mxu0 0
    %1960 = vmatpush1.bf16.msra.mxu0 0
    %1961 = vmatprep.subr.bf16.mxu0 0
    %1962 = vmatpush1.bf16.msra.mxu0 0
    %1963 = vmatprep.subr.bf16.mxu0 0
    %1964 = vmatpush1.bf16.msra.mxu0 0
    %1965 = vmatprep.subr.bf16.mxu0 0
    %1966 = vmatpush1.bf16.msra.mxu0 0
    %1967 = vmatprep.subr.bf16.mxu0 0
    %1968 = vmatpush1.bf16.msra.mxu0 0
    %1969 = vmatprep.mubr.bf16.mxu0 0
    %1970 = vmatmul.mubr.bf16.gmra.mrb[0].mxu0 %v1932
    %v1971 = vpop.f32.mrb[0].mxu0
    %v1972 = vadd.f32 0.0, %v1971
    %v1973 = vpop.f32.mrb[0].mxu0
    %v1974 = vpop.f32.mrb[0].mxu0
    %v1975 = vpop.f32.mrb[0].mxu0
    %1976 = vdwg.mxu0
    %1977 = vrot.lane.b32.xlu0 %v1532, 112
    %v1978 = vpop.permute.xlu0 %1977
    %1979 = vrot.lane.b32.xlu0 %v1534, 80
    %v1980 = vpop.permute.xlu0 %1979
    %v1982 = vsel %vm218, %v1978, 0
    %v1985 = vsel %vm218, %v1980, 0
    %1987 = vmatprep.subr.bf16.mxu0 0
    %1988 = vmatpush1.bf16.xpose.msra.mxu0 %v1985
    %1989 = vmatprep.subr.bf16.mxu0 0
    %1990 = vmatpush1.bf16.xpose.msra.mxu0 0
    %1991 = vmatprep.subr.bf16.mxu0 0
    %1992 = vmatpush1.bf16.xpose.msra.mxu0 0
    %1993 = vmatprep.subr.bf16.mxu0 0
    %1994 = vmatpush1.bf16.xpose.msra.mxu0 0
    %1995 = vmatprep.subr.bf16.mxu0 0
    %1996 = vmatpush1.bf16.xpose.msra.mxu0 0
    %1997 = vmatprep.subr.bf16.mxu0 0
    %1998 = vmatpush1.bf16.xpose.msra.mxu0 0
    %1999 = vmatprep.subr.bf16.mxu0 0
    %2000 = vmatpush1.bf16.xpose.msra.mxu0 0
    %2001 = vmatprep.subr.bf16.mxu0 0
    %2002 = vmatpush1.bf16.xpose.msra.mxu0 0
    %2003 = vmatprep.subr.bf16.mxu0 0
    %2004 = vmatpush1.bf16.xpose.msra.mxu0 0
    %2005 = vmatprep.subr.bf16.mxu0 0
    %2006 = vmatpush1.bf16.xpose.msra.mxu0 0
    %2007 = vmatprep.subr.bf16.mxu0 0
    %2008 = vmatpush1.bf16.xpose.msra.mxu0 0
    %2009 = vmatprep.subr.bf16.mxu0 0
    %2010 = vmatpush1.bf16.xpose.msra.mxu0 0
    %2011 = vmatprep.subr.bf16.mxu0 0
    %2012 = vmatpush1.bf16.xpose.msra.mxu0 0
    %2013 = vmatprep.subr.bf16.mxu0 0
    %2014 = vmatpush1.bf16.xpose.msra.mxu0 0
    %2015 = vmatprep.subr.bf16.mxu0 0
    %2016 = vmatpush1.bf16.xpose.msra.mxu0 0
    %2017 = vmatprep.subr.bf16.mxu0 0
    %2018 = vmatpush1.bf16.xpose.msra.mxu0 0
    %2019 = vmatprep.mubr.bf16.mxu0 0
    %2020 = vmatmul.mubr.bf16.gmra.mrb[0].mxu0 %v1982
    %v2021 = vpop.f32.mrb[0].mxu0
    %v2022 = vadd.f32 %v121, %v2021
    %v2023 = vpop.f32.mrb[0].mxu0
    %v2024 = vpop.f32.mrb[0].mxu0
    %v2025 = vpop.f32.mrb[0].mxu0
    %2026 = vdwg.mxu0
    %2027 = vrot.lane.b32.xlu0 %v1533, 112
    %v2028 = vpop.permute.xlu0 %2027
    %2029 = vrot.lane.b32.xlu0 %v1535, 80
    %v2030 = vpop.permute.xlu0 %2029
    %v2032 = vsel %vm218, %v2028, 0
    %v2035 = vsel %vm218, %v2030, 0
    %2037 = vmatprep.subr.bf16.mxu0 0
    %2038 = vmatpush1.bf16.xpose.msra.mxu0 %v2035
    %2039 = vmatprep.subr.bf16.mxu0 0
    %2040 = vmatpush1.bf16.xpose.msra.mxu0 0
    %2041 = vmatprep.subr.bf16.mxu0 0
    %2042 = vmatpush1.bf16.xpose.msra.mxu0 0
    %2043 = vmatprep.subr.bf16.mxu0 0
    %2044 = vmatpush1.bf16.xpose.msra.mxu0 0
    %2045 = vmatprep.subr.bf16.mxu0 0
    %2046 = vmatpush1.bf16.xpose.msra.mxu0 0
    %2047 = vmatprep.subr.bf16.mxu0 0
    %2048 = vmatpush1.bf16.xpose.msra.mxu0 0
    %2049 = vmatprep.subr.bf16.mxu0 0
    %2050 = vmatpush1.bf16.xpose.msra.mxu0 0
    %2051 = vmatprep.subr.bf16.mxu0 0
    %2052 = vmatpush1.bf16.xpose.msra.mxu0 0
    %2053 = vmatprep.subr.bf16.mxu0 0
    %2054 = vmatpush1.bf16.xpose.msra.mxu0 0
    %2055 = vmatprep.subr.bf16.mxu0 0
    %2056 = vmatpush1.bf16.xpose.msra.mxu0 0
    %2057 = vmatprep.subr.bf16.mxu0 0
    %2058 = vmatpush1.bf16.xpose.msra.mxu0 0
    %2059 = vmatprep.subr.bf16.mxu0 0
    %2060 = vmatpush1.bf16.xpose.msra.mxu0 0
    %2061 = vmatprep.subr.bf16.mxu0 0
    %2062 = vmatpush1.bf16.xpose.msra.mxu0 0
    %2063 = vmatprep.subr.bf16.mxu0 0
    %2064 = vmatpush1.bf16.xpose.msra.mxu0 0
    %2065 = vmatprep.subr.bf16.mxu0 0
    %2066 = vmatpush1.bf16.xpose.msra.mxu0 0
    %2067 = vmatprep.subr.bf16.mxu0 0
    %2068 = vmatpush1.bf16.xpose.msra.mxu0 0
    %2069 = vmatprep.mubr.bf16.mxu0 0
    %2070 = vmatmul.mubr.bf16.gmra.mrb[0].mxu0 %v2032
    %v2071 = vpop.f32.mrb[0].mxu0
    %v2072 = vadd.f32 %v128, %v2071
    %v2073 = vpop.f32.mrb[0].mxu0
    %v2074 = vpop.f32.mrb[0].mxu0
    %v2075 = vpop.f32.mrb[0].mxu0
    %2076 = vdwg.mxu0
    %v2077 = vsel %vm1634, %v2022, -inf
    %2078 = vmax.xlane.f32.xlu0 %v2077
    %v2079 = vpop.xlane.xlu0 %2078
    %v2080 = vsel %vm1634, %v2072, -inf
    %2081 = vmax.xlane.f32.xlu0 %v2080
    %v2082 = vpop.xlane.xlu0 %2081
    %v2083 = vsub.f32 %v2022, %v2079
    %v2084 = vsub.f32 %v2072, %v2082
    %v2085 = vmul.f32 %v2083, 1.442695
    %v2086 = vpow.pop %v2085
    %v2087 = vmul.f32 %v2084, 1.442695
    %v2088 = vpow.pop %v2087
    %v2089 = vsel %vm1634, %v2086, 0.0
    %2090 = vadd.xlane.f32.xlu0 %v2089
    %v2091 = vpop.xlane.xlu0 %2090
    %v2092 = vsel %vm1634, %v2088, 0.0
    %2093 = vadd.xlane.f32.xlu0 %v2092
    %v2094 = vpop.xlane.xlu0 %2093
    %v2095 = vrcp.pop %v2091
    %v2096 = vrcp.pop %v2094
    %v2097 = vmul.f32 %v2086, %v2095
    %v2098 = vmul.f32 %v2088, %v2096
    %v2099 = vpack.c.bf16 %v2097, %v2097
    %v2100 = vpack.c.bf16 %v2098, %v2098
    %2101 = vrot.lane.b32.xlu0 %v1534, 48
    %v2102 = vpop.permute.xlu0 %2101
    %v2104 = vsel %vm218, %v2099, 0
    %v2107 = vsel %vm343, %v2102, 0
    %2109 = vmatprep.subr.bf16.mxu0 0
    %2110 = vmatpush1.bf16.msra.mxu0 %v2107
    %2111 = vmatprep.subr.bf16.mxu0 0
    %2112 = vmatpush1.bf16.msra.mxu0 0
    %2113 = vmatprep.subr.bf16.mxu0 0
    %2114 = vmatpush1.bf16.msra.mxu0 0
    %2115 = vmatprep.subr.bf16.mxu0 0
    %2116 = vmatpush1.bf16.msra.mxu0 0
    %2117 = vmatprep.subr.bf16.mxu0 0
    %2118 = vmatpush1.bf16.msra.mxu0 0
    %2119 = vmatprep.subr.bf16.mxu0 0
    %2120 = vmatpush1.bf16.msra.mxu0 0
    %2121 = vmatprep.subr.bf16.mxu0 0
    %2122 = vmatpush1.bf16.msra.mxu0 0
    %2123 = vmatprep.subr.bf16.mxu0 0
    %2124 = vmatpush1.bf16.msra.mxu0 0
    %2125 = vmatprep.subr.bf16.mxu0 0
    %2126 = vmatpush1.bf16.msra.mxu0 0
    %2127 = vmatprep.subr.bf16.mxu0 0
    %2128 = vmatpush1.bf16.msra.mxu0 0
    %2129 = vmatprep.subr.bf16.mxu0 0
    %2130 = vmatpush1.bf16.msra.mxu0 0
    %2131 = vmatprep.subr.bf16.mxu0 0
    %2132 = vmatpush1.bf16.msra.mxu0 0
    %2133 = vmatprep.subr.bf16.mxu0 0
    %2134 = vmatpush1.bf16.msra.mxu0 0
    %2135 = vmatprep.subr.bf16.mxu0 0
    %2136 = vmatpush1.bf16.msra.mxu0 0
    %2137 = vmatprep.subr.bf16.mxu0 0
    %2138 = vmatpush1.bf16.msra.mxu0 0
    %2139 = vmatprep.subr.bf16.mxu0 0
    %2140 = vmatpush1.bf16.msra.mxu0 0
    %2141 = vmatprep.mubr.bf16.mxu0 0
    %2142 = vmatmul.mubr.bf16.gmra.mrb[0].mxu0 %v2104
    %v2143 = vpop.f32.mrb[0].mxu0
    %v2144 = vadd.f32 0.0, %v2143
    %v2145 = vpop.f32.mrb[0].mxu0
    %v2146 = vpop.f32.mrb[0].mxu0
    %v2147 = vpop.f32.mrb[0].mxu0
    %2148 = vdwg.mxu0
    %2149 = vrot.lane.b32.xlu0 %v1535, 48
    %v2150 = vpop.permute.xlu0 %2149
    %v2152 = vsel %vm218, %v2100, 0
    %v2155 = vsel %vm343, %v2150, 0
    %2157 = vmatprep.subr.bf16.mxu0 0
    %2158 = vmatpush1.bf16.msra.mxu0 %v2155
    %2159 = vmatprep.subr.bf16.mxu0 0
    %2160 = vmatpush1.bf16.msra.mxu0 0
    %2161 = vmatprep.subr.bf16.mxu0 0
    %2162 = vmatpush1.bf16.msra.mxu0 0
    %2163 = vmatprep.subr.bf16.mxu0 0
    %2164 = vmatpush1.bf16.msra.mxu0 0
    %2165 = vmatprep.subr.bf16.mxu0 0
    %2166 = vmatpush1.bf16.msra.mxu0 0
    %2167 = vmatprep.subr.bf16.mxu0 0
    %2168 = vmatpush1.bf16.msra.mxu0 0
    %2169 = vmatprep.subr.bf16.mxu0 0
    %2170 = vmatpush1.bf16.msra.mxu0 0
    %2171 = vmatprep.subr.bf16.mxu0 0
    %2172 = vmatpush1.bf16.msra.mxu0 0
    %2173 = vmatprep.subr.bf16.mxu0 0
    %2174 = vmatpush1.bf16.msra.mxu0 0
    %2175 = vmatprep.subr.bf16.mxu0 0
    %2176 = vmatpush1.bf16.msra.mxu0 0
    %2177 = vmatprep.subr.bf16.mxu0 0
    %2178 = vmatpush1.bf16.msra.mxu0 0
    %2179 = vmatprep.subr.bf16.mxu0 0
    %2180 = vmatpush1.bf16.msra.mxu0 0
    %2181 = vmatprep.subr.bf16.mxu0 0
    %2182 = vmatpush1.bf16.msra.mxu0 0
    %2183 = vmatprep.subr.bf16.mxu0 0
    %2184 = vmatpush1.bf16.msra.mxu0 0
    %2185 = vmatprep.subr.bf16.mxu0 0
    %2186 = vmatpush1.bf16.msra.mxu0 0
    %2187 = vmatprep.subr.bf16.mxu0 0
    %2188 = vmatpush1.bf16.msra.mxu0 0
    %2189 = vmatprep.mubr.bf16.mxu0 0
    %2190 = vmatmul.mubr.bf16.gmra.mrb[0].mxu0 %v2152
    %v2191 = vpop.f32.mrb[0].mxu0
    %v2192 = vadd.f32 0.0, %v2191
    %v2193 = vpop.f32.mrb[0].mxu0
    %v2194 = vpop.f32.mrb[0].mxu0
    %v2195 = vpop.f32.mrb[0].mxu0
    %2196 = vdwg.mxu0
    %2197 = vrot.lane.b32.xlu0 %v1532, 104
    %v2198 = vpop.permute.xlu0 %2197
    %2199 = vrot.lane.b32.xlu0 %v1534, 72
    %v2200 = vpop.permute.xlu0 %2199
    %v2202 = vsel %vm218, %v2198, 0
    %v2205 = vsel %vm218, %v2200, 0
    %2207 = vmatprep.subr.bf16.mxu0 0
    %2208 = vmatpush1.bf16.xpose.msra.mxu0 %v2205
    %2209 = vmatprep.subr.bf16.mxu0 0
    %2210 = vmatpush1.bf16.xpose.msra.mxu0 0
    %2211 = vmatprep.subr.bf16.mxu0 0
    %2212 = vmatpush1.bf16.xpose.msra.mxu0 0
    %2213 = vmatprep.subr.bf16.mxu0 0
    %2214 = vmatpush1.bf16.xpose.msra.mxu0 0
    %2215 = vmatprep.subr.bf16.mxu0 0
    %2216 = vmatpush1.bf16.xpose.msra.mxu0 0
    %2217 = vmatprep.subr.bf16.mxu0 0
    %2218 = vmatpush1.bf16.xpose.msra.mxu0 0
    %2219 = vmatprep.subr.bf16.mxu0 0
    %2220 = vmatpush1.bf16.xpose.msra.mxu0 0
    %2221 = vmatprep.subr.bf16.mxu0 0
    %2222 = vmatpush1.bf16.xpose.msra.mxu0 0
    %2223 = vmatprep.subr.bf16.mxu0 0
    %2224 = vmatpush1.bf16.xpose.msra.mxu0 0
    %2225 = vmatprep.subr.bf16.mxu0 0
    %2226 = vmatpush1.bf16.xpose.msra.mxu0 0
    %2227 = vmatprep.subr.bf16.mxu0 0
    %2228 = vmatpush1.bf16.xpose.msra.mxu0 0
    %2229 = vmatprep.subr.bf16.mxu0 0
    %2230 = vmatpush1.bf16.xpose.msra.mxu0 0
    %2231 = vmatprep.subr.bf16.mxu0 0
    %2232 = vmatpush1.bf16.xpose.msra.mxu0 0
    %2233 = vmatprep.subr.bf16.mxu0 0
    %2234 = vmatpush1.bf16.xpose.msra.mxu0 0
    %2235 = vmatprep.subr.bf16.mxu0 0
    %2236 = vmatpush1.bf16.xpose.msra.mxu0 0
    %2237 = vmatprep.subr.bf16.mxu0 0
    %2238 = vmatpush1.bf16.xpose.msra.mxu0 0
    %2239 = vmatprep.mubr.bf16.mxu0 0
    %2240 = vmatmul.mubr.bf16.gmra.mrb[0].mxu0 %v2202
    %v2241 = vpop.f32.mrb[0].mxu0
    %v2242 = vadd.f32 %v121, %v2241
    %v2243 = vpop.f32.mrb[0].mxu0
    %v2244 = vpop.f32.mrb[0].mxu0
    %v2245 = vpop.f32.mrb[0].mxu0
    %2246 = vdwg.mxu0
    %2247 = vrot.lane.b32.xlu0 %v1533, 104
    %v2248 = vpop.permute.xlu0 %2247
    %2249 = vrot.lane.b32.xlu0 %v1535, 72
    %v2250 = vpop.permute.xlu0 %2249
    %v2252 = vsel %vm218, %v2248, 0
    %v2255 = vsel %vm218, %v2250, 0
    %2257 = vmatprep.subr.bf16.mxu0 0
    %2258 = vmatpush1.bf16.xpose.msra.mxu0 %v2255
    %2259 = vmatprep.subr.bf16.mxu0 0
    %2260 = vmatpush1.bf16.xpose.msra.mxu0 0
    %2261 = vmatprep.subr.bf16.mxu0 0
    %2262 = vmatpush1.bf16.xpose.msra.mxu0 0
    %2263 = vmatprep.subr.bf16.mxu0 0
    %2264 = vmatpush1.bf16.xpose.msra.mxu0 0
    %2265 = vmatprep.subr.bf16.mxu0 0
    %2266 = vmatpush1.bf16.xpose.msra.mxu0 0
    %2267 = vmatprep.subr.bf16.mxu0 0
    %2268 = vmatpush1.bf16.xpose.msra.mxu0 0
    %2269 = vmatprep.subr.bf16.mxu0 0
    %2270 = vmatpush1.bf16.xpose.msra.mxu0 0
    %2271 = vmatprep.subr.bf16.mxu0 0
    %2272 = vmatpush1.bf16.xpose.msra.mxu0 0
    %2273 = vmatprep.subr.bf16.mxu0 0
    %2274 = vmatpush1.bf16.xpose.msra.mxu0 0
    %2275 = vmatprep.subr.bf16.mxu0 0
    %2276 = vmatpush1.bf16.xpose.msra.mxu0 0
    %2277 = vmatprep.subr.bf16.mxu0 0
    %2278 = vmatpush1.bf16.xpose.msra.mxu0 0
    %2279 = vmatprep.subr.bf16.mxu0 0
    %2280 = vmatpush1.bf16.xpose.msra.mxu0 0
    %2281 = vmatprep.subr.bf16.mxu0 0
    %2282 = vmatpush1.bf16.xpose.msra.mxu0 0
    %2283 = vmatprep.subr.bf16.mxu0 0
    %2284 = vmatpush1.bf16.xpose.msra.mxu0 0
    %2285 = vmatprep.subr.bf16.mxu0 0
    %2286 = vmatpush1.bf16.xpose.msra.mxu0 0
    %2287 = vmatprep.subr.bf16.mxu0 0
    %2288 = vmatpush1.bf16.xpose.msra.mxu0 0
    %2289 = vmatprep.mubr.bf16.mxu0 0
    %2290 = vmatmul.mubr.bf16.gmra.mrb[0].mxu0 %v2252
    %v2291 = vpop.f32.mrb[0].mxu0
    %v2292 = vadd.f32 %v128, %v2291
    %v2293 = vpop.f32.mrb[0].mxu0
    %v2294 = vpop.f32.mrb[0].mxu0
    %v2295 = vpop.f32.mrb[0].mxu0
    %2296 = vdwg.mxu0
    %v2297 = vsel %vm1634, %v2242, -inf
    %2298 = vmax.xlane.f32.xlu0 %v2297
    %v2299 = vpop.xlane.xlu0 %2298
    %v2300 = vsel %vm1634, %v2292, -inf
    %2301 = vmax.xlane.f32.xlu0 %v2300
    %v2302 = vpop.xlane.xlu0 %2301
    %v2303 = vsub.f32 %v2242, %v2299
    %v2304 = vsub.f32 %v2292, %v2302
    %v2305 = vmul.f32 %v2303, 1.442695
    %v2306 = vpow.pop %v2305
    %v2307 = vmul.f32 %v2304, 1.442695
    %v2308 = vpow.pop %v2307
    %v2309 = vsel %vm1634, %v2306, 0.0
    %2310 = vadd.xlane.f32.xlu0 %v2309
    %v2311 = vpop.xlane.xlu0 %2310
    %v2312 = vsel %vm1634, %v2308, 0.0
    %2313 = vadd.xlane.f32.xlu0 %v2312
    %v2314 = vpop.xlane.xlu0 %2313
    %v2315 = vrcp.pop %v2311
    %v2316 = vrcp.pop %v2314
    %v2317 = vmul.f32 %v2306, %v2315
    %v2318 = vmul.f32 %v2308, %v2316
    %v2319 = vpack.c.bf16 %v2317, %v2317
    %v2320 = vpack.c.bf16 %v2318, %v2318
    %2321 = vrot.lane.b32.xlu0 %v1534, 40
    %v2322 = vpop.permute.xlu0 %2321
    %v2324 = vsel %vm218, %v2319, 0
    %v2327 = vsel %vm343, %v2322, 0
    %2329 = vmatprep.subr.bf16.mxu0 0
    %2330 = vmatpush1.bf16.msra.mxu0 %v2327
    %2331 = vmatprep.subr.bf16.mxu0 0
    %2332 = vmatpush1.bf16.msra.mxu0 0
    %2333 = vmatprep.subr.bf16.mxu0 0
    %2334 = vmatpush1.bf16.msra.mxu0 0
    %2335 = vmatprep.subr.bf16.mxu0 0
    %2336 = vmatpush1.bf16.msra.mxu0 0
    %2337 = vmatprep.subr.bf16.mxu0 0
    %2338 = vmatpush1.bf16.msra.mxu0 0
    %2339 = vmatprep.subr.bf16.mxu0 0
    %2340 = vmatpush1.bf16.msra.mxu0 0
    %2341 = vmatprep.subr.bf16.mxu0 0
    %2342 = vmatpush1.bf16.msra.mxu0 0
    %2343 = vmatprep.subr.bf16.mxu0 0
    %2344 = vmatpush1.bf16.msra.mxu0 0
    %2345 = vmatprep.subr.bf16.mxu0 0
    %2346 = vmatpush1.bf16.msra.mxu0 0
    %2347 = vmatprep.subr.bf16.mxu0 0
    %2348 = vmatpush1.bf16.msra.mxu0 0
    %2349 = vmatprep.subr.bf16.mxu0 0
    %2350 = vmatpush1.bf16.msra.mxu0 0
    %2351 = vmatprep.subr.bf16.mxu0 0
    %2352 = vmatpush1.bf16.msra.mxu0 0
    %2353 = vmatprep.subr.bf16.mxu0 0
    %2354 = vmatpush1.bf16.msra.mxu0 0
    %2355 = vmatprep.subr.bf16.mxu0 0
    %2356 = vmatpush1.bf16.msra.mxu0 0
    %2357 = vmatprep.subr.bf16.mxu0 0
    %2358 = vmatpush1.bf16.msra.mxu0 0
    %2359 = vmatprep.subr.bf16.mxu0 0
    %2360 = vmatpush1.bf16.msra.mxu0 0
    %2361 = vmatprep.mubr.bf16.mxu0 0
    %2362 = vmatmul.mubr.bf16.gmra.mrb[0].mxu0 %v2324
    %v2363 = vpop.f32.mrb[0].mxu0
    %v2364 = vadd.f32 0.0, %v2363
    %v2365 = vpop.f32.mrb[0].mxu0
    %v2366 = vpop.f32.mrb[0].mxu0
    %v2367 = vpop.f32.mrb[0].mxu0
    %2368 = vdwg.mxu0
    %2369 = vrot.lane.b32.xlu0 %v1535, 40
    %v2370 = vpop.permute.xlu0 %2369
    %v2372 = vsel %vm218, %v2320, 0
    %v2375 = vsel %vm343, %v2370, 0
    %2377 = vmatprep.subr.bf16.mxu0 0
    %2378 = vmatpush1.bf16.msra.mxu0 %v2375
    %2379 = vmatprep.subr.bf16.mxu0 0
    %2380 = vmatpush1.bf16.msra.mxu0 0
    %2381 = vmatprep.subr.bf16.mxu0 0
    %2382 = vmatpush1.bf16.msra.mxu0 0
    %2383 = vmatprep.subr.bf16.mxu0 0
    %2384 = vmatpush1.bf16.msra.mxu0 0
    %2385 = vmatprep.subr.bf16.mxu0 0
    %2386 = vmatpush1.bf16.msra.mxu0 0
    %2387 = vmatprep.subr.bf16.mxu0 0
    %2388 = vmatpush1.bf16.msra.mxu0 0
    %2389 = vmatprep.subr.bf16.mxu0 0
    %2390 = vmatpush1.bf16.msra.mxu0 0
    %2391 = vmatprep.subr.bf16.mxu0 0
    %2392 = vmatpush1.bf16.msra.mxu0 0
    %2393 = vmatprep.subr.bf16.mxu0 0
    %2394 = vmatpush1.bf16.msra.mxu0 0
    %2395 = vmatprep.subr.bf16.mxu0 0
    %2396 = vmatpush1.bf16.msra.mxu0 0
    %2397 = vmatprep.subr.bf16.mxu0 0
    %2398 = vmatpush1.bf16.msra.mxu0 0
    %2399 = vmatprep.subr.bf16.mxu0 0
    %2400 = vmatpush1.bf16.msra.mxu0 0
    %2401 = vmatprep.subr.bf16.mxu0 0
    %2402 = vmatpush1.bf16.msra.mxu0 0
    %2403 = vmatprep.subr.bf16.mxu0 0
    %2404 = vmatpush1.bf16.msra.mxu0 0
    %2405 = vmatprep.subr.bf16.mxu0 0
    %2406 = vmatpush1.bf16.msra.mxu0 0
    %2407 = vmatprep.subr.bf16.mxu0 0
    %2408 = vmatpush1.bf16.msra.mxu0 0
    %2409 = vmatprep.mubr.bf16.mxu0 0
    %2410 = vmatmul.mubr.bf16.gmra.mrb[0].mxu0 %v2372
    %v2411 = vpop.f32.mrb[0].mxu0
    %v2412 = vadd.f32 0.0, %v2411
    %v2413 = vpop.f32.mrb[0].mxu0
    %v2414 = vpop.f32.mrb[0].mxu0
    %v2415 = vpop.f32.mrb[0].mxu0
    %2416 = vdwg.mxu0
    %2419 = vrot.lane.b32.xlu0 %v1924, 8
    %v2420 = vpop.permute.xlu0 %2419
    %2421 = vrot.lane.b32.xlu0 %v1972, 8
    %v2422 = vpop.permute.xlu0 %2421
    %2427 = vrot.lane.b32.xlu0 %v2144, 16
    %v2428 = vpop.permute.xlu0 %2427
    %2429 = vrot.lane.b32.xlu0 %v2192, 16
    %v2430 = vpop.permute.xlu0 %2429
    %2435 = vrot.lane.b32.xlu0 %v2364, 24
    %v2436 = vpop.permute.xlu0 %2435
    %2437 = vrot.lane.b32.xlu0 %v2412, 24
    %v2438 = vpop.permute.xlu0 %2437
    %v2441 = vsel %vm218, %v1702, %v2420
    %v2442 = vsel %vm218, %v1750, %v2422
    %v2443 = vsel %vm1123, %v2441, %v2428
    %v2444 = vsel %vm1123, %v2442, %v2430
    %v2445 = vsel %vm1126, %v2443, %v2436
    %v2446 = vsel %vm1126, %v2444, %v2438
    %v2447 = vpack.c.bf16 %v2445, %v2445
    %v2448 = vpack.c.bf16 %v2446, %v2446
    %s2449 = scalar_lea.vmem %s6, 16
    %v2450 = vld [vmem:[%s2449] sm:$0xf]
    %v2451 = vld [vmem:[%s2449 + $0x4] sm:$0xf]
    %v2452 = vld [vmem:[%s2449 + $0x8] sm:$0xf]
    %v2453 = vld [vmem:[%s2449 + $0xc] sm:$0xf]
    %s2454 = scalar_lea.vmem %s7, 1
    %v2455 = vld [vmem:[%s2454] sm:$0x1]
    %v2457 = vlaneseq
    %v2458 = vshrl.u32 %v2457, 7
    %v2459 = vsub.s32 0, %v2458
    %v2460 = vrot.slane %v2455, %v2459
    %v2464 = vunpack.c.l.b16 %v2447
    %v2465 = vunpack.c.l.b16 %v2448
    %v2466 = vrot.slane %v2465, 7
    %vm2467 = vcmask 1041409
    %v2468 = vsel %vm2467, %v2466, %v2464
    %v2469 = vpack.c.b16 %v2468, %v2468
    %v2474 = vunpack.c.l.b16 %v2450
    %v2475 = vunpack.c.l.b16 %v2451
    %v2476 = vunpack.c.l.b16 %v2452
    %v2477 = vunpack.c.l.b16 %v2453
    %v2478 = vpack.c.b16 %v2475, %v2474
    %v2479 = vpack.c.b16 %v2477, %v2476
    %v2483 = vsel %vm59, %v2469, 0
    %2485 = vmatprep.subr.bf16.mxu0 0
    %2486 = vmatpush1.bf16.msra.mxu0 %v2478
    %2487 = vmatprep.subr.bf16.mxu0 0
    %2488 = vmatpush1.bf16.msra.mxu0 %v2479
    %2489 = vmatprep.subr.bf16.mxu0 0
    %2490 = vmatpush1.bf16.msra.mxu0 0
    %2491 = vmatprep.subr.bf16.mxu0 0
    %2492 = vmatpush1.bf16.msra.mxu0 0
    %2493 = vmatprep.subr.bf16.mxu0 0
    %2494 = vmatpush1.bf16.msra.mxu0 0
    %2495 = vmatprep.subr.bf16.mxu0 0
    %2496 = vmatpush1.bf16.msra.mxu0 0
    %2497 = vmatprep.subr.bf16.mxu0 0
    %2498 = vmatpush1.bf16.msra.mxu0 0
    %2499 = vmatprep.subr.bf16.mxu0 0
    %2500 = vmatpush1.bf16.msra.mxu0 0
    %2501 = vmatprep.subr.bf16.mxu0 0
    %2502 = vmatpush1.bf16.msra.mxu0 0
    %2503 = vmatprep.subr.bf16.mxu0 0
    %2504 = vmatpush1.bf16.msra.mxu0 0
    %2505 = vmatprep.subr.bf16.mxu0 0
    %2506 = vmatpush1.bf16.msra.mxu0 0
    %2507 = vmatprep.subr.bf16.mxu0 0
    %2508 = vmatpush1.bf16.msra.mxu0 0
    %2509 = vmatprep.subr.bf16.mxu0 0
    %2510 = vmatpush1.bf16.msra.mxu0 0
    %2511 = vmatprep.subr.bf16.mxu0 0
    %2512 = vmatpush1.bf16.msra.mxu0 0
    %2513 = vmatprep.subr.bf16.mxu0 0
    %2514 = vmatpush1.bf16.msra.mxu0 0
    %2515 = vmatprep.subr.bf16.mxu0 0
    %2516 = vmatpush1.bf16.msra.mxu0 0
    %2517 = vmatprep.mubr.bf16.mxu0 0
    %2518 = vmatmul.mubr.bf16.gmra.mrb[0].mxu0 %v2483
    %v2519 = vpop.f32.mrb[0].mxu0
    %v2520 = vadd.f32 %v2460, %v2519
    %v2521 = vpop.f32.mrb[0].mxu0
    %v2522 = vpop.f32.mrb[0].mxu0
    %v2523 = vpop.f32.mrb[0].mxu0
    %2524 = vdwg.mxu0
    %v2527 = vrot.slane %v1459, 7
    %v2528 = vsel %vm2467, %v2527, %v1458
    %v2530 = vadd.f32 %v2520, %v2528
    %s2531 = scalar_lea.vmem %s8, 1
    %v2532 = vld [vmem:[%s2531] sm:$0x1]
    %s2533 = scalar_lea.vmem %s9, 1
    %v2534 = vld [vmem:[%s2533] sm:$0x1]
    %vm2535 = vcmask 254976
    %v2536 = vsel %vm2535, %v2530, 0.0
    %2537 = vadd.xlane.f32.xlu0 %v2536
    %v2538 = vpop.xlane.xlu0 %2537
    %v2539 = vmul.f32 %v2538, %v66
    %v2540 = vsub.f32 %v2530, %v2539
    %v2541 = vmul.f32 %v2540, %v2540
    %v2542 = vsel %vm2535, %v2541, 0.0
    %2543 = vadd.xlane.f32.xlu0 %v2542
    %v2544 = vpop.xlane.xlu0 %2543
    %v2545 = vmul.f32 %v2544, %v66
    %v2546 = vadd.f32 %v2545, 1e-12
    %v2547 = vrsqrt.pop %v2546
    %v2548 = vmul.f32 %v2540, %v2547
    %v2550 = vlaneseq
    %v2551 = vshrl.u32 %v2550, 7
    %v2552 = vsub.s32 0, %v2551
    %v2553 = vrot.slane %v2532, %v2552
    %v2555 = vmul.f32 %v2548, %v2553
    %v2557 = vlaneseq
    %v2558 = vshrl.u32 %v2557, 7
    %v2559 = vsub.s32 0, %v2558
    %v2560 = vrot.slane %v2534, %v2559
    %v2562 = vadd.f32 %v2555, %v2560
    %v2563 = vpack.c.bf16 %v2562, %v2562
    %s2564 = scalar_lea.vmem %s10, 16
    %v2565 = vld [vmem:[%s2564] sm:$0xf]
    %v2566 = vld [vmem:[%s2564 + $0x4] sm:$0xf]
    %v2567 = vld [vmem:[%s2564 + $0x8] sm:$0xf]
    %v2568 = vld [vmem:[%s2564 + $0xc] sm:$0xf]
    %s2569 = scalar_lea.vmem %s11, 1
    %v2570 = vld [vmem:[%s2569] sm:$0x1]
    %v2572 = vlaneseq
    %v2573 = vshrl.u32 %v2572, 7
    %v2574 = vsub.s32 0, %v2573
    %v2575 = vrot.slane %v2570, %v2574
    %v2581 = vunpack.c.l.b16 %v2565
    %v2582 = vunpack.c.l.b16 %v2566
    %v2583 = vunpack.c.l.b16 %v2567
    %v2584 = vunpack.c.l.b16 %v2568
    %v2585 = vpack.c.b16 %v2582, %v2581
    %v2586 = vpack.c.b16 %v2584, %v2583
    %v2590 = vsel %vm59, %v2563, 0
    %2592 = vmatprep.subr.bf16.mxu0 0
    %2593 = vmatpush1.bf16.msra.mxu0 %v2585
    %2594 = vmatprep.subr.bf16.mxu0 0
    %2595 = vmatpush1.bf16.msra.mxu0 %v2586
    %2596 = vmatprep.subr.bf16.mxu0 0
    %2597 = vmatpush1.bf16.msra.mxu0 0
    %2598 = vmatprep.subr.bf16.mxu0 0
    %2599 = vmatpush1.bf16.msra.mxu0 0
    %2600 = vmatprep.subr.bf16.mxu0 0
    %2601 = vmatpush1.bf16.msra.mxu0 0
    %2602 = vmatprep.subr.bf16.mxu0 0
    %2603 = vmatpush1.bf16.msra.mxu0 0
    %2604 = vmatprep.subr.bf16.mxu0 0
    %2605 = vmatpush1.bf16.msra.mxu0 0
    %2606 = vmatprep.subr.bf16.mxu0 0
    %2607 = vmatpush1.bf16.msra.mxu0 0
    %2608 = vmatprep.subr.bf16.mxu0 0
    %2609 = vmatpush1.bf16.msra.mxu0 0
    %2610 = vmatprep.subr.bf16.mxu0 0
    %2611 = vmatpush1.bf16.msra.mxu0 0
    %2612 = vmatprep.subr.bf16.mxu0 0
    %2613 = vmatpush1.bf16.msra.mxu0 0
    %2614 = vmatprep.subr.bf16.mxu0 0
    %2615 = vmatpush1.bf16.msra.mxu0 0
    %2616 = vmatprep.subr.bf16.mxu0 0
    %2617 = vmatpush1.bf16.msra.mxu0 0
    %2618 = vmatprep.subr.bf16.mxu0 0
    %2619 = vmatpush1.bf16.msra.mxu0 0
    %2620 = vmatprep.subr.bf16.mxu0 0
    %2621 = vmatpush1.bf16.msra.mxu0 0
    %2622 = vmatprep.subr.bf16.mxu0 0
    %2623 = vmatpush1.bf16.msra.mxu0 0
    %2624 = vmatprep.mubr.bf16.mxu0 0
    %2625 = vmatmul.mubr.bf16.gmra.mrb[0].mxu0 %v2590
    %v2626 = vpop.f32.mrb[0].mxu0
    %v2627 = vadd.f32 %v2575, %v2626
    %v2628 = vpop.f32.mrb[0].mxu0
    %v2629 = vpop.f32.mrb[0].mxu0
    %v2630 = vpop.f32.mrb[0].mxu0
    %2631 = vdwg.mxu0
    %v2632 = vmul.f32 %v2627, 0.5
    %v2633 = vmul.f32 %v2627, 0.044715
    %v2634 = vmul.f32 %v2633, %v2627
    %v2635 = vmul.f32 %v2634, %v2627
    %v2636 = vadd.f32 %v2627, %v2635
    %v2637 = vmul.f32 %v2636, 0.7978846
    %v2638 = vtanh.pop %v2637
    %v2639 = vadd.f32 %v2638, 1.0
    %v2640 = vmul.f32 %v2632, %v2639
    %v2641 = vpack.c.bf16 %v2640, %v2640
    %s2642 = scalar_lea.vmem %s12, 32
    %v2643 = vld [vmem:[%s2642] sm:$0xf]
    %v2644 = vld [vmem:[%s2642 + $0x4] sm:$0xf]
    %v2645 = vld [vmem:[%s2642 + $0x8] sm:$0xf]
    %v2646 = vld [vmem:[%s2642 + $0xc] sm:$0xf]
    %v2647 = vld [vmem:[%s2642 + $0x10] sm:$0xf]
    %v2648 = vld [vmem:[%s2642 + $0x14] sm:$0xf]
    %v2649 = vld [vmem:[%s2642 + $0x18] sm:$0xf]
    %v2650 = vld [vmem:[%s2642 + $0x1c] sm:$0xf]
    %s2651 = scalar_lea.vmem %s13, 1
    %v2652 = vld [vmem:[%s2651] sm:$0x1]
    %v2654 = vlaneseq
    %v2655 = vshrl.u32 %v2654, 7
    %v2656 = vsub.s32 0, %v2655
    %v2657 = vrot.slane %v2652, %v2656
    %v2667 = vunpack.c.l.b16 %v2643
    %v2668 = vunpack.c.l.b16 %v2644
    %v2669 = vunpack.c.l.b16 %v2645
    %v2670 = vunpack.c.l.b16 %v2646
    %v2671 = vunpack.c.l.b16 %v2647
    %v2672 = vunpack.c.l.b16 %v2648
    %v2673 = vunpack.c.l.b16 %v2649
    %v2674 = vunpack.c.l.b16 %v2650
    %v2675 = vpack.c.b16 %v2668, %v2667
    %v2676 = vpack.c.b16 %v2670, %v2669
    %v2677 = vpack.c.b16 %v2672, %v2671
    %v2678 = vpack.c.b16 %v2674, %v2673
    %v2684 = vsel %vm1369, %v2641, 0
    %2686 = vmatprep.subr.bf16.mxu0 0
    %2687 = vmatpush1.bf16.msra.mxu0 %v2675
    %2688 = vmatprep.subr.bf16.mxu0 0
    %2689 = vmatpush1.bf16.msra.mxu0 %v2676
    %2690 = vmatprep.subr.bf16.mxu0 0
    %2691 = vmatpush1.bf16.msra.mxu0 %v2677
    %2692 = vmatprep.subr.bf16.mxu0 0
    %2693 = vmatpush1.bf16.msra.mxu0 %v2678
    %2694 = vmatprep.subr.bf16.mxu0 0
    %2695 = vmatpush1.bf16.msra.mxu0 0
    %2696 = vmatprep.subr.bf16.mxu0 0
    %2697 = vmatpush1.bf16.msra.mxu0 0
    %2698 = vmatprep.subr.bf16.mxu0 0
    %2699 = vmatpush1.bf16.msra.mxu0 0
    %2700 = vmatprep.subr.bf16.mxu0 0
    %2701 = vmatpush1.bf16.msra.mxu0 0
    %2702 = vmatprep.subr.bf16.mxu0 0
    %2703 = vmatpush1.bf16.msra.mxu0 0
    %2704 = vmatprep.subr.bf16.mxu0 0
    %2705 = vmatpush1.bf16.msra.mxu0 0
    %2706 = vmatprep.subr.bf16.mxu0 0
    %2707 = vmatpush1.bf16.msra.mxu0 0
    %2708 = vmatprep.subr.bf16.mxu0 0
    %2709 = vmatpush1.bf16.msra.mxu0 0
    %2710 = vmatprep.subr.bf16.mxu0 0
    %2711 = vmatpush1.bf16.msra.mxu0 0
    %2712 = vmatprep.subr.bf16.mxu0 0
    %2713 = vmatpush1.bf16.msra.mxu0 0
    %2714 = vmatprep.subr.bf16.mxu0 0
    %2715 = vmatpush1.bf16.msra.mxu0 0
    %2716 = vmatprep.subr.bf16.mxu0 0
    %2717 = vmatpush1.bf16.msra.mxu0 0
    %2718 = vmatprep.mubr.bf16.mxu0 0
    %2719 = vmatmul.mubr.bf16.gmra.mrb[0].mxu0 %v2684
    %v2720 = vpop.f32.mrb[0].mxu0
    %v2721 = vadd.f32 %v2657, %v2720
    %v2722 = vpop.f32.mrb[0].mxu0
    %v2723 = vpop.f32.mrb[0].mxu0
    %v2724 = vpop.f32.mrb[0].mxu0
    %2725 = vdwg.mxu0
    %v2726 = vadd.f32 %v2721, %v2562
    %s2727 = scalar_lea.vmem %s14, 1
    %v2728 = vld [vmem:[%s2727] sm:$0x1]
    %s2729 = scalar_lea.vmem %s15, 1
    %v2730 = vld [vmem:[%s2729] sm:$0x1]
    %v2731 = vsel %vm2535, %v2726, 0.0
    %2732 = vadd.xlane.f32.xlu0 %v2731
    %v2733 = vpop.xlane.xlu0 %2732
    %v2734 = vmul.f32 %v2733, %v66
    %v2735 = vsub.f32 %v2726, %v2734
    %v2736 = vmul.f32 %v2735, %v2735
    %v2737 = vsel %vm2535, %v2736, 0.0
    %2738 = vadd.xlane.f32.xlu0 %v2737
    %v2739 = vpop.xlane.xlu0 %2738
    %v2740 = vmul.f32 %v2739, %v66
    %v2741 = vadd.f32 %v2740, 1e-12
    %v2742 = vrsqrt.pop %v2741
    %v2743 = vmul.f32 %v2735, %v2742
    %v2745 = vlaneseq
    %v2746 = vshrl.u32 %v2745, 7
    %v2747 = vsub.s32 0, %v2746
    %v2748 = vrot.slane %v2728, %v2747
    %v2750 = vmul.f32 %v2743, %v2748
    %v2752 = vlaneseq
    %v2753 = vshrl.u32 %v2752, 7
    %v2754 = vsub.s32 0, %v2753
    %v2755 = vrot.slane %v2730, %v2754
    %v2757 = vadd.f32 %v2750, %v2755
    %2758 = vst.msk [vmem:[#allocation2] sm:$0x3] %vm2535, %v2757
    // Predicated region
    $region66: #{text_encoder_forward.1} parent=1 // pred_check
      _
    $region67: #{text_encoder_forward.1} parent=1 // pred_check_branch
      %2760 = sbr.rel (0) target = $region69
    $region68: #{text_encoder_forward.1} parent=1 // pred_region
      %s2762 = ssub.s32 32, 32
      %2763 = vsyncadd [#allocation3], %s2762
      %s2765 = sshll.u32 [#allocation2], 4
      %s2766 = int_to_ptr.vmem [resolvable:$true] %s2765
      %2768 = dma.vmem_to_hbm [thread:$0]  %s2766, 32, %s16, [#allocation3]
    $region69: #{text_encoder_forward.1} parent=1 // pred_fallthru
      _
    // Predicated region
    $region70: #{text_encoder_forward.1} parent=1 // pred_check
      _
    $region71: #{text_encoder_forward.1} parent=1 // pred_check_branch
      %2770 = sbr.rel (0) target = $region73
    $region72: #{text_encoder_forward.1} parent=1 // pred_region
      %2771 = dma.done [#allocation3], 32
    $region73: #{text_encoder_forward.1} parent=1 // pred_fallthru
      _
    %2772 = vsyncpa [#allocation3], 1

</llo_original>
